<compile_context>
chip_gen: v7x
topology: tpu7x:2x2x1
jax: 0.10.0
libtpu: 0.0.40
codegen_flags: <defaults>
</compile_context>

<pallas_src>
import functools

import jax
import jax.numpy as jnp
from jax.experimental import pallas as pl
from jax.experimental.pallas import tpu as pltpu  # noqa: F401 (kept for convention)

# ---- toy "BLIP-large-like" config (small shapes) ---------------------------
BATCH = 2
CHANNELS = 3
IMG = 16
PATCH = 8
HIDDEN = 32            # vision_model_hidden_size
NUM_HEADS = 4
HEAD_DIM = HIDDEN // NUM_HEADS
INTERMEDIATE = 64
NUM_LAYERS = 2
NUM_CLASSES = 4
LN_EPS = 1e-5
GRID_HW = IMG // PATCH
NUM_PATCHES = GRID_HW * GRID_HW
SEQ = NUM_PATCHES + 1          # +CLS token
SEQ_PAD = 8                    # sublane-aligned per-image slab (>= SEQ, multiple of 8)
OUT_PAD = 128                  # lane-dense classifier output width (sliced to NUM_CLASSES)


# ---- in-kernel math helpers (pure jnp -> VPU/EUP/MXU) -----------------------
def _layer_norm(x, w, b, eps):
    mu = jnp.mean(x, axis=-1, keepdims=True)
    var = jnp.mean(jnp.square(x - mu), axis=-1, keepdims=True)
    return (x - mu) * jax.lax.rsqrt(var + eps) * w + b


def _gelu_exact(x):
    # erf-based GELU (Abramowitz-Stegun 7.1.26 erf polynomial, ~1.5e-7 max err
    # vs torch.nn.GELU()).  Operates on a single vreg of data per layer.
    z = x * 0.7071067811865476
    a = jnp.abs(z)
    t = 1.0 / (1.0 + 0.3275911 * a)
    poly = t * (0.254829592 + t * (-0.284496736 + t * (1.421413741
               + t * (-1.453152027 + t * 1.061405429))))
    erf_abs = 1.0 - poly * jnp.exp(-a * a)
    erf = jnp.where(z >= 0, erf_abs, -erf_abs)
    return 0.5 * x * (1.0 + erf)


# ---- the single fused Pallas kernel -----------------------------------------
def _blip_forward_kernel(
        patches_ref, wpatch_ref, tokbias_ref,
        ln1w_ref, ln1b_ref, wqkv_ref, bqkv_ref, wo_ref, bo_ref,
        ln2w_ref, ln2b_ref, w1_ref, b1_ref, w2_ref, b2_ref,
        plnw_ref, plnb_ref, wcls_ref, bcls_ref,
        logits_ref,
        *, batch, seq, s_pad, n_heads, head_dim, n_layers, eps):
    d = n_heads * head_dim

    # Additive key-side mask for the zero padding rows of every 8-row slab
    # (hoisted: computed once for the whole kernel).
    kmask = jnp.where(
        jax.lax.broadcasted_iota(jnp.int32, (1, s_pad), 1) < seq, 0.0, -1e9)

    # 1) patch embedding (Conv2d with kernel=stride=patch rewritten as ONE
    #    matmul over all padded rows) + pre-baked CLS/pos/conv-bias slab.
    #    CLS and padding rows of `patches` are zero, so a single matmul + add
    #    assembles the full [B*S_PAD, D] token tensor; it is then carried as a
    #    value (no token scratch, no per-row masked stores).
    x = (jnp.dot(patches_ref[...], wpatch_ref[...],
                 preferred_element_type=jnp.float32) + tokbias_ref[...])

    # 2) pre-LN transformer encoder (fully unrolled: tiny L / B / H).
    for l in range(n_layers):
        # --- multi-head self-attention (residual) ---
        hb = _layer_norm(x, ln1w_ref[l], ln1b_ref[l], eps)
        # One fused, 96-lane-dense QKV projection for all images & heads;
        # 1/sqrt(head_dim) is already folded into the q columns/bias.
        qkv = jnp.dot(hb, wqkv_ref[l],
                      preferred_element_type=jnp.float32) + bqkv_ref[l]
        ctx_rows = []
        for b in range(batch):                  # per-image attention (aligned slabs)
            r0 = b * s_pad
            heads = []
            for h in range(n_heads):
                c0 = h * head_dim
                qh = qkv[r0:r0 + s_pad, c0:c0 + head_dim]
                kh = qkv[r0:r0 + s_pad, d + c0:d + c0 + head_dim]
                vh = qkv[r0:r0 + s_pad, 2 * d + c0:2 * d + c0 + head_dim]
                # q @ k^T via dot_general contracting last dims (MXU takes the
                # transposed operand natively); padded key rows masked to -1e9.
                s = jax.lax.dot_general(
                    qh, kh, (((1,), (1,)), ((), ())),
                    preferred_element_type=jnp.float32) + kmask
                e = jnp.exp(s - jnp.max(s, axis=-1, keepdims=True))
                p = e * pl.reciprocal(jnp.sum(e, axis=-1, keepdims=True),
                                      approx=True)
                heads.append(jnp.dot(p, vh, preferred_element_type=jnp.float32))
            ctx_rows.append(jnp.concatenate(heads, axis=-1))   # [S_PAD, D]
        ctx = jnp.concatenate(ctx_rows, axis=0)                # [B*S_PAD, D]
        # Single dense output projection over all rows (no per-head chain).
        x = x + jnp.dot(ctx, wo_ref[l],
                        preferred_element_type=jnp.float32) + bo_ref[l]

        # --- MLP (residual): all B*S_PAD rows in one pair of matmuls ---
        hm = _layer_norm(x, ln2w_ref[l], ln2b_ref[l], eps)
        hm = _gelu_exact(jnp.dot(hm, w1_ref[l],
                                 preferred_element_type=jnp.float32) + b1_ref[l])
        x = x + jnp.dot(hm, w2_ref[l],
                        preferred_element_type=jnp.float32) + b2_ref[l]

    # 3) BLIP pooler: post_LN applied twice to the CLS rows (HF BLIP quirk),
    #    then the lane-padded classifier -- all B rows at once, one lane-dense
    #    [B, 128] store.
    cls = jnp.concatenate(
        [x[b * s_pad:b * s_pad + 1, :] for b in range(batch)], axis=0)   # [B, D]
    pooled = _layer_norm(cls, plnw_ref[...], plnb_ref[...], eps)
    pooled = _layer_norm(pooled, plnw_ref[...], plnb_ref[...], eps)
    logits_ref[...] = (jnp.dot(pooled, wcls_ref[...],
                               preferred_element_type=jnp.float32)
                       + bcls_ref[...]).astype(logits_ref.dtype)


# ---- deterministic synthetic parameters (torch-like layout) -----------------
def init_params(key):
    scale = 0.02
    n_keys = 4 + NUM_LAYERS * 4
    keys = iter(jax.random.split(key, n_keys))
    params = {
        "conv_w": scale * jax.random.normal(next(keys), (HIDDEN, CHANNELS, PATCH, PATCH), jnp.float32),
        "conv_b": jnp.zeros((1, HIDDEN), jnp.float32),
        "class_emb": scale * jax.random.normal(next(keys), (1, 1, HIDDEN), jnp.float32),
        "pos_emb": scale * jax.random.normal(next(keys), (1, SEQ, HIDDEN), jnp.float32),
        "post_ln_w": jnp.ones((1, HIDDEN), jnp.float32),
        "post_ln_b": jnp.zeros((1, HIDDEN), jnp.float32),
        "cls_w": scale * jax.random.normal(next(keys), (HIDDEN, NUM_CLASSES), jnp.float32),
        "cls_b": jnp.zeros((1, NUM_CLASSES), jnp.float32),
        "layers": [],
    }
    for _ in range(NUM_LAYERS):
        params["layers"].append({
            "ln1_w": jnp.ones((1, HIDDEN), jnp.float32),
            "ln1_b": jnp.zeros((1, HIDDEN), jnp.float32),
            "qkv_w": scale * jax.random.normal(next(keys), (HIDDEN, 3 * HIDDEN), jnp.float32),
            "qkv_b": jnp.zeros((1, 3 * HIDDEN), jnp.float32),
            "proj_w": scale * jax.random.normal(next(keys), (HIDDEN, HIDDEN), jnp.float32),
            "proj_b": jnp.zeros((1, HIDDEN), jnp.float32),
            "ln2_w": jnp.ones((1, HIDDEN), jnp.float32),
            "ln2_b": jnp.zeros((1, HIDDEN), jnp.float32),
            "fc1_w": scale * jax.random.normal(next(keys), (HIDDEN, INTERMEDIATE), jnp.float32),
            "fc1_b": jnp.zeros((1, INTERMEDIATE), jnp.float32),
            "fc2_w": scale * jax.random.normal(next(keys), (INTERMEDIATE, HIDDEN), jnp.float32),
            "fc2_b": jnp.zeros((1, HIDDEN), jnp.float32),
        })
    return params


def pack_params(p):
    """Restructure torch-like weights into the fused-kernel layout (done once)."""
    d = HIDDEN
    attn_scale = HEAD_DIM ** -0.5
    # fold 1/sqrt(head_dim) into the q columns of the fused qkv projection
    col_scale = jnp.concatenate(
        [jnp.full((1, d), attn_scale, jnp.float32),
         jnp.ones((1, 2 * d), jnp.float32)], axis=1)

    names = ("ln1_w", "ln1_b", "wqkv", "bqkv", "wo", "bo",
             "ln2_w", "ln2_b", "fc1_w", "fc1_b", "fc2_w", "fc2_b")
    stacks = {k: [] for k in names}
    for lp in p["layers"]:
        stacks["ln1_w"].append(lp["ln1_w"]); stacks["ln1_b"].append(lp["ln1_b"])
        stacks["wqkv"].append(lp["qkv_w"] * col_scale)   # q/k/v columns, head-major
        stacks["bqkv"].append(lp["qkv_b"] * col_scale)
        stacks["wo"].append(lp["proj_w"]); stacks["bo"].append(lp["proj_b"])
        stacks["ln2_w"].append(lp["ln2_w"]); stacks["ln2_b"].append(lp["ln2_b"])
        stacks["fc1_w"].append(lp["fc1_w"]); stacks["fc1_b"].append(lp["fc1_b"])
        stacks["fc2_w"].append(lp["fc2_w"]); stacks["fc2_b"].append(lp["fc2_b"])
    kp = {k: jnp.stack(v) for k, v in stacks.items()}

    # [S_PAD, D] per-image token-bias slab:
    #   row 0              : cls_emb + pos[0]
    #   rows 1..NUM_PATCHES: pos[1..] + conv bias (folded here, not in-kernel)
    #   rows ..S_PAD-1     : 0 (padding rows)
    tok_bias = jnp.concatenate(
        [p["class_emb"][0] + p["pos_emb"][0, 0:1, :],
         p["pos_emb"][0, 1:SEQ, :] + p["conv_b"],
         jnp.zeros((SEQ_PAD - SEQ, HIDDEN), jnp.float32)],
        axis=0)

    kp.update({
        "wpatch": p["conv_w"].reshape(HIDDEN, CHANNELS * PATCH * PATCH).T,   # [C*p*p, D]
        "tok_bias": tok_bias,
        "post_ln_w": p["post_ln_w"], "post_ln_b": p["post_ln_b"],
        # lane-dense classifier: pad output columns to 128, slice in wrapper
        "cls_w": jnp.pad(p["cls_w"], ((0, 0), (0, OUT_PAD - NUM_CLASSES))),
        "cls_b": jnp.pad(p["cls_b"], ((0, 0), (0, OUT_PAD - NUM_CLASSES))),
    })
    return kp


# ---- full forward pass -------------------------------------------------------
def blip_classification_forward(pixel_values, kp):
    b, c, hgt, wdt = pixel_values.shape
    gh, gw = hgt // PATCH, wdt // PATCH
    n_patch = gh * gw
    seq = n_patch + 1

    # Patch extraction (cheap glue): Conv2d(k=stride=PATCH) == per-patch matmul
    # over flattened (c, ph, pw) pixels, matching the Conv2d weight flatten order.
    x = pixel_values.reshape(b, c, gh, PATCH, gw, PATCH)
    patches = x.transpose(0, 2, 4, 1, 3, 5).reshape(b, n_patch, c * PATCH * PATCH)
    # Pre-insert the zero CLS row and zero padding rows so every image owns a
    # sublane-aligned SEQ_PAD-row slab and the kernel assembles the full token
    # tensor with a single matmul + add (no masked per-row stores).
    patches = jnp.pad(patches, ((0, 0), (1, SEQ_PAD - seq), (0, 0)))
    patches = patches.reshape(b * SEQ_PAD, c * PATCH * PATCH)
    tok_bias = jnp.tile(kp["tok_bias"], (b, 1))                 # [B*S_PAD, D]

    kernel = functools.partial(
        _blip_forward_kernel, batch=b, seq=seq, s_pad=SEQ_PAD,
        n_heads=NUM_HEADS, head_dim=HEAD_DIM, n_layers=NUM_LAYERS, eps=LN_EPS)

    # One fused, grid-less pallas_call: every operand lives wholly in VMEM and
    # the token tensor is carried as a value across all layers.
    # TODO(synk): at real BLIP-L sizes (D=1024, FF=4096, 24 layers) this
    # all-weights-resident scheme must become a layer grid with BlockSpec-
    # pipelined (preferably bf16) weight tiles plus a "parallel" batch axis
    # for v7x's two TensorCores; at this toy size grid-less is strictly faster.
    logits_padded = pl.pallas_call(
        kernel,
        out_shape=jax.ShapeDtypeStruct((b, OUT_PAD), jnp.float32),
    )(patches, kp["wpatch"], tok_bias,
      kp["ln1_w"], kp["ln1_b"], kp["wqkv"], kp["bqkv"], kp["wo"], kp["bo"],
      kp["ln2_w"], kp["ln2_b"], kp["fc1_w"], kp["fc1_b"], kp["fc2_w"], kp["fc2_b"],
      kp["post_ln_w"], kp["post_ln_b"], kp["cls_w"], kp["cls_b"])

    return {"logits": logits_padded[:, :NUM_CLASSES]}


if __name__ == "__main__":
    root = jax.random.PRNGKey(0)
    pkey, xkey = jax.random.split(root)
    params = pack_params(init_params(pkey))
    pixel_values = jax.random.normal(xkey, (BATCH, CHANNELS, IMG, IMG), jnp.float32)

    fwd = jax.jit(blip_classification_forward)
    out = fwd(pixel_values, params)
    logits = jax.block_until_ready(out["logits"])
    assert logits.shape == (BATCH, NUM_CLASSES)
    assert bool(jnp.all(jnp.isfinite(logits)))
    print("KERNEL_OK")
</pallas_src>

<mosaic_0001>
module attributes {stable_mosaic.version = 11 : i64} {
  func.func @_blip_forward_kernel(%arg0: memref<16x192xf32, #tpu.memory_space<vmem>>, %arg1: memref<192x32xf32, #tpu.memory_space<vmem>>, %arg2: memref<16x32xf32, #tpu.memory_space<vmem>>, %arg3: memref<2x1x32xf32, #tpu.memory_space<vmem>>, %arg4: memref<2x1x32xf32, #tpu.memory_space<vmem>>, %arg5: memref<2x32x96xf32, #tpu.memory_space<vmem>>, %arg6: memref<2x1x96xf32, #tpu.memory_space<vmem>>, %arg7: memref<2x32x32xf32, #tpu.memory_space<vmem>>, %arg8: memref<2x1x32xf32, #tpu.memory_space<vmem>>, %arg9: memref<2x1x32xf32, #tpu.memory_space<vmem>>, %arg10: memref<2x1x32xf32, #tpu.memory_space<vmem>>, %arg11: memref<2x32x64xf32, #tpu.memory_space<vmem>>, %arg12: memref<2x1x64xf32, #tpu.memory_space<vmem>>, %arg13: memref<2x64x32xf32, #tpu.memory_space<vmem>>, %arg14: memref<2x1x32xf32, #tpu.memory_space<vmem>>, %arg15: memref<1x32xf32, #tpu.memory_space<vmem>>, %arg16: memref<1x32xf32, #tpu.memory_space<vmem>>, %arg17: memref<32x128xf32, #tpu.memory_space<vmem>>, %arg18: memref<1x128xf32, #tpu.memory_space<vmem>>, %arg19: memref<2x128xf32, #tpu.memory_space<vmem>>) attributes {dimension_semantics = [], scalar_prefetch = 0 : i64, scratch_operands = 0 : i64, tpu.core_type = #tpu.core_type<tc>} {
    %0 = tpu.iota {dimensions = array<i32: 1>} : vector<1x8xi32>
    %c5_i32 = arith.constant 5 : i32
    %1 = vector.broadcast %c5_i32 : i32 to vector<1x8xi32>
    %2 = arith.cmpi slt, %0, %1 : vector<1x8xi32>
    %cst = arith.constant 0.000000e+00 : f32
    %cst_0 = arith.constant -1.000000e+09 : f32
    %3 = vector.broadcast %cst : f32 to vector<1x8xf32>
    %4 = vector.broadcast %cst_0 : f32 to vector<1x8xf32>
    %5 = arith.select %2, %3, %4 : vector<1x8xi1>, vector<1x8xf32>
    %c0 = arith.constant 0 : index
    %c0_1 = arith.constant 0 : index
    %6 = vector.load %arg0[%c0, %c0_1] : memref<16x192xf32, #tpu.memory_space<vmem>>, vector<16x192xf32>
    %c0_2 = arith.constant 0 : index
    %c0_3 = arith.constant 0 : index
    %7 = vector.load %arg1[%c0_2, %c0_3] : memref<192x32xf32, #tpu.memory_space<vmem>>, vector<192x32xf32>
    %cst_4 = arith.constant dense<0.000000e+00> : vector<16x32xf32>
    %8 = tpu.matmul %6, %7, %cst_4 {dimension_numbers = #tpu.dot_dimension_numbers<[1], [0], [0], [1], [0, 0, 1, 1], [], []>} : vector<16x192xf32>, vector<192x32xf32>, vector<16x32xf32> -> vector<16x32xf32>
    %c0_5 = arith.constant 0 : index
    %c0_6 = arith.constant 0 : index
    %9 = vector.load %arg2[%c0_5, %c0_6] : memref<16x32xf32, #tpu.memory_space<vmem>>, vector<16x32xf32>
    %10 = arith.addf %8, %9 : vector<16x32xf32>
    %c0_7 = arith.constant 0 : index
    %c0_8 = arith.constant 0 : index
    %c0_9 = arith.constant 0 : index
    %11 = vector.load %arg3[%c0_7, %c0_8, %c0_9] : memref<2x1x32xf32, #tpu.memory_space<vmem>>, vector<1x1x32xf32>
    %12 = vector.shape_cast %11 : vector<1x1x32xf32> to vector<1x32xf32>
    %c0_10 = arith.constant 0 : index
    %c0_11 = arith.constant 0 : index
    %c0_12 = arith.constant 0 : index
    %13 = vector.load %arg4[%c0_10, %c0_11, %c0_12] : memref<2x1x32xf32, #tpu.memory_space<vmem>>, vector<1x1x32xf32>
    %14 = vector.shape_cast %13 : vector<1x1x32xf32> to vector<1x32xf32>
    %cst_13 = arith.constant dense<0.000000e+00> : vector<16xf32>
    %15 = vector.multi_reduction <add>, %10, %cst_13 [1] : vector<16x32xf32> to vector<16xf32>
    %16 = vector.shape_cast %15 : vector<16xf32> to vector<16x1xf32>
    %cst_14 = arith.constant 3.200000e+01 : f32
    %17 = vector.broadcast %cst_14 : f32 to vector<16x1xf32>
    %18 = arith.divf %16, %17 : vector<16x1xf32>
    %19 = vector.broadcast %18 : vector<16x1xf32> to vector<16x32xf32>
    %20 = arith.subf %10, %19 : vector<16x32xf32>
    %21 = arith.mulf %20, %20 : vector<16x32xf32>
    %cst_15 = arith.constant dense<0.000000e+00> : vector<16xf32>
    %22 = vector.multi_reduction <add>, %21, %cst_15 [1] : vector<16x32xf32> to vector<16xf32>
    %23 = vector.shape_cast %22 : vector<16xf32> to vector<16x1xf32>
    %cst_16 = arith.constant 3.200000e+01 : f32
    %24 = vector.broadcast %cst_16 : f32 to vector<16x1xf32>
    %25 = arith.divf %23, %24 : vector<16x1xf32>
    %26 = vector.broadcast %18 : vector<16x1xf32> to vector<16x32xf32>
    %27 = arith.subf %10, %26 : vector<16x32xf32>
    %cst_17 = arith.constant 9.99999974E-6 : f32
    %28 = vector.broadcast %cst_17 : f32 to vector<16x1xf32>
    %29 = arith.addf %25, %28 : vector<16x1xf32>
    %30 = math.rsqrt %29 : vector<16x1xf32>
    %31 = vector.broadcast %30 : vector<16x1xf32> to vector<16x32xf32>
    %32 = arith.mulf %27, %31 : vector<16x32xf32>
    %33 = vector.broadcast %12 : vector<1x32xf32> to vector<16x32xf32>
    %34 = arith.mulf %32, %33 : vector<16x32xf32>
    %35 = vector.broadcast %14 : vector<1x32xf32> to vector<16x32xf32>
    %36 = arith.addf %34, %35 : vector<16x32xf32>
    %c0_18 = arith.constant 0 : index
    %c0_19 = arith.constant 0 : index
    %c0_20 = arith.constant 0 : index
    %37 = vector.load %arg5[%c0_18, %c0_19, %c0_20] : memref<2x32x96xf32, #tpu.memory_space<vmem>>, vector<1x32x96xf32>
    %38 = vector.shape_cast %37 : vector<1x32x96xf32> to vector<32x96xf32>
    %cst_21 = arith.constant dense<0.000000e+00> : vector<16x96xf32>
    %39 = tpu.matmul %36, %38, %cst_21 {dimension_numbers = #tpu.dot_dimension_numbers<[1], [0], [0], [1], [0, 0, 1, 1], [], []>} : vector<16x32xf32>, vector<32x96xf32>, vector<16x96xf32> -> vector<16x96xf32>
    %c0_22 = arith.constant 0 : index
    %c0_23 = arith.constant 0 : index
    %c0_24 = arith.constant 0 : index
    %40 = vector.load %arg6[%c0_22, %c0_23, %c0_24] : memref<2x1x96xf32, #tpu.memory_space<vmem>>, vector<1x1x96xf32>
    %41 = vector.shape_cast %40 : vector<1x1x96xf32> to vector<1x96xf32>
    %42 = vector.broadcast %41 : vector<1x96xf32> to vector<16x96xf32>
    %43 = arith.addf %39, %42 : vector<16x96xf32>
    %44 = vector.extract_strided_slice %43 {offsets = [0, 0], sizes = [8, 8], strides = [1, 1]} : vector<16x96xf32> to vector<8x8xf32>
    %45 = vector.extract_strided_slice %43 {offsets = [0, 32], sizes = [8, 8], strides = [1, 1]} : vector<16x96xf32> to vector<8x8xf32>
    %46 = vector.extract_strided_slice %43 {offsets = [0, 64], sizes = [8, 8], strides = [1, 1]} : vector<16x96xf32> to vector<8x8xf32>
    %cst_25 = arith.constant dense<0.000000e+00> : vector<8x8xf32>
    %47 = tpu.matmul %44, %45, %cst_25 {dimension_numbers = #tpu.dot_dimension_numbers<[1], [1], [0], [0], [0, 0, 1, 0], [], []>} : vector<8x8xf32>, vector<8x8xf32>, vector<8x8xf32> -> vector<8x8xf32>
    %48 = vector.broadcast %5 : vector<1x8xf32> to vector<8x8xf32>
    %49 = arith.addf %47, %48 : vector<8x8xf32>
    %cst_26 = arith.constant dense<0xFF800000> : vector<8xf32>
    %50 = vector.multi_reduction <maximumf>, %49, %cst_26 [1] : vector<8x8xf32> to vector<8xf32>
    %51 = vector.shape_cast %50 : vector<8xf32> to vector<8x1xf32>
    %52 = vector.broadcast %51 : vector<8x1xf32> to vector<8x8xf32>
    %53 = arith.subf %49, %52 : vector<8x8xf32>
    %54 = math.exp %53 : vector<8x8xf32>
    %cst_27 = arith.constant dense<0.000000e+00> : vector<8xf32>
    %55 = vector.multi_reduction <add>, %54, %cst_27 [1] : vector<8x8xf32> to vector<8xf32>
    %56 = vector.shape_cast %55 : vector<8xf32> to vector<8x1xf32>
    %57 = tpu.reciprocal %56 {approx = true} : vector<8x1xf32> -> vector<8x1xf32>
    %58 = vector.broadcast %57 : vector<8x1xf32> to vector<8x8xf32>
    %59 = arith.mulf %54, %58 : vector<8x8xf32>
    %cst_28 = arith.constant dense<0.000000e+00> : vector<8x8xf32>
    %60 = tpu.matmul %59, %46, %cst_28 {dimension_numbers = #tpu.dot_dimension_numbers<[1], [0], [0], [1], [0, 0, 1, 1], [], []>} : vector<8x8xf32>, vector<8x8xf32>, vector<8x8xf32> -> vector<8x8xf32>
    %61 = vector.extract_strided_slice %43 {offsets = [0, 8], sizes = [8, 8], strides = [1, 1]} : vector<16x96xf32> to vector<8x8xf32>
    %62 = vector.extract_strided_slice %43 {offsets = [0, 40], sizes = [8, 8], strides = [1, 1]} : vector<16x96xf32> to vector<8x8xf32>
    %63 = vector.extract_strided_slice %43 {offsets = [0, 72], sizes = [8, 8], strides = [1, 1]} : vector<16x96xf32> to vector<8x8xf32>
    %cst_29 = arith.constant dense<0.000000e+00> : vector<8x8xf32>
    %64 = tpu.matmul %61, %62, %cst_29 {dimension_numbers = #tpu.dot_dimension_numbers<[1], [1], [0], [0], [0, 0, 1, 0], [], []>} : vector<8x8xf32>, vector<8x8xf32>, vector<8x8xf32> -> vector<8x8xf32>
    %65 = vector.broadcast %5 : vector<1x8xf32> to vector<8x8xf32>
    %66 = arith.addf %64, %65 : vector<8x8xf32>
    %cst_30 = arith.constant dense<0xFF800000> : vector<8xf32>
    %67 = vector.multi_reduction <maximumf>, %66, %cst_30 [1] : vector<8x8xf32> to vector<8xf32>
    %68 = vector.shape_cast %67 : vector<8xf32> to vector<8x1xf32>
    %69 = vector.broadcast %68 : vector<8x1xf32> to vector<8x8xf32>
    %70 = arith.subf %66, %69 : vector<8x8xf32>
    %71 = math.exp %70 : vector<8x8xf32>
    %cst_31 = arith.constant dense<0.000000e+00> : vector<8xf32>
    %72 = vector.multi_reduction <add>, %71, %cst_31 [1] : vector<8x8xf32> to vector<8xf32>
    %73 = vector.shape_cast %72 : vector<8xf32> to vector<8x1xf32>
    %74 = tpu.reciprocal %73 {approx = true} : vector<8x1xf32> -> vector<8x1xf32>
    %75 = vector.broadcast %74 : vector<8x1xf32> to vector<8x8xf32>
    %76 = arith.mulf %71, %75 : vector<8x8xf32>
    %cst_32 = arith.constant dense<0.000000e+00> : vector<8x8xf32>
    %77 = tpu.matmul %76, %63, %cst_32 {dimension_numbers = #tpu.dot_dimension_numbers<[1], [0], [0], [1], [0, 0, 1, 1], [], []>} : vector<8x8xf32>, vector<8x8xf32>, vector<8x8xf32> -> vector<8x8xf32>
    %78 = vector.extract_strided_slice %43 {offsets = [0, 16], sizes = [8, 8], strides = [1, 1]} : vector<16x96xf32> to vector<8x8xf32>
    %79 = vector.extract_strided_slice %43 {offsets = [0, 48], sizes = [8, 8], strides = [1, 1]} : vector<16x96xf32> to vector<8x8xf32>
    %80 = vector.extract_strided_slice %43 {offsets = [0, 80], sizes = [8, 8], strides = [1, 1]} : vector<16x96xf32> to vector<8x8xf32>
    %cst_33 = arith.constant dense<0.000000e+00> : vector<8x8xf32>
    %81 = tpu.matmul %78, %79, %cst_33 {dimension_numbers = #tpu.dot_dimension_numbers<[1], [1], [0], [0], [0, 0, 1, 0], [], []>} : vector<8x8xf32>, vector<8x8xf32>, vector<8x8xf32> -> vector<8x8xf32>
    %82 = vector.broadcast %5 : vector<1x8xf32> to vector<8x8xf32>
    %83 = arith.addf %81, %82 : vector<8x8xf32>
    %cst_34 = arith.constant dense<0xFF800000> : vector<8xf32>
    %84 = vector.multi_reduction <maximumf>, %83, %cst_34 [1] : vector<8x8xf32> to vector<8xf32>
    %85 = vector.shape_cast %84 : vector<8xf32> to vector<8x1xf32>
    %86 = vector.broadcast %85 : vector<8x1xf32> to vector<8x8xf32>
    %87 = arith.subf %83, %86 : vector<8x8xf32>
    %88 = math.exp %87 : vector<8x8xf32>
    %cst_35 = arith.constant dense<0.000000e+00> : vector<8xf32>
    %89 = vector.multi_reduction <add>, %88, %cst_35 [1] : vector<8x8xf32> to vector<8xf32>
    %90 = vector.shape_cast %89 : vector<8xf32> to vector<8x1xf32>
    %91 = tpu.reciprocal %90 {approx = true} : vector<8x1xf32> -> vector<8x1xf32>
    %92 = vector.broadcast %91 : vector<8x1xf32> to vector<8x8xf32>
    %93 = arith.mulf %88, %92 : vector<8x8xf32>
    %cst_36 = arith.constant dense<0.000000e+00> : vector<8x8xf32>
    %94 = tpu.matmul %93, %80, %cst_36 {dimension_numbers = #tpu.dot_dimension_numbers<[1], [0], [0], [1], [0, 0, 1, 1], [], []>} : vector<8x8xf32>, vector<8x8xf32>, vector<8x8xf32> -> vector<8x8xf32>
    %95 = vector.extract_strided_slice %43 {offsets = [0, 24], sizes = [8, 8], strides = [1, 1]} : vector<16x96xf32> to vector<8x8xf32>
    %96 = vector.extract_strided_slice %43 {offsets = [0, 56], sizes = [8, 8], strides = [1, 1]} : vector<16x96xf32> to vector<8x8xf32>
    %97 = vector.extract_strided_slice %43 {offsets = [0, 88], sizes = [8, 8], strides = [1, 1]} : vector<16x96xf32> to vector<8x8xf32>
    %cst_37 = arith.constant dense<0.000000e+00> : vector<8x8xf32>
    %98 = tpu.matmul %95, %96, %cst_37 {dimension_numbers = #tpu.dot_dimension_numbers<[1], [1], [0], [0], [0, 0, 1, 0], [], []>} : vector<8x8xf32>, vector<8x8xf32>, vector<8x8xf32> -> vector<8x8xf32>
    %99 = vector.broadcast %5 : vector<1x8xf32> to vector<8x8xf32>
    %100 = arith.addf %98, %99 : vector<8x8xf32>
    %cst_38 = arith.constant dense<0xFF800000> : vector<8xf32>
    %101 = vector.multi_reduction <maximumf>, %100, %cst_38 [1] : vector<8x8xf32> to vector<8xf32>
    %102 = vector.shape_cast %101 : vector<8xf32> to vector<8x1xf32>
    %103 = vector.broadcast %102 : vector<8x1xf32> to vector<8x8xf32>
    %104 = arith.subf %100, %103 : vector<8x8xf32>
    %105 = math.exp %104 : vector<8x8xf32>
    %cst_39 = arith.constant dense<0.000000e+00> : vector<8xf32>
    %106 = vector.multi_reduction <add>, %105, %cst_39 [1] : vector<8x8xf32> to vector<8xf32>
    %107 = vector.shape_cast %106 : vector<8xf32> to vector<8x1xf32>
    %108 = tpu.reciprocal %107 {approx = true} : vector<8x1xf32> -> vector<8x1xf32>
    %109 = vector.broadcast %108 : vector<8x1xf32> to vector<8x8xf32>
    %110 = arith.mulf %105, %109 : vector<8x8xf32>
    %cst_40 = arith.constant dense<0.000000e+00> : vector<8x8xf32>
    %111 = tpu.matmul %110, %97, %cst_40 {dimension_numbers = #tpu.dot_dimension_numbers<[1], [0], [0], [1], [0, 0, 1, 1], [], []>} : vector<8x8xf32>, vector<8x8xf32>, vector<8x8xf32> -> vector<8x8xf32>
    %112 = tpu.concatenate %60, %77, %94, %111 in 1 : vector<8x8xf32>, vector<8x8xf32>, vector<8x8xf32>, vector<8x8xf32> -> vector<8x32xf32>
    %113 = vector.extract_strided_slice %43 {offsets = [8, 0], sizes = [8, 8], strides = [1, 1]} : vector<16x96xf32> to vector<8x8xf32>
    %114 = vector.extract_strided_slice %43 {offsets = [8, 32], sizes = [8, 8], strides = [1, 1]} : vector<16x96xf32> to vector<8x8xf32>
    %115 = vector.extract_strided_slice %43 {offsets = [8, 64], sizes = [8, 8], strides = [1, 1]} : vector<16x96xf32> to vector<8x8xf32>
    %cst_41 = arith.constant dense<0.000000e+00> : vector<8x8xf32>
    %116 = tpu.matmul %113, %114, %cst_41 {dimension_numbers = #tpu.dot_dimension_numbers<[1], [1], [0], [0], [0, 0, 1, 0], [], []>} : vector<8x8xf32>, vector<8x8xf32>, vector<8x8xf32> -> vector<8x8xf32>
    %117 = vector.broadcast %5 : vector<1x8xf32> to vector<8x8xf32>
    %118 = arith.addf %116, %117 : vector<8x8xf32>
    %cst_42 = arith.constant dense<0xFF800000> : vector<8xf32>
    %119 = vector.multi_reduction <maximumf>, %118, %cst_42 [1] : vector<8x8xf32> to vector<8xf32>
    %120 = vector.shape_cast %119 : vector<8xf32> to vector<8x1xf32>
    %121 = vector.broadcast %120 : vector<8x1xf32> to vector<8x8xf32>
    %122 = arith.subf %118, %121 : vector<8x8xf32>
    %123 = math.exp %122 : vector<8x8xf32>
    %cst_43 = arith.constant dense<0.000000e+00> : vector<8xf32>
    %124 = vector.multi_reduction <add>, %123, %cst_43 [1] : vector<8x8xf32> to vector<8xf32>
    %125 = vector.shape_cast %124 : vector<8xf32> to vector<8x1xf32>
    %126 = tpu.reciprocal %125 {approx = true} : vector<8x1xf32> -> vector<8x1xf32>
    %127 = vector.broadcast %126 : vector<8x1xf32> to vector<8x8xf32>
    %128 = arith.mulf %123, %127 : vector<8x8xf32>
    %cst_44 = arith.constant dense<0.000000e+00> : vector<8x8xf32>
    %129 = tpu.matmul %128, %115, %cst_44 {dimension_numbers = #tpu.dot_dimension_numbers<[1], [0], [0], [1], [0, 0, 1, 1], [], []>} : vector<8x8xf32>, vector<8x8xf32>, vector<8x8xf32> -> vector<8x8xf32>
    %130 = vector.extract_strided_slice %43 {offsets = [8, 8], sizes = [8, 8], strides = [1, 1]} : vector<16x96xf32> to vector<8x8xf32>
    %131 = vector.extract_strided_slice %43 {offsets = [8, 40], sizes = [8, 8], strides = [1, 1]} : vector<16x96xf32> to vector<8x8xf32>
    %132 = vector.extract_strided_slice %43 {offsets = [8, 72], sizes = [8, 8], strides = [1, 1]} : vector<16x96xf32> to vector<8x8xf32>
    %cst_45 = arith.constant dense<0.000000e+00> : vector<8x8xf32>
    %133 = tpu.matmul %130, %131, %cst_45 {dimension_numbers = #tpu.dot_dimension_numbers<[1], [1], [0], [0], [0, 0, 1, 0], [], []>} : vector<8x8xf32>, vector<8x8xf32>, vector<8x8xf32> -> vector<8x8xf32>
    %134 = vector.broadcast %5 : vector<1x8xf32> to vector<8x8xf32>
    %135 = arith.addf %133, %134 : vector<8x8xf32>
    %cst_46 = arith.constant dense<0xFF800000> : vector<8xf32>
    %136 = vector.multi_reduction <maximumf>, %135, %cst_46 [1] : vector<8x8xf32> to vector<8xf32>
    %137 = vector.shape_cast %136 : vector<8xf32> to vector<8x1xf32>
    %138 = vector.broadcast %137 : vector<8x1xf32> to vector<8x8xf32>
    %139 = arith.subf %135, %138 : vector<8x8xf32>
    %140 = math.exp %139 : vector<8x8xf32>
    %cst_47 = arith.constant dense<0.000000e+00> : vector<8xf32>
    %141 = vector.multi_reduction <add>, %140, %cst_47 [1] : vector<8x8xf32> to vector<8xf32>
    %142 = vector.shape_cast %141 : vector<8xf32> to vector<8x1xf32>
    %143 = tpu.reciprocal %142 {approx = true} : vector<8x1xf32> -> vector<8x1xf32>
    %144 = vector.broadcast %143 : vector<8x1xf32> to vector<8x8xf32>
    %145 = arith.mulf %140, %144 : vector<8x8xf32>
    %cst_48 = arith.constant dense<0.000000e+00> : vector<8x8xf32>
    %146 = tpu.matmul %145, %132, %cst_48 {dimension_numbers = #tpu.dot_dimension_numbers<[1], [0], [0], [1], [0, 0, 1, 1], [], []>} : vector<8x8xf32>, vector<8x8xf32>, vector<8x8xf32> -> vector<8x8xf32>
    %147 = vector.extract_strided_slice %43 {offsets = [8, 16], sizes = [8, 8], strides = [1, 1]} : vector<16x96xf32> to vector<8x8xf32>
    %148 = vector.extract_strided_slice %43 {offsets = [8, 48], sizes = [8, 8], strides = [1, 1]} : vector<16x96xf32> to vector<8x8xf32>
    %149 = vector.extract_strided_slice %43 {offsets = [8, 80], sizes = [8, 8], strides = [1, 1]} : vector<16x96xf32> to vector<8x8xf32>
    %cst_49 = arith.constant dense<0.000000e+00> : vector<8x8xf32>
    %150 = tpu.matmul %147, %148, %cst_49 {dimension_numbers = #tpu.dot_dimension_numbers<[1], [1], [0], [0], [0, 0, 1, 0], [], []>} : vector<8x8xf32>, vector<8x8xf32>, vector<8x8xf32> -> vector<8x8xf32>
    %151 = vector.broadcast %5 : vector<1x8xf32> to vector<8x8xf32>
    %152 = arith.addf %150, %151 : vector<8x8xf32>
    %cst_50 = arith.constant dense<0xFF800000> : vector<8xf32>
    %153 = vector.multi_reduction <maximumf>, %152, %cst_50 [1] : vector<8x8xf32> to vector<8xf32>
    %154 = vector.shape_cast %153 : vector<8xf32> to vector<8x1xf32>
    %155 = vector.broadcast %154 : vector<8x1xf32> to vector<8x8xf32>
    %156 = arith.subf %152, %155 : vector<8x8xf32>
    %157 = math.exp %156 : vector<8x8xf32>
    %cst_51 = arith.constant dense<0.000000e+00> : vector<8xf32>
    %158 = vector.multi_reduction <add>, %157, %cst_51 [1] : vector<8x8xf32> to vector<8xf32>
    %159 = vector.shape_cast %158 : vector<8xf32> to vector<8x1xf32>
    %160 = tpu.reciprocal %159 {approx = true} : vector<8x1xf32> -> vector<8x1xf32>
    %161 = vector.broadcast %160 : vector<8x1xf32> to vector<8x8xf32>
    %162 = arith.mulf %157, %161 : vector<8x8xf32>
    %cst_52 = arith.constant dense<0.000000e+00> : vector<8x8xf32>
    %163 = tpu.matmul %162, %149, %cst_52 {dimension_numbers = #tpu.dot_dimension_numbers<[1], [0], [0], [1], [0, 0, 1, 1], [], []>} : vector<8x8xf32>, vector<8x8xf32>, vector<8x8xf32> -> vector<8x8xf32>
    %164 = vector.extract_strided_slice %43 {offsets = [8, 24], sizes = [8, 8], strides = [1, 1]} : vector<16x96xf32> to vector<8x8xf32>
    %165 = vector.extract_strided_slice %43 {offsets = [8, 56], sizes = [8, 8], strides = [1, 1]} : vector<16x96xf32> to vector<8x8xf32>
    %166 = vector.extract_strided_slice %43 {offsets = [8, 88], sizes = [8, 8], strides = [1, 1]} : vector<16x96xf32> to vector<8x8xf32>
    %cst_53 = arith.constant dense<0.000000e+00> : vector<8x8xf32>
    %167 = tpu.matmul %164, %165, %cst_53 {dimension_numbers = #tpu.dot_dimension_numbers<[1], [1], [0], [0], [0, 0, 1, 0], [], []>} : vector<8x8xf32>, vector<8x8xf32>, vector<8x8xf32> -> vector<8x8xf32>
    %168 = vector.broadcast %5 : vector<1x8xf32> to vector<8x8xf32>
    %169 = arith.addf %167, %168 : vector<8x8xf32>
    %cst_54 = arith.constant dense<0xFF800000> : vector<8xf32>
    %170 = vector.multi_reduction <maximumf>, %169, %cst_54 [1] : vector<8x8xf32> to vector<8xf32>
    %171 = vector.shape_cast %170 : vector<8xf32> to vector<8x1xf32>
    %172 = vector.broadcast %171 : vector<8x1xf32> to vector<8x8xf32>
    %173 = arith.subf %169, %172 : vector<8x8xf32>
    %174 = math.exp %173 : vector<8x8xf32>
    %cst_55 = arith.constant dense<0.000000e+00> : vector<8xf32>
    %175 = vector.multi_reduction <add>, %174, %cst_55 [1] : vector<8x8xf32> to vector<8xf32>
    %176 = vector.shape_cast %175 : vector<8xf32> to vector<8x1xf32>
    %177 = tpu.reciprocal %176 {approx = true} : vector<8x1xf32> -> vector<8x1xf32>
    %178 = vector.broadcast %177 : vector<8x1xf32> to vector<8x8xf32>
    %179 = arith.mulf %174, %178 : vector<8x8xf32>
    %cst_56 = arith.constant dense<0.000000e+00> : vector<8x8xf32>
    %180 = tpu.matmul %179, %166, %cst_56 {dimension_numbers = #tpu.dot_dimension_numbers<[1], [0], [0], [1], [0, 0, 1, 1], [], []>} : vector<8x8xf32>, vector<8x8xf32>, vector<8x8xf32> -> vector<8x8xf32>
    %181 = tpu.concatenate %129, %146, %163, %180 in 1 : vector<8x8xf32>, vector<8x8xf32>, vector<8x8xf32>, vector<8x8xf32> -> vector<8x32xf32>
    %182 = tpu.concatenate %112, %181 in 0 : vector<8x32xf32>, vector<8x32xf32> -> vector<16x32xf32>
    %c0_57 = arith.constant 0 : index
    %c0_58 = arith.constant 0 : index
    %c0_59 = arith.constant 0 : index
    %183 = vector.load %arg7[%c0_57, %c0_58, %c0_59] : memref<2x32x32xf32, #tpu.memory_space<vmem>>, vector<1x32x32xf32>
    %184 = vector.shape_cast %183 : vector<1x32x32xf32> to vector<32x32xf32>
    %cst_60 = arith.constant dense<0.000000e+00> : vector<16x32xf32>
    %185 = tpu.matmul %182, %184, %cst_60 {dimension_numbers = #tpu.dot_dimension_numbers<[1], [0], [0], [1], [0, 0, 1, 1], [], []>} : vector<16x32xf32>, vector<32x32xf32>, vector<16x32xf32> -> vector<16x32xf32>
    %186 = arith.addf %10, %185 : vector<16x32xf32>
    %c0_61 = arith.constant 0 : index
    %c0_62 = arith.constant 0 : index
    %c0_63 = arith.constant 0 : index
    %187 = vector.load %arg8[%c0_61, %c0_62, %c0_63] : memref<2x1x32xf32, #tpu.memory_space<vmem>>, vector<1x1x32xf32>
    %188 = vector.shape_cast %187 : vector<1x1x32xf32> to vector<1x32xf32>
    %189 = vector.broadcast %188 : vector<1x32xf32> to vector<16x32xf32>
    %190 = arith.addf %186, %189 : vector<16x32xf32>
    %c0_64 = arith.constant 0 : index
    %c0_65 = arith.constant 0 : index
    %c0_66 = arith.constant 0 : index
    %191 = vector.load %arg9[%c0_64, %c0_65, %c0_66] : memref<2x1x32xf32, #tpu.memory_space<vmem>>, vector<1x1x32xf32>
    %192 = vector.shape_cast %191 : vector<1x1x32xf32> to vector<1x32xf32>
    %c0_67 = arith.constant 0 : index
    %c0_68 = arith.constant 0 : index
    %c0_69 = arith.constant 0 : index
    %193 = vector.load %arg10[%c0_67, %c0_68, %c0_69] : memref<2x1x32xf32, #tpu.memory_space<vmem>>, vector<1x1x32xf32>
    %194 = vector.shape_cast %193 : vector<1x1x32xf32> to vector<1x32xf32>
    %cst_70 = arith.constant dense<0.000000e+00> : vector<16xf32>
    %195 = vector.multi_reduction <add>, %190, %cst_70 [1] : vector<16x32xf32> to vector<16xf32>
    %196 = vector.shape_cast %195 : vector<16xf32> to vector<16x1xf32>
    %cst_71 = arith.constant 3.200000e+01 : f32
    %197 = vector.broadcast %cst_71 : f32 to vector<16x1xf32>
    %198 = arith.divf %196, %197 : vector<16x1xf32>
    %199 = vector.broadcast %198 : vector<16x1xf32> to vector<16x32xf32>
    %200 = arith.subf %190, %199 : vector<16x32xf32>
    %201 = arith.mulf %200, %200 : vector<16x32xf32>
    %cst_72 = arith.constant dense<0.000000e+00> : vector<16xf32>
    %202 = vector.multi_reduction <add>, %201, %cst_72 [1] : vector<16x32xf32> to vector<16xf32>
    %203 = vector.shape_cast %202 : vector<16xf32> to vector<16x1xf32>
    %cst_73 = arith.constant 3.200000e+01 : f32
    %204 = vector.broadcast %cst_73 : f32 to vector<16x1xf32>
    %205 = arith.divf %203, %204 : vector<16x1xf32>
    %206 = vector.broadcast %198 : vector<16x1xf32> to vector<16x32xf32>
    %207 = arith.subf %190, %206 : vector<16x32xf32>
    %cst_74 = arith.constant 9.99999974E-6 : f32
    %208 = vector.broadcast %cst_74 : f32 to vector<16x1xf32>
    %209 = arith.addf %205, %208 : vector<16x1xf32>
    %210 = math.rsqrt %209 : vector<16x1xf32>
    %211 = vector.broadcast %210 : vector<16x1xf32> to vector<16x32xf32>
    %212 = arith.mulf %207, %211 : vector<16x32xf32>
    %213 = vector.broadcast %192 : vector<1x32xf32> to vector<16x32xf32>
    %214 = arith.mulf %212, %213 : vector<16x32xf32>
    %215 = vector.broadcast %194 : vector<1x32xf32> to vector<16x32xf32>
    %216 = arith.addf %214, %215 : vector<16x32xf32>
    %c0_75 = arith.constant 0 : index
    %c0_76 = arith.constant 0 : index
    %c0_77 = arith.constant 0 : index
    %217 = vector.load %arg11[%c0_75, %c0_76, %c0_77] : memref<2x32x64xf32, #tpu.memory_space<vmem>>, vector<1x32x64xf32>
    %218 = vector.shape_cast %217 : vector<1x32x64xf32> to vector<32x64xf32>
    %cst_78 = arith.constant dense<0.000000e+00> : vector<16x64xf32>
    %219 = tpu.matmul %216, %218, %cst_78 {dimension_numbers = #tpu.dot_dimension_numbers<[1], [0], [0], [1], [0, 0, 1, 1], [], []>} : vector<16x32xf32>, vector<32x64xf32>, vector<16x64xf32> -> vector<16x64xf32>
    %c0_79 = arith.constant 0 : index
    %c0_80 = arith.constant 0 : index
    %c0_81 = arith.constant 0 : index
    %220 = vector.load %arg12[%c0_79, %c0_80, %c0_81] : memref<2x1x64xf32, #tpu.memory_space<vmem>>, vector<1x1x64xf32>
    %221 = vector.shape_cast %220 : vector<1x1x64xf32> to vector<1x64xf32>
    %222 = vector.broadcast %221 : vector<1x64xf32> to vector<16x64xf32>
    %223 = arith.addf %219, %222 : vector<16x64xf32>
    %cst_82 = arith.constant 0.707106769 : f32
    %224 = vector.broadcast %cst_82 : f32 to vector<16x64xf32>
    %225 = arith.mulf %223, %224 : vector<16x64xf32>
    %226 = math.absf %225 : vector<16x64xf32>
    %cst_83 = arith.constant 0.327591091 : f32
    %227 = vector.broadcast %cst_83 : f32 to vector<16x64xf32>
    %228 = arith.mulf %227, %226 : vector<16x64xf32>
    %cst_84 = arith.constant 1.000000e+00 : f32
    %229 = vector.broadcast %cst_84 : f32 to vector<16x64xf32>
    %230 = arith.addf %229, %228 : vector<16x64xf32>
    %cst_85 = arith.constant 1.000000e+00 : f32
    %231 = vector.broadcast %cst_85 : f32 to vector<16x64xf32>
    %232 = arith.divf %231, %230 : vector<16x64xf32>
    %cst_86 = arith.constant 1.06140542 : f32
    %233 = vector.broadcast %cst_86 : f32 to vector<16x64xf32>
    %234 = arith.mulf %232, %233 : vector<16x64xf32>
    %cst_87 = arith.constant -1.45315206 : f32
    %235 = vector.broadcast %cst_87 : f32 to vector<16x64xf32>
    %236 = arith.addf %235, %234 : vector<16x64xf32>
    %237 = arith.mulf %232, %236 : vector<16x64xf32>
    %cst_88 = arith.constant 1.42141378 : f32
    %238 = vector.broadcast %cst_88 : f32 to vector<16x64xf32>
    %239 = arith.addf %238, %237 : vector<16x64xf32>
    %240 = arith.mulf %232, %239 : vector<16x64xf32>
    %cst_89 = arith.constant -0.284496725 : f32
    %241 = vector.broadcast %cst_89 : f32 to vector<16x64xf32>
    %242 = arith.addf %241, %240 : vector<16x64xf32>
    %243 = arith.mulf %232, %242 : vector<16x64xf32>
    %cst_90 = arith.constant 0.254829586 : f32
    %244 = vector.broadcast %cst_90 : f32 to vector<16x64xf32>
    %245 = arith.addf %244, %243 : vector<16x64xf32>
    %246 = arith.mulf %232, %245 : vector<16x64xf32>
    %cst_91 = arith.constant 0.000000e+00 : f32
    %247 = vector.broadcast %cst_91 : f32 to vector<16x64xf32>
    %248 = arith.subf %247, %226 : vector<16x64xf32>
    %249 = arith.mulf %248, %226 : vector<16x64xf32>
    %250 = math.exp %249 : vector<16x64xf32>
    %251 = arith.mulf %246, %250 : vector<16x64xf32>
    %cst_92 = arith.constant 1.000000e+00 : f32
    %252 = vector.broadcast %cst_92 : f32 to vector<16x64xf32>
    %253 = arith.subf %252, %251 : vector<16x64xf32>
    %cst_93 = arith.constant 0.000000e+00 : f32
    %254 = vector.broadcast %cst_93 : f32 to vector<16x64xf32>
    %255 = arith.cmpf oge, %225, %254 : vector<16x64xf32>
    %cst_94 = arith.constant 0.000000e+00 : f32
    %256 = vector.broadcast %cst_94 : f32 to vector<16x64xf32>
    %257 = arith.subf %256, %253 : vector<16x64xf32>
    %258 = arith.select %255, %253, %257 : vector<16x64xi1>, vector<16x64xf32>
    %cst_95 = arith.constant 5.000000e-01 : f32
    %259 = vector.broadcast %cst_95 : f32 to vector<16x64xf32>
    %260 = arith.mulf %259, %223 : vector<16x64xf32>
    %cst_96 = arith.constant 1.000000e+00 : f32
    %261 = vector.broadcast %cst_96 : f32 to vector<16x64xf32>
    %262 = arith.addf %261, %258 : vector<16x64xf32>
    %263 = arith.mulf %260, %262 : vector<16x64xf32>
    %c0_97 = arith.constant 0 : index
    %c0_98 = arith.constant 0 : index
    %c0_99 = arith.constant 0 : index
    %264 = vector.load %arg13[%c0_97, %c0_98, %c0_99] : memref<2x64x32xf32, #tpu.memory_space<vmem>>, vector<1x64x32xf32>
    %265 = vector.shape_cast %264 : vector<1x64x32xf32> to vector<64x32xf32>
    %cst_100 = arith.constant dense<0.000000e+00> : vector<16x32xf32>
    %266 = tpu.matmul %263, %265, %cst_100 {dimension_numbers = #tpu.dot_dimension_numbers<[1], [0], [0], [1], [0, 0, 1, 1], [], []>} : vector<16x64xf32>, vector<64x32xf32>, vector<16x32xf32> -> vector<16x32xf32>
    %267 = arith.addf %190, %266 : vector<16x32xf32>
    %c0_101 = arith.constant 0 : index
    %c0_102 = arith.constant 0 : index
    %c0_103 = arith.constant 0 : index
    %268 = vector.load %arg14[%c0_101, %c0_102, %c0_103] : memref<2x1x32xf32, #tpu.memory_space<vmem>>, vector<1x1x32xf32>
    %269 = vector.shape_cast %268 : vector<1x1x32xf32> to vector<1x32xf32>
    %270 = vector.broadcast %269 : vector<1x32xf32> to vector<16x32xf32>
    %271 = arith.addf %267, %270 : vector<16x32xf32>
    %c1 = arith.constant 1 : index
    %c0_104 = arith.constant 0 : index
    %c0_105 = arith.constant 0 : index
    %272 = vector.load %arg3[%c1, %c0_104, %c0_105] : memref<2x1x32xf32, #tpu.memory_space<vmem>>, vector<1x1x32xf32>
    %273 = vector.shape_cast %272 : vector<1x1x32xf32> to vector<1x32xf32>
    %c1_106 = arith.constant 1 : index
    %c0_107 = arith.constant 0 : index
    %c0_108 = arith.constant 0 : index
    %274 = vector.load %arg4[%c1_106, %c0_107, %c0_108] : memref<2x1x32xf32, #tpu.memory_space<vmem>>, vector<1x1x32xf32>
    %275 = vector.shape_cast %274 : vector<1x1x32xf32> to vector<1x32xf32>
    %cst_109 = arith.constant dense<0.000000e+00> : vector<16xf32>
    %276 = vector.multi_reduction <add>, %271, %cst_109 [1] : vector<16x32xf32> to vector<16xf32>
    %277 = vector.shape_cast %276 : vector<16xf32> to vector<16x1xf32>
    %cst_110 = arith.constant 3.200000e+01 : f32
    %278 = vector.broadcast %cst_110 : f32 to vector<16x1xf32>
    %279 = arith.divf %277, %278 : vector<16x1xf32>
    %280 = vector.broadcast %279 : vector<16x1xf32> to vector<16x32xf32>
    %281 = arith.subf %271, %280 : vector<16x32xf32>
    %282 = arith.mulf %281, %281 : vector<16x32xf32>
    %cst_111 = arith.constant dense<0.000000e+00> : vector<16xf32>
    %283 = vector.multi_reduction <add>, %282, %cst_111 [1] : vector<16x32xf32> to vector<16xf32>
    %284 = vector.shape_cast %283 : vector<16xf32> to vector<16x1xf32>
    %cst_112 = arith.constant 3.200000e+01 : f32
    %285 = vector.broadcast %cst_112 : f32 to vector<16x1xf32>
    %286 = arith.divf %284, %285 : vector<16x1xf32>
    %287 = vector.broadcast %279 : vector<16x1xf32> to vector<16x32xf32>
    %288 = arith.subf %271, %287 : vector<16x32xf32>
    %cst_113 = arith.constant 9.99999974E-6 : f32
    %289 = vector.broadcast %cst_113 : f32 to vector<16x1xf32>
    %290 = arith.addf %286, %289 : vector<16x1xf32>
    %291 = math.rsqrt %290 : vector<16x1xf32>
    %292 = vector.broadcast %291 : vector<16x1xf32> to vector<16x32xf32>
    %293 = arith.mulf %288, %292 : vector<16x32xf32>
    %294 = vector.broadcast %273 : vector<1x32xf32> to vector<16x32xf32>
    %295 = arith.mulf %293, %294 : vector<16x32xf32>
    %296 = vector.broadcast %275 : vector<1x32xf32> to vector<16x32xf32>
    %297 = arith.addf %295, %296 : vector<16x32xf32>
    %c1_114 = arith.constant 1 : index
    %c0_115 = arith.constant 0 : index
    %c0_116 = arith.constant 0 : index
    %298 = vector.load %arg5[%c1_114, %c0_115, %c0_116] : memref<2x32x96xf32, #tpu.memory_space<vmem>>, vector<1x32x96xf32>
    %299 = vector.shape_cast %298 : vector<1x32x96xf32> to vector<32x96xf32>
    %cst_117 = arith.constant dense<0.000000e+00> : vector<16x96xf32>
    %300 = tpu.matmul %297, %299, %cst_117 {dimension_numbers = #tpu.dot_dimension_numbers<[1], [0], [0], [1], [0, 0, 1, 1], [], []>} : vector<16x32xf32>, vector<32x96xf32>, vector<16x96xf32> -> vector<16x96xf32>
    %c1_118 = arith.constant 1 : index
    %c0_119 = arith.constant 0 : index
    %c0_120 = arith.constant 0 : index
    %301 = vector.load %arg6[%c1_118, %c0_119, %c0_120] : memref<2x1x96xf32, #tpu.memory_space<vmem>>, vector<1x1x96xf32>
    %302 = vector.shape_cast %301 : vector<1x1x96xf32> to vector<1x96xf32>
    %303 = vector.broadcast %302 : vector<1x96xf32> to vector<16x96xf32>
    %304 = arith.addf %300, %303 : vector<16x96xf32>
    %305 = vector.extract_strided_slice %304 {offsets = [0, 0], sizes = [8, 8], strides = [1, 1]} : vector<16x96xf32> to vector<8x8xf32>
    %306 = vector.extract_strided_slice %304 {offsets = [0, 32], sizes = [8, 8], strides = [1, 1]} : vector<16x96xf32> to vector<8x8xf32>
    %307 = vector.extract_strided_slice %304 {offsets = [0, 64], sizes = [8, 8], strides = [1, 1]} : vector<16x96xf32> to vector<8x8xf32>
    %cst_121 = arith.constant dense<0.000000e+00> : vector<8x8xf32>
    %308 = tpu.matmul %305, %306, %cst_121 {dimension_numbers = #tpu.dot_dimension_numbers<[1], [1], [0], [0], [0, 0, 1, 0], [], []>} : vector<8x8xf32>, vector<8x8xf32>, vector<8x8xf32> -> vector<8x8xf32>
    %309 = vector.broadcast %5 : vector<1x8xf32> to vector<8x8xf32>
    %310 = arith.addf %308, %309 : vector<8x8xf32>
    %cst_122 = arith.constant dense<0xFF800000> : vector<8xf32>
    %311 = vector.multi_reduction <maximumf>, %310, %cst_122 [1] : vector<8x8xf32> to vector<8xf32>
    %312 = vector.shape_cast %311 : vector<8xf32> to vector<8x1xf32>
    %313 = vector.broadcast %312 : vector<8x1xf32> to vector<8x8xf32>
    %314 = arith.subf %310, %313 : vector<8x8xf32>
    %315 = math.exp %314 : vector<8x8xf32>
    %cst_123 = arith.constant dense<0.000000e+00> : vector<8xf32>
    %316 = vector.multi_reduction <add>, %315, %cst_123 [1] : vector<8x8xf32> to vector<8xf32>
    %317 = vector.shape_cast %316 : vector<8xf32> to vector<8x1xf32>
    %318 = tpu.reciprocal %317 {approx = true} : vector<8x1xf32> -> vector<8x1xf32>
    %319 = vector.broadcast %318 : vector<8x1xf32> to vector<8x8xf32>
    %320 = arith.mulf %315, %319 : vector<8x8xf32>
    %cst_124 = arith.constant dense<0.000000e+00> : vector<8x8xf32>
    %321 = tpu.matmul %320, %307, %cst_124 {dimension_numbers = #tpu.dot_dimension_numbers<[1], [0], [0], [1], [0, 0, 1, 1], [], []>} : vector<8x8xf32>, vector<8x8xf32>, vector<8x8xf32> -> vector<8x8xf32>
    %322 = vector.extract_strided_slice %304 {offsets = [0, 8], sizes = [8, 8], strides = [1, 1]} : vector<16x96xf32> to vector<8x8xf32>
    %323 = vector.extract_strided_slice %304 {offsets = [0, 40], sizes = [8, 8], strides = [1, 1]} : vector<16x96xf32> to vector<8x8xf32>
    %324 = vector.extract_strided_slice %304 {offsets = [0, 72], sizes = [8, 8], strides = [1, 1]} : vector<16x96xf32> to vector<8x8xf32>
    %cst_125 = arith.constant dense<0.000000e+00> : vector<8x8xf32>
    %325 = tpu.matmul %322, %323, %cst_125 {dimension_numbers = #tpu.dot_dimension_numbers<[1], [1], [0], [0], [0, 0, 1, 0], [], []>} : vector<8x8xf32>, vector<8x8xf32>, vector<8x8xf32> -> vector<8x8xf32>
    %326 = vector.broadcast %5 : vector<1x8xf32> to vector<8x8xf32>
    %327 = arith.addf %325, %326 : vector<8x8xf32>
    %cst_126 = arith.constant dense<0xFF800000> : vector<8xf32>
    %328 = vector.multi_reduction <maximumf>, %327, %cst_126 [1] : vector<8x8xf32> to vector<8xf32>
    %329 = vector.shape_cast %328 : vector<8xf32> to vector<8x1xf32>
    %330 = vector.broadcast %329 : vector<8x1xf32> to vector<8x8xf32>
    %331 = arith.subf %327, %330 : vector<8x8xf32>
    %332 = math.exp %331 : vector<8x8xf32>
    %cst_127 = arith.constant dense<0.000000e+00> : vector<8xf32>
    %333 = vector.multi_reduction <add>, %332, %cst_127 [1] : vector<8x8xf32> to vector<8xf32>
    %334 = vector.shape_cast %333 : vector<8xf32> to vector<8x1xf32>
    %335 = tpu.reciprocal %334 {approx = true} : vector<8x1xf32> -> vector<8x1xf32>
    %336 = vector.broadcast %335 : vector<8x1xf32> to vector<8x8xf32>
    %337 = arith.mulf %332, %336 : vector<8x8xf32>
    %cst_128 = arith.constant dense<0.000000e+00> : vector<8x8xf32>
    %338 = tpu.matmul %337, %324, %cst_128 {dimension_numbers = #tpu.dot_dimension_numbers<[1], [0], [0], [1], [0, 0, 1, 1], [], []>} : vector<8x8xf32>, vector<8x8xf32>, vector<8x8xf32> -> vector<8x8xf32>
    %339 = vector.extract_strided_slice %304 {offsets = [0, 16], sizes = [8, 8], strides = [1, 1]} : vector<16x96xf32> to vector<8x8xf32>
    %340 = vector.extract_strided_slice %304 {offsets = [0, 48], sizes = [8, 8], strides = [1, 1]} : vector<16x96xf32> to vector<8x8xf32>
    %341 = vector.extract_strided_slice %304 {offsets = [0, 80], sizes = [8, 8], strides = [1, 1]} : vector<16x96xf32> to vector<8x8xf32>
    %cst_129 = arith.constant dense<0.000000e+00> : vector<8x8xf32>
    %342 = tpu.matmul %339, %340, %cst_129 {dimension_numbers = #tpu.dot_dimension_numbers<[1], [1], [0], [0], [0, 0, 1, 0], [], []>} : vector<8x8xf32>, vector<8x8xf32>, vector<8x8xf32> -> vector<8x8xf32>
    %343 = vector.broadcast %5 : vector<1x8xf32> to vector<8x8xf32>
    %344 = arith.addf %342, %343 : vector<8x8xf32>
    %cst_130 = arith.constant dense<0xFF800000> : vector<8xf32>
    %345 = vector.multi_reduction <maximumf>, %344, %cst_130 [1] : vector<8x8xf32> to vector<8xf32>
    %346 = vector.shape_cast %345 : vector<8xf32> to vector<8x1xf32>
    %347 = vector.broadcast %346 : vector<8x1xf32> to vector<8x8xf32>
    %348 = arith.subf %344, %347 : vector<8x8xf32>
    %349 = math.exp %348 : vector<8x8xf32>
    %cst_131 = arith.constant dense<0.000000e+00> : vector<8xf32>
    %350 = vector.multi_reduction <add>, %349, %cst_131 [1] : vector<8x8xf32> to vector<8xf32>
    %351 = vector.shape_cast %350 : vector<8xf32> to vector<8x1xf32>
    %352 = tpu.reciprocal %351 {approx = true} : vector<8x1xf32> -> vector<8x1xf32>
    %353 = vector.broadcast %352 : vector<8x1xf32> to vector<8x8xf32>
    %354 = arith.mulf %349, %353 : vector<8x8xf32>
    %cst_132 = arith.constant dense<0.000000e+00> : vector<8x8xf32>
    %355 = tpu.matmul %354, %341, %cst_132 {dimension_numbers = #tpu.dot_dimension_numbers<[1], [0], [0], [1], [0, 0, 1, 1], [], []>} : vector<8x8xf32>, vector<8x8xf32>, vector<8x8xf32> -> vector<8x8xf32>
    %356 = vector.extract_strided_slice %304 {offsets = [0, 24], sizes = [8, 8], strides = [1, 1]} : vector<16x96xf32> to vector<8x8xf32>
    %357 = vector.extract_strided_slice %304 {offsets = [0, 56], sizes = [8, 8], strides = [1, 1]} : vector<16x96xf32> to vector<8x8xf32>
    %358 = vector.extract_strided_slice %304 {offsets = [0, 88], sizes = [8, 8], strides = [1, 1]} : vector<16x96xf32> to vector<8x8xf32>
    %cst_133 = arith.constant dense<0.000000e+00> : vector<8x8xf32>
    %359 = tpu.matmul %356, %357, %cst_133 {dimension_numbers = #tpu.dot_dimension_numbers<[1], [1], [0], [0], [0, 0, 1, 0], [], []>} : vector<8x8xf32>, vector<8x8xf32>, vector<8x8xf32> -> vector<8x8xf32>
    %360 = vector.broadcast %5 : vector<1x8xf32> to vector<8x8xf32>
    %361 = arith.addf %359, %360 : vector<8x8xf32>
    %cst_134 = arith.constant dense<0xFF800000> : vector<8xf32>
    %362 = vector.multi_reduction <maximumf>, %361, %cst_134 [1] : vector<8x8xf32> to vector<8xf32>
    %363 = vector.shape_cast %362 : vector<8xf32> to vector<8x1xf32>
    %364 = vector.broadcast %363 : vector<8x1xf32> to vector<8x8xf32>
    %365 = arith.subf %361, %364 : vector<8x8xf32>
    %366 = math.exp %365 : vector<8x8xf32>
    %cst_135 = arith.constant dense<0.000000e+00> : vector<8xf32>
    %367 = vector.multi_reduction <add>, %366, %cst_135 [1] : vector<8x8xf32> to vector<8xf32>
    %368 = vector.shape_cast %367 : vector<8xf32> to vector<8x1xf32>
    %369 = tpu.reciprocal %368 {approx = true} : vector<8x1xf32> -> vector<8x1xf32>
    %370 = vector.broadcast %369 : vector<8x1xf32> to vector<8x8xf32>
    %371 = arith.mulf %366, %370 : vector<8x8xf32>
    %cst_136 = arith.constant dense<0.000000e+00> : vector<8x8xf32>
    %372 = tpu.matmul %371, %358, %cst_136 {dimension_numbers = #tpu.dot_dimension_numbers<[1], [0], [0], [1], [0, 0, 1, 1], [], []>} : vector<8x8xf32>, vector<8x8xf32>, vector<8x8xf32> -> vector<8x8xf32>
    %373 = tpu.concatenate %321, %338, %355, %372 in 1 : vector<8x8xf32>, vector<8x8xf32>, vector<8x8xf32>, vector<8x8xf32> -> vector<8x32xf32>
    %374 = vector.extract_strided_slice %304 {offsets = [8, 0], sizes = [8, 8], strides = [1, 1]} : vector<16x96xf32> to vector<8x8xf32>
    %375 = vector.extract_strided_slice %304 {offsets = [8, 32], sizes = [8, 8], strides = [1, 1]} : vector<16x96xf32> to vector<8x8xf32>
    %376 = vector.extract_strided_slice %304 {offsets = [8, 64], sizes = [8, 8], strides = [1, 1]} : vector<16x96xf32> to vector<8x8xf32>
    %cst_137 = arith.constant dense<0.000000e+00> : vector<8x8xf32>
    %377 = tpu.matmul %374, %375, %cst_137 {dimension_numbers = #tpu.dot_dimension_numbers<[1], [1], [0], [0], [0, 0, 1, 0], [], []>} : vector<8x8xf32>, vector<8x8xf32>, vector<8x8xf32> -> vector<8x8xf32>
    %378 = vector.broadcast %5 : vector<1x8xf32> to vector<8x8xf32>
    %379 = arith.addf %377, %378 : vector<8x8xf32>
    %cst_138 = arith.constant dense<0xFF800000> : vector<8xf32>
    %380 = vector.multi_reduction <maximumf>, %379, %cst_138 [1] : vector<8x8xf32> to vector<8xf32>
    %381 = vector.shape_cast %380 : vector<8xf32> to vector<8x1xf32>
    %382 = vector.broadcast %381 : vector<8x1xf32> to vector<8x8xf32>
    %383 = arith.subf %379, %382 : vector<8x8xf32>
    %384 = math.exp %383 : vector<8x8xf32>
    %cst_139 = arith.constant dense<0.000000e+00> : vector<8xf32>
    %385 = vector.multi_reduction <add>, %384, %cst_139 [1] : vector<8x8xf32> to vector<8xf32>
    %386 = vector.shape_cast %385 : vector<8xf32> to vector<8x1xf32>
    %387 = tpu.reciprocal %386 {approx = true} : vector<8x1xf32> -> vector<8x1xf32>
    %388 = vector.broadcast %387 : vector<8x1xf32> to vector<8x8xf32>
    %389 = arith.mulf %384, %388 : vector<8x8xf32>
    %cst_140 = arith.constant dense<0.000000e+00> : vector<8x8xf32>
    %390 = tpu.matmul %389, %376, %cst_140 {dimension_numbers = #tpu.dot_dimension_numbers<[1], [0], [0], [1], [0, 0, 1, 1], [], []>} : vector<8x8xf32>, vector<8x8xf32>, vector<8x8xf32> -> vector<8x8xf32>
    %391 = vector.extract_strided_slice %304 {offsets = [8, 8], sizes = [8, 8], strides = [1, 1]} : vector<16x96xf32> to vector<8x8xf32>
    %392 = vector.extract_strided_slice %304 {offsets = [8, 40], sizes = [8, 8], strides = [1, 1]} : vector<16x96xf32> to vector<8x8xf32>
    %393 = vector.extract_strided_slice %304 {offsets = [8, 72], sizes = [8, 8], strides = [1, 1]} : vector<16x96xf32> to vector<8x8xf32>
    %cst_141 = arith.constant dense<0.000000e+00> : vector<8x8xf32>
    %394 = tpu.matmul %391, %392, %cst_141 {dimension_numbers = #tpu.dot_dimension_numbers<[1], [1], [0], [0], [0, 0, 1, 0], [], []>} : vector<8x8xf32>, vector<8x8xf32>, vector<8x8xf32> -> vector<8x8xf32>
    %395 = vector.broadcast %5 : vector<1x8xf32> to vector<8x8xf32>
    %396 = arith.addf %394, %395 : vector<8x8xf32>
    %cst_142 = arith.constant dense<0xFF800000> : vector<8xf32>
    %397 = vector.multi_reduction <maximumf>, %396, %cst_142 [1] : vector<8x8xf32> to vector<8xf32>
    %398 = vector.shape_cast %397 : vector<8xf32> to vector<8x1xf32>
    %399 = vector.broadcast %398 : vector<8x1xf32> to vector<8x8xf32>
    %400 = arith.subf %396, %399 : vector<8x8xf32>
    %401 = math.exp %400 : vector<8x8xf32>
    %cst_143 = arith.constant dense<0.000000e+00> : vector<8xf32>
    %402 = vector.multi_reduction <add>, %401, %cst_143 [1] : vector<8x8xf32> to vector<8xf32>
    %403 = vector.shape_cast %402 : vector<8xf32> to vector<8x1xf32>
    %404 = tpu.reciprocal %403 {approx = true} : vector<8x1xf32> -> vector<8x1xf32>
    %405 = vector.broadcast %404 : vector<8x1xf32> to vector<8x8xf32>
    %406 = arith.mulf %401, %405 : vector<8x8xf32>
    %cst_144 = arith.constant dense<0.000000e+00> : vector<8x8xf32>
    %407 = tpu.matmul %406, %393, %cst_144 {dimension_numbers = #tpu.dot_dimension_numbers<[1], [0], [0], [1], [0, 0, 1, 1], [], []>} : vector<8x8xf32>, vector<8x8xf32>, vector<8x8xf32> -> vector<8x8xf32>
    %408 = vector.extract_strided_slice %304 {offsets = [8, 16], sizes = [8, 8], strides = [1, 1]} : vector<16x96xf32> to vector<8x8xf32>
    %409 = vector.extract_strided_slice %304 {offsets = [8, 48], sizes = [8, 8], strides = [1, 1]} : vector<16x96xf32> to vector<8x8xf32>
    %410 = vector.extract_strided_slice %304 {offsets = [8, 80], sizes = [8, 8], strides = [1, 1]} : vector<16x96xf32> to vector<8x8xf32>
    %cst_145 = arith.constant dense<0.000000e+00> : vector<8x8xf32>
    %411 = tpu.matmul %408, %409, %cst_145 {dimension_numbers = #tpu.dot_dimension_numbers<[1], [1], [0], [0], [0, 0, 1, 0], [], []>} : vector<8x8xf32>, vector<8x8xf32>, vector<8x8xf32> -> vector<8x8xf32>
    %412 = vector.broadcast %5 : vector<1x8xf32> to vector<8x8xf32>
    %413 = arith.addf %411, %412 : vector<8x8xf32>
    %cst_146 = arith.constant dense<0xFF800000> : vector<8xf32>
    %414 = vector.multi_reduction <maximumf>, %413, %cst_146 [1] : vector<8x8xf32> to vector<8xf32>
    %415 = vector.shape_cast %414 : vector<8xf32> to vector<8x1xf32>
    %416 = vector.broadcast %415 : vector<8x1xf32> to vector<8x8xf32>
    %417 = arith.subf %413, %416 : vector<8x8xf32>
    %418 = math.exp %417 : vector<8x8xf32>
    %cst_147 = arith.constant dense<0.000000e+00> : vector<8xf32>
    %419 = vector.multi_reduction <add>, %418, %cst_147 [1] : vector<8x8xf32> to vector<8xf32>
    %420 = vector.shape_cast %419 : vector<8xf32> to vector<8x1xf32>
    %421 = tpu.reciprocal %420 {approx = true} : vector<8x1xf32> -> vector<8x1xf32>
    %422 = vector.broadcast %421 : vector<8x1xf32> to vector<8x8xf32>
    %423 = arith.mulf %418, %422 : vector<8x8xf32>
    %cst_148 = arith.constant dense<0.000000e+00> : vector<8x8xf32>
    %424 = tpu.matmul %423, %410, %cst_148 {dimension_numbers = #tpu.dot_dimension_numbers<[1], [0], [0], [1], [0, 0, 1, 1], [], []>} : vector<8x8xf32>, vector<8x8xf32>, vector<8x8xf32> -> vector<8x8xf32>
    %425 = vector.extract_strided_slice %304 {offsets = [8, 24], sizes = [8, 8], strides = [1, 1]} : vector<16x96xf32> to vector<8x8xf32>
    %426 = vector.extract_strided_slice %304 {offsets = [8, 56], sizes = [8, 8], strides = [1, 1]} : vector<16x96xf32> to vector<8x8xf32>
    %427 = vector.extract_strided_slice %304 {offsets = [8, 88], sizes = [8, 8], strides = [1, 1]} : vector<16x96xf32> to vector<8x8xf32>
    %cst_149 = arith.constant dense<0.000000e+00> : vector<8x8xf32>
    %428 = tpu.matmul %425, %426, %cst_149 {dimension_numbers = #tpu.dot_dimension_numbers<[1], [1], [0], [0], [0, 0, 1, 0], [], []>} : vector<8x8xf32>, vector<8x8xf32>, vector<8x8xf32> -> vector<8x8xf32>
    %429 = vector.broadcast %5 : vector<1x8xf32> to vector<8x8xf32>
    %430 = arith.addf %428, %429 : vector<8x8xf32>
    %cst_150 = arith.constant dense<0xFF800000> : vector<8xf32>
    %431 = vector.multi_reduction <maximumf>, %430, %cst_150 [1] : vector<8x8xf32> to vector<8xf32>
    %432 = vector.shape_cast %431 : vector<8xf32> to vector<8x1xf32>
    %433 = vector.broadcast %432 : vector<8x1xf32> to vector<8x8xf32>
    %434 = arith.subf %430, %433 : vector<8x8xf32>
    %435 = math.exp %434 : vector<8x8xf32>
    %cst_151 = arith.constant dense<0.000000e+00> : vector<8xf32>
    %436 = vector.multi_reduction <add>, %435, %cst_151 [1] : vector<8x8xf32> to vector<8xf32>
    %437 = vector.shape_cast %436 : vector<8xf32> to vector<8x1xf32>
    %438 = tpu.reciprocal %437 {approx = true} : vector<8x1xf32> -> vector<8x1xf32>
    %439 = vector.broadcast %438 : vector<8x1xf32> to vector<8x8xf32>
    %440 = arith.mulf %435, %439 : vector<8x8xf32>
    %cst_152 = arith.constant dense<0.000000e+00> : vector<8x8xf32>
    %441 = tpu.matmul %440, %427, %cst_152 {dimension_numbers = #tpu.dot_dimension_numbers<[1], [0], [0], [1], [0, 0, 1, 1], [], []>} : vector<8x8xf32>, vector<8x8xf32>, vector<8x8xf32> -> vector<8x8xf32>
    %442 = tpu.concatenate %390, %407, %424, %441 in 1 : vector<8x8xf32>, vector<8x8xf32>, vector<8x8xf32>, vector<8x8xf32> -> vector<8x32xf32>
    %443 = tpu.concatenate %373, %442 in 0 : vector<8x32xf32>, vector<8x32xf32> -> vector<16x32xf32>
    %c1_153 = arith.constant 1 : index
    %c0_154 = arith.constant 0 : index
    %c0_155 = arith.constant 0 : index
    %444 = vector.load %arg7[%c1_153, %c0_154, %c0_155] : memref<2x32x32xf32, #tpu.memory_space<vmem>>, vector<1x32x32xf32>
    %445 = vector.shape_cast %444 : vector<1x32x32xf32> to vector<32x32xf32>
    %cst_156 = arith.constant dense<0.000000e+00> : vector<16x32xf32>
    %446 = tpu.matmul %443, %445, %cst_156 {dimension_numbers = #tpu.dot_dimension_numbers<[1], [0], [0], [1], [0, 0, 1, 1], [], []>} : vector<16x32xf32>, vector<32x32xf32>, vector<16x32xf32> -> vector<16x32xf32>
    %447 = arith.addf %271, %446 : vector<16x32xf32>
    %c1_157 = arith.constant 1 : index
    %c0_158 = arith.constant 0 : index
    %c0_159 = arith.constant 0 : index
    %448 = vector.load %arg8[%c1_157, %c0_158, %c0_159] : memref<2x1x32xf32, #tpu.memory_space<vmem>>, vector<1x1x32xf32>
    %449 = vector.shape_cast %448 : vector<1x1x32xf32> to vector<1x32xf32>
    %450 = vector.broadcast %449 : vector<1x32xf32> to vector<16x32xf32>
    %451 = arith.addf %447, %450 : vector<16x32xf32>
    %c1_160 = arith.constant 1 : index
    %c0_161 = arith.constant 0 : index
    %c0_162 = arith.constant 0 : index
    %452 = vector.load %arg9[%c1_160, %c0_161, %c0_162] : memref<2x1x32xf32, #tpu.memory_space<vmem>>, vector<1x1x32xf32>
    %453 = vector.shape_cast %452 : vector<1x1x32xf32> to vector<1x32xf32>
    %c1_163 = arith.constant 1 : index
    %c0_164 = arith.constant 0 : index
    %c0_165 = arith.constant 0 : index
    %454 = vector.load %arg10[%c1_163, %c0_164, %c0_165] : memref<2x1x32xf32, #tpu.memory_space<vmem>>, vector<1x1x32xf32>
    %455 = vector.shape_cast %454 : vector<1x1x32xf32> to vector<1x32xf32>
    %cst_166 = arith.constant dense<0.000000e+00> : vector<16xf32>
    %456 = vector.multi_reduction <add>, %451, %cst_166 [1] : vector<16x32xf32> to vector<16xf32>
    %457 = vector.shape_cast %456 : vector<16xf32> to vector<16x1xf32>
    %cst_167 = arith.constant 3.200000e+01 : f32
    %458 = vector.broadcast %cst_167 : f32 to vector<16x1xf32>
    %459 = arith.divf %457, %458 : vector<16x1xf32>
    %460 = vector.broadcast %459 : vector<16x1xf32> to vector<16x32xf32>
    %461 = arith.subf %451, %460 : vector<16x32xf32>
    %462 = arith.mulf %461, %461 : vector<16x32xf32>
    %cst_168 = arith.constant dense<0.000000e+00> : vector<16xf32>
    %463 = vector.multi_reduction <add>, %462, %cst_168 [1] : vector<16x32xf32> to vector<16xf32>
    %464 = vector.shape_cast %463 : vector<16xf32> to vector<16x1xf32>
    %cst_169 = arith.constant 3.200000e+01 : f32
    %465 = vector.broadcast %cst_169 : f32 to vector<16x1xf32>
    %466 = arith.divf %464, %465 : vector<16x1xf32>
    %467 = vector.broadcast %459 : vector<16x1xf32> to vector<16x32xf32>
    %468 = arith.subf %451, %467 : vector<16x32xf32>
    %cst_170 = arith.constant 9.99999974E-6 : f32
    %469 = vector.broadcast %cst_170 : f32 to vector<16x1xf32>
    %470 = arith.addf %466, %469 : vector<16x1xf32>
    %471 = math.rsqrt %470 : vector<16x1xf32>
    %472 = vector.broadcast %471 : vector<16x1xf32> to vector<16x32xf32>
    %473 = arith.mulf %468, %472 : vector<16x32xf32>
    %474 = vector.broadcast %453 : vector<1x32xf32> to vector<16x32xf32>
    %475 = arith.mulf %473, %474 : vector<16x32xf32>
    %476 = vector.broadcast %455 : vector<1x32xf32> to vector<16x32xf32>
    %477 = arith.addf %475, %476 : vector<16x32xf32>
    %c1_171 = arith.constant 1 : index
    %c0_172 = arith.constant 0 : index
    %c0_173 = arith.constant 0 : index
    %478 = vector.load %arg11[%c1_171, %c0_172, %c0_173] : memref<2x32x64xf32, #tpu.memory_space<vmem>>, vector<1x32x64xf32>
    %479 = vector.shape_cast %478 : vector<1x32x64xf32> to vector<32x64xf32>
    %cst_174 = arith.constant dense<0.000000e+00> : vector<16x64xf32>
    %480 = tpu.matmul %477, %479, %cst_174 {dimension_numbers = #tpu.dot_dimension_numbers<[1], [0], [0], [1], [0, 0, 1, 1], [], []>} : vector<16x32xf32>, vector<32x64xf32>, vector<16x64xf32> -> vector<16x64xf32>
    %c1_175 = arith.constant 1 : index
    %c0_176 = arith.constant 0 : index
    %c0_177 = arith.constant 0 : index
    %481 = vector.load %arg12[%c1_175, %c0_176, %c0_177] : memref<2x1x64xf32, #tpu.memory_space<vmem>>, vector<1x1x64xf32>
    %482 = vector.shape_cast %481 : vector<1x1x64xf32> to vector<1x64xf32>
    %483 = vector.broadcast %482 : vector<1x64xf32> to vector<16x64xf32>
    %484 = arith.addf %480, %483 : vector<16x64xf32>
    %cst_178 = arith.constant 0.707106769 : f32
    %485 = vector.broadcast %cst_178 : f32 to vector<16x64xf32>
    %486 = arith.mulf %484, %485 : vector<16x64xf32>
    %487 = math.absf %486 : vector<16x64xf32>
    %cst_179 = arith.constant 0.327591091 : f32
    %488 = vector.broadcast %cst_179 : f32 to vector<16x64xf32>
    %489 = arith.mulf %488, %487 : vector<16x64xf32>
    %cst_180 = arith.constant 1.000000e+00 : f32
    %490 = vector.broadcast %cst_180 : f32 to vector<16x64xf32>
    %491 = arith.addf %490, %489 : vector<16x64xf32>
    %cst_181 = arith.constant 1.000000e+00 : f32
    %492 = vector.broadcast %cst_181 : f32 to vector<16x64xf32>
    %493 = arith.divf %492, %491 : vector<16x64xf32>
    %cst_182 = arith.constant 1.06140542 : f32
    %494 = vector.broadcast %cst_182 : f32 to vector<16x64xf32>
    %495 = arith.mulf %493, %494 : vector<16x64xf32>
    %cst_183 = arith.constant -1.45315206 : f32
    %496 = vector.broadcast %cst_183 : f32 to vector<16x64xf32>
    %497 = arith.addf %496, %495 : vector<16x64xf32>
    %498 = arith.mulf %493, %497 : vector<16x64xf32>
    %cst_184 = arith.constant 1.42141378 : f32
    %499 = vector.broadcast %cst_184 : f32 to vector<16x64xf32>
    %500 = arith.addf %499, %498 : vector<16x64xf32>
    %501 = arith.mulf %493, %500 : vector<16x64xf32>
    %cst_185 = arith.constant -0.284496725 : f32
    %502 = vector.broadcast %cst_185 : f32 to vector<16x64xf32>
    %503 = arith.addf %502, %501 : vector<16x64xf32>
    %504 = arith.mulf %493, %503 : vector<16x64xf32>
    %cst_186 = arith.constant 0.254829586 : f32
    %505 = vector.broadcast %cst_186 : f32 to vector<16x64xf32>
    %506 = arith.addf %505, %504 : vector<16x64xf32>
    %507 = arith.mulf %493, %506 : vector<16x64xf32>
    %cst_187 = arith.constant 0.000000e+00 : f32
    %508 = vector.broadcast %cst_187 : f32 to vector<16x64xf32>
    %509 = arith.subf %508, %487 : vector<16x64xf32>
    %510 = arith.mulf %509, %487 : vector<16x64xf32>
    %511 = math.exp %510 : vector<16x64xf32>
    %512 = arith.mulf %507, %511 : vector<16x64xf32>
    %cst_188 = arith.constant 1.000000e+00 : f32
    %513 = vector.broadcast %cst_188 : f32 to vector<16x64xf32>
    %514 = arith.subf %513, %512 : vector<16x64xf32>
    %cst_189 = arith.constant 0.000000e+00 : f32
    %515 = vector.broadcast %cst_189 : f32 to vector<16x64xf32>
    %516 = arith.cmpf oge, %486, %515 : vector<16x64xf32>
    %cst_190 = arith.constant 0.000000e+00 : f32
    %517 = vector.broadcast %cst_190 : f32 to vector<16x64xf32>
    %518 = arith.subf %517, %514 : vector<16x64xf32>
    %519 = arith.select %516, %514, %518 : vector<16x64xi1>, vector<16x64xf32>
    %cst_191 = arith.constant 5.000000e-01 : f32
    %520 = vector.broadcast %cst_191 : f32 to vector<16x64xf32>
    %521 = arith.mulf %520, %484 : vector<16x64xf32>
    %cst_192 = arith.constant 1.000000e+00 : f32
    %522 = vector.broadcast %cst_192 : f32 to vector<16x64xf32>
    %523 = arith.addf %522, %519 : vector<16x64xf32>
    %524 = arith.mulf %521, %523 : vector<16x64xf32>
    %c1_193 = arith.constant 1 : index
    %c0_194 = arith.constant 0 : index
    %c0_195 = arith.constant 0 : index
    %525 = vector.load %arg13[%c1_193, %c0_194, %c0_195] : memref<2x64x32xf32, #tpu.memory_space<vmem>>, vector<1x64x32xf32>
    %526 = vector.shape_cast %525 : vector<1x64x32xf32> to vector<64x32xf32>
    %cst_196 = arith.constant dense<0.000000e+00> : vector<16x32xf32>
    %527 = tpu.matmul %524, %526, %cst_196 {dimension_numbers = #tpu.dot_dimension_numbers<[1], [0], [0], [1], [0, 0, 1, 1], [], []>} : vector<16x64xf32>, vector<64x32xf32>, vector<16x32xf32> -> vector<16x32xf32>
    %528 = arith.addf %451, %527 : vector<16x32xf32>
    %c1_197 = arith.constant 1 : index
    %c0_198 = arith.constant 0 : index
    %c0_199 = arith.constant 0 : index
    %529 = vector.load %arg14[%c1_197, %c0_198, %c0_199] : memref<2x1x32xf32, #tpu.memory_space<vmem>>, vector<1x1x32xf32>
    %530 = vector.shape_cast %529 : vector<1x1x32xf32> to vector<1x32xf32>
    %531 = vector.broadcast %530 : vector<1x32xf32> to vector<16x32xf32>
    %532 = arith.addf %528, %531 : vector<16x32xf32>
    %533 = vector.extract_strided_slice %532 {offsets = [0, 0], sizes = [1, 32], strides = [1, 1]} : vector<16x32xf32> to vector<1x32xf32>
    %534 = vector.extract_strided_slice %532 {offsets = [8, 0], sizes = [1, 32], strides = [1, 1]} : vector<16x32xf32> to vector<1x32xf32>
    %535 = tpu.concatenate %533, %534 in 0 : vector<1x32xf32>, vector<1x32xf32> -> vector<2x32xf32>
    %c0_200 = arith.constant 0 : index
    %c0_201 = arith.constant 0 : index
    %536 = vector.load %arg15[%c0_200, %c0_201] : memref<1x32xf32, #tpu.memory_space<vmem>>, vector<1x32xf32>
    %c0_202 = arith.constant 0 : index
    %c0_203 = arith.constant 0 : index
    %537 = vector.load %arg16[%c0_202, %c0_203] : memref<1x32xf32, #tpu.memory_space<vmem>>, vector<1x32xf32>
    %cst_204 = arith.constant dense<0.000000e+00> : vector<2xf32>
    %538 = vector.multi_reduction <add>, %535, %cst_204 [1] : vector<2x32xf32> to vector<2xf32>
    %539 = vector.shape_cast %538 : vector<2xf32> to vector<2x1xf32>
    %cst_205 = arith.constant 3.200000e+01 : f32
    %540 = vector.broadcast %cst_205 : f32 to vector<2x1xf32>
    %541 = arith.divf %539, %540 : vector<2x1xf32>
    %542 = vector.broadcast %541 : vector<2x1xf32> to vector<2x32xf32>
    %543 = arith.subf %535, %542 : vector<2x32xf32>
    %544 = arith.mulf %543, %543 : vector<2x32xf32>
    %cst_206 = arith.constant dense<0.000000e+00> : vector<2xf32>
    %545 = vector.multi_reduction <add>, %544, %cst_206 [1] : vector<2x32xf32> to vector<2xf32>
    %546 = vector.shape_cast %545 : vector<2xf32> to vector<2x1xf32>
    %cst_207 = arith.constant 3.200000e+01 : f32
    %547 = vector.broadcast %cst_207 : f32 to vector<2x1xf32>
    %548 = arith.divf %546, %547 : vector<2x1xf32>
    %549 = vector.broadcast %541 : vector<2x1xf32> to vector<2x32xf32>
    %550 = arith.subf %535, %549 : vector<2x32xf32>
    %cst_208 = arith.constant 9.99999974E-6 : f32
    %551 = vector.broadcast %cst_208 : f32 to vector<2x1xf32>
    %552 = arith.addf %548, %551 : vector<2x1xf32>
    %553 = math.rsqrt %552 : vector<2x1xf32>
    %554 = vector.broadcast %553 : vector<2x1xf32> to vector<2x32xf32>
    %555 = arith.mulf %550, %554 : vector<2x32xf32>
    %556 = vector.broadcast %536 : vector<1x32xf32> to vector<2x32xf32>
    %557 = arith.mulf %555, %556 : vector<2x32xf32>
    %558 = vector.broadcast %537 : vector<1x32xf32> to vector<2x32xf32>
    %559 = arith.addf %557, %558 : vector<2x32xf32>
    %c0_209 = arith.constant 0 : index
    %c0_210 = arith.constant 0 : index
    %560 = vector.load %arg15[%c0_209, %c0_210] : memref<1x32xf32, #tpu.memory_space<vmem>>, vector<1x32xf32>
    %c0_211 = arith.constant 0 : index
    %c0_212 = arith.constant 0 : index
    %561 = vector.load %arg16[%c0_211, %c0_212] : memref<1x32xf32, #tpu.memory_space<vmem>>, vector<1x32xf32>
    %cst_213 = arith.constant dense<0.000000e+00> : vector<2xf32>
    %562 = vector.multi_reduction <add>, %559, %cst_213 [1] : vector<2x32xf32> to vector<2xf32>
    %563 = vector.shape_cast %562 : vector<2xf32> to vector<2x1xf32>
    %cst_214 = arith.constant 3.200000e+01 : f32
    %564 = vector.broadcast %cst_214 : f32 to vector<2x1xf32>
    %565 = arith.divf %563, %564 : vector<2x1xf32>
    %566 = vector.broadcast %565 : vector<2x1xf32> to vector<2x32xf32>
    %567 = arith.subf %559, %566 : vector<2x32xf32>
    %568 = arith.mulf %567, %567 : vector<2x32xf32>
    %cst_215 = arith.constant dense<0.000000e+00> : vector<2xf32>
    %569 = vector.multi_reduction <add>, %568, %cst_215 [1] : vector<2x32xf32> to vector<2xf32>
    %570 = vector.shape_cast %569 : vector<2xf32> to vector<2x1xf32>
    %cst_216 = arith.constant 3.200000e+01 : f32
    %571 = vector.broadcast %cst_216 : f32 to vector<2x1xf32>
    %572 = arith.divf %570, %571 : vector<2x1xf32>
    %573 = vector.broadcast %565 : vector<2x1xf32> to vector<2x32xf32>
    %574 = arith.subf %559, %573 : vector<2x32xf32>
    %cst_217 = arith.constant 9.99999974E-6 : f32
    %575 = vector.broadcast %cst_217 : f32 to vector<2x1xf32>
    %576 = arith.addf %572, %575 : vector<2x1xf32>
    %577 = math.rsqrt %576 : vector<2x1xf32>
    %578 = vector.broadcast %577 : vector<2x1xf32> to vector<2x32xf32>
    %579 = arith.mulf %574, %578 : vector<2x32xf32>
    %580 = vector.broadcast %560 : vector<1x32xf32> to vector<2x32xf32>
    %581 = arith.mulf %579, %580 : vector<2x32xf32>
    %582 = vector.broadcast %561 : vector<1x32xf32> to vector<2x32xf32>
    %583 = arith.addf %581, %582 : vector<2x32xf32>
    %c0_218 = arith.constant 0 : index
    %c0_219 = arith.constant 0 : index
    %584 = vector.load %arg17[%c0_218, %c0_219] : memref<32x128xf32, #tpu.memory_space<vmem>>, vector<32x128xf32>
    %cst_220 = arith.constant dense<0.000000e+00> : vector<2x128xf32>
    %585 = tpu.matmul %583, %584, %cst_220 {dimension_numbers = #tpu.dot_dimension_numbers<[1], [0], [0], [1], [0, 0, 1, 1], [], []>} : vector<2x32xf32>, vector<32x128xf32>, vector<2x128xf32> -> vector<2x128xf32>
    %c0_221 = arith.constant 0 : index
    %c0_222 = arith.constant 0 : index
    %586 = vector.load %arg18[%c0_221, %c0_222] : memref<1x128xf32, #tpu.memory_space<vmem>>, vector<1x128xf32>
    %587 = vector.broadcast %586 : vector<1x128xf32> to vector<2x128xf32>
    %588 = arith.addf %585, %587 : vector<2x128xf32>
    %c0_223 = arith.constant 0 : index
    %c0_224 = arith.constant 0 : index
    %589 = vector.load %arg19[%c0_223, %c0_224] : memref<2x128xf32, #tpu.memory_space<vmem>>, vector<2x128xf32>
    tpu.vector_store %arg19[%c0_223, %c0_224], %588 {strides = array<i32>} : memref<2x128xf32, #tpu.memory_space<vmem>>, vector<2x128xf32>,
    return
  }
}

</mosaic_0001>

<llo_original>
// kernel: blip_classification_forward.1
$region0: #{blip_classification_forward.1}
  #allocation0 [shape = 'u32[]', space=smem, size = 0x4, offset = 0x4, fixed_abs, tag = 'smem constant byte address 0x4 - core index']
  #allocation1 [shape = 'u32[144,128]{1,0:T(1,128)}', space=vmem, size = 0x12000, scoped, tag = 'internal scratch']
  %s0 = inlined_call_operand.vmem [shape: f32[16,192], index: 0, kind: input, shape index: {}]
  %s1 = inlined_call_operand.vmem [shape: f32[192,32], index: 1, kind: input, shape index: {}]
  %s2 = inlined_call_operand.vmem [shape: f32[16,32], index: 2, kind: input, shape index: {}]
  %s3 = inlined_call_operand.vmem [shape: f32[2,1,32], index: 3, kind: input, shape index: {}]
  %s4 = inlined_call_operand.vmem [shape: f32[2,1,32], index: 4, kind: input, shape index: {}]
  %s5 = inlined_call_operand.vmem [shape: f32[2,32,96], index: 5, kind: input, shape index: {}]
  %s6 = inlined_call_operand.vmem [shape: f32[2,1,96], index: 6, kind: input, shape index: {}]
  %s7 = inlined_call_operand.vmem [shape: f32[2,32,32], index: 7, kind: input, shape index: {}]
  %s8 = inlined_call_operand.vmem [shape: f32[2,1,32], index: 8, kind: input, shape index: {}]
  %s9 = inlined_call_operand.vmem [shape: f32[2,1,32], index: 9, kind: input, shape index: {}]
  %s10 = inlined_call_operand.vmem [shape: f32[2,1,32], index: 10, kind: input, shape index: {}]
  %s11 = inlined_call_operand.vmem [shape: f32[2,32,64], index: 11, kind: input, shape index: {}]
  %s12 = inlined_call_operand.vmem [shape: f32[2,1,64], index: 12, kind: input, shape index: {}]
  %s13 = inlined_call_operand.vmem [shape: f32[2,64,32], index: 13, kind: input, shape index: {}]
  %s14 = inlined_call_operand.vmem [shape: f32[2,1,32], index: 14, kind: input, shape index: {}]
  %s15 = inlined_call_operand.vmem [shape: f32[1,32], index: 15, kind: input, shape index: {}]
  %s16 = inlined_call_operand.vmem [shape: f32[1,32], index: 16, kind: input, shape index: {}]
  %s17 = inlined_call_operand.vmem [shape: f32[32,128], index: 17, kind: input, shape index: {}]
  %s18 = inlined_call_operand.vmem [shape: f32[1,128], index: 18, kind: input, shape index: {}]
  %s19 = inlined_call_operand.hbm [shape: f32[2,128], index: 19, kind: output, shape index: {}]
  %s20 = sld [smem:[#allocation0]]
  $region86: #{blip_classification_forward.1} parent=0
    _
  %s22 = ssub.s32 1, %s20
  %s23 = scalar_select 0, %s22, %s20
  $region1: #{blip_classification_forward.1} parent=0
    #allocation2 [shape = 'u8[1024]{0}', space=vmem, size = 0x400, scoped, tag = 'output window, operand 0, single buffered']
    #allocation3 [shape = 's32[1]{0}', space=sflag, size = 0x4, scoped, tag = 'scoped memory for blip_classification_forward.1']
    %24 = vsyncpa [#allocation3], 0
    // Predicated region
    $region2: #{blip_classification_forward.1} parent=1 // pred_check
      _
    $region3: #{blip_classification_forward.1} parent=1 // pred_check_branch
      %26 = sbr.rel (0) target = $region5
    $region4: #{blip_classification_forward.1} parent=1 // pred_region
      _
    $region5: #{blip_classification_forward.1} parent=1 // pred_fallthru
      _
    // Predicated region
    $region6: #{blip_classification_forward.1} parent=1 // pred_check
      _
    $region7: #{blip_classification_forward.1} parent=1 // pred_check_branch
      %28 = sbr.rel (0) target = $region9
    $region8: #{blip_classification_forward.1} parent=1 // pred_region
      _
    $region9: #{blip_classification_forward.1} parent=1 // pred_fallthru
      _
    // Predicated region
    $region10: #{blip_classification_forward.1} parent=1 // pred_check
      _
    $region11: #{blip_classification_forward.1} parent=1 // pred_check_branch
      %30 = sbr.rel (0) target = $region13
    $region12: #{blip_classification_forward.1} parent=1 // pred_region
      _
    $region13: #{blip_classification_forward.1} parent=1 // pred_fallthru
      _
    // Predicated region
    $region14: #{blip_classification_forward.1} parent=1 // pred_check
      _
    $region15: #{blip_classification_forward.1} parent=1 // pred_check_branch
      %32 = sbr.rel (0) target = $region17
    $region16: #{blip_classification_forward.1} parent=1 // pred_region
      _
    $region17: #{blip_classification_forward.1} parent=1 // pred_fallthru
      _
    // Predicated region
    $region18: #{blip_classification_forward.1} parent=1 // pred_check
      _
    $region19: #{blip_classification_forward.1} parent=1 // pred_check_branch
      %34 = sbr.rel (0) target = $region21
    $region20: #{blip_classification_forward.1} parent=1 // pred_region
      _
    $region21: #{blip_classification_forward.1} parent=1 // pred_fallthru
      _
    // Predicated region
    $region22: #{blip_classification_forward.1} parent=1 // pred_check
      _
    $region23: #{blip_classification_forward.1} parent=1 // pred_check_branch
      %36 = sbr.rel (0) target = $region25
    $region24: #{blip_classification_forward.1} parent=1 // pred_region
      _
    $region25: #{blip_classification_forward.1} parent=1 // pred_fallthru
      _
    // Predicated region
    $region26: #{blip_classification_forward.1} parent=1 // pred_check
      _
    $region27: #{blip_classification_forward.1} parent=1 // pred_check_branch
      %38 = sbr.rel (0) target = $region29
    $region28: #{blip_classification_forward.1} parent=1 // pred_region
      _
    $region29: #{blip_classification_forward.1} parent=1 // pred_fallthru
      _
    // Predicated region
    $region30: #{blip_classification_forward.1} parent=1 // pred_check
      _
    $region31: #{blip_classification_forward.1} parent=1 // pred_check_branch
      %40 = sbr.rel (0) target = $region33
    $region32: #{blip_classification_forward.1} parent=1 // pred_region
      _
    $region33: #{blip_classification_forward.1} parent=1 // pred_fallthru
      _
    // Predicated region
    $region34: #{blip_classification_forward.1} parent=1 // pred_check
      _
    $region35: #{blip_classification_forward.1} parent=1 // pred_check_branch
      %42 = sbr.rel (0) target = $region37
    $region36: #{blip_classification_forward.1} parent=1 // pred_region
      _
    $region37: #{blip_classification_forward.1} parent=1 // pred_fallthru
      _
    // Predicated region
    $region38: #{blip_classification_forward.1} parent=1 // pred_check
      _
    $region39: #{blip_classification_forward.1} parent=1 // pred_check_branch
      %44 = sbr.rel (0) target = $region41
    $region40: #{blip_classification_forward.1} parent=1 // pred_region
      _
    $region41: #{blip_classification_forward.1} parent=1 // pred_fallthru
      _
    // Predicated region
    $region42: #{blip_classification_forward.1} parent=1 // pred_check
      _
    $region43: #{blip_classification_forward.1} parent=1 // pred_check_branch
      %46 = sbr.rel (0) target = $region45
    $region44: #{blip_classification_forward.1} parent=1 // pred_region
      _
    $region45: #{blip_classification_forward.1} parent=1 // pred_fallthru
      _
    // Predicated region
    $region46: #{blip_classification_forward.1} parent=1 // pred_check
      _
    $region47: #{blip_classification_forward.1} parent=1 // pred_check_branch
      %48 = sbr.rel (0) target = $region49
    $region48: #{blip_classification_forward.1} parent=1 // pred_region
      _
    $region49: #{blip_classification_forward.1} parent=1 // pred_fallthru
      _
    // Predicated region
    $region50: #{blip_classification_forward.1} parent=1 // pred_check
      _
    $region51: #{blip_classification_forward.1} parent=1 // pred_check_branch
      %50 = sbr.rel (0) target = $region53
    $region52: #{blip_classification_forward.1} parent=1 // pred_region
      _
    $region53: #{blip_classification_forward.1} parent=1 // pred_fallthru
      _
    // Predicated region
    $region54: #{blip_classification_forward.1} parent=1 // pred_check
      _
    $region55: #{blip_classification_forward.1} parent=1 // pred_check_branch
      %52 = sbr.rel (0) target = $region57
    $region56: #{blip_classification_forward.1} parent=1 // pred_region
      _
    $region57: #{blip_classification_forward.1} parent=1 // pred_fallthru
      _
    // Predicated region
    $region58: #{blip_classification_forward.1} parent=1 // pred_check
      _
    $region59: #{blip_classification_forward.1} parent=1 // pred_check_branch
      %54 = sbr.rel (0) target = $region61
    $region60: #{blip_classification_forward.1} parent=1 // pred_region
      _
    $region61: #{blip_classification_forward.1} parent=1 // pred_fallthru
      _
    // Predicated region
    $region62: #{blip_classification_forward.1} parent=1 // pred_check
      _
    $region63: #{blip_classification_forward.1} parent=1 // pred_check_branch
      %56 = sbr.rel (0) target = $region65
    $region64: #{blip_classification_forward.1} parent=1 // pred_region
      _
    $region65: #{blip_classification_forward.1} parent=1 // pred_fallthru
      _
    // Predicated region
    $region66: #{blip_classification_forward.1} parent=1 // pred_check
      _
    $region67: #{blip_classification_forward.1} parent=1 // pred_check_branch
      %58 = sbr.rel (0) target = $region69
    $region68: #{blip_classification_forward.1} parent=1 // pred_region
      _
    $region69: #{blip_classification_forward.1} parent=1 // pred_fallthru
      _
    // Predicated region
    $region70: #{blip_classification_forward.1} parent=1 // pred_check
      _
    $region71: #{blip_classification_forward.1} parent=1 // pred_check_branch
      %60 = sbr.rel (0) target = $region73
    $region72: #{blip_classification_forward.1} parent=1 // pred_region
      _
    $region73: #{blip_classification_forward.1} parent=1 // pred_fallthru
      _
    // Predicated region
    $region74: #{blip_classification_forward.1} parent=1 // pred_check
      _
    $region75: #{blip_classification_forward.1} parent=1 // pred_check_branch
      %62 = sbr.rel (0) target = $region77
    $region76: #{blip_classification_forward.1} parent=1 // pred_region
      _
    $region77: #{blip_classification_forward.1} parent=1 // pred_fallthru
      _
    %v63 = vlaneseq
    %v64 = vand.u32 %v63, 127
    %vm65 = vcmp.lt.s32.totalorder %v64, 5
    %v66 = vsel %vm65, 0.0, -1e+09
    %v67 = vld [vmem:[%s0] sm:$0xff]
    %v68 = vld [vmem:[%s0 + $0x8] sm:$0xff]
    %v69 = vld [vmem:[%s0 + $0x10] sm:$0xff]
    %v70 = vld [vmem:[%s0 + $0x18] sm:$0xff]
    %v71 = vld [vmem:[%s1] sm:$0xff]
    %v72 = vld [vmem:[%s1 + $0x8] sm:$0xff]
    %v73 = vld [vmem:[%s1 + $0x10] sm:$0xff]
    %v74 = vld [vmem:[%s1 + $0x18] sm:$0xff]
    %v75 = vld [vmem:[%s1 + $0x20] sm:$0xff]
    %v76 = vld [vmem:[%s1 + $0x28] sm:$0xff]
    %v77 = vld [vmem:[%s1 + $0x30] sm:$0xff]
    %v78 = vld [vmem:[%s1 + $0x38] sm:$0xff]
    %v79 = vld [vmem:[%s1 + $0x40] sm:$0xff]
    %v80 = vld [vmem:[%s1 + $0x48] sm:$0xff]
    %v81 = vld [vmem:[%s1 + $0x50] sm:$0xff]
    %v82 = vld [vmem:[%s1 + $0x58] sm:$0xff]
    %v83 = vld [vmem:[%s1 + $0x60] sm:$0xff]
    %v84 = vld [vmem:[%s1 + $0x68] sm:$0xff]
    %v85 = vld [vmem:[%s1 + $0x70] sm:$0xff]
    %v86 = vld [vmem:[%s1 + $0x78] sm:$0xff]
    %v87 = vld [vmem:[%s1 + $0x80] sm:$0xff]
    %v88 = vld [vmem:[%s1 + $0x88] sm:$0xff]
    %v89 = vld [vmem:[%s1 + $0x90] sm:$0xff]
    %v90 = vld [vmem:[%s1 + $0x98] sm:$0xff]
    %v91 = vld [vmem:[%s1 + $0xa0] sm:$0xff]
    %v92 = vld [vmem:[%s1 + $0xa8] sm:$0xff]
    %v93 = vld [vmem:[%s1 + $0xb0] sm:$0xff]
    %v94 = vld [vmem:[%s1 + $0xb8] sm:$0xff]
    %v95 = vld [vmem:[%s2] sm:$0xff]
    %v96 = vld [vmem:[%s2 + $0x8] sm:$0xff]
    %vm97 = vcmask 523264
    %v99 = vsel %vm97, %v68, 0
    %v102 = vsel %vm97, %v70, 0
    %104 = vmatprep.subr.mxu0 0.0
    %105 = vmatpush1.msra.mxu0 %v71
    %106 = vmatprep.subr.mxu0 0.0
    %107 = vmatpush1.msra.mxu0 %v72
    %108 = vmatprep.subr.mxu0 0.0
    %109 = vmatpush1.msra.mxu0 %v73
    %110 = vmatprep.subr.mxu0 0.0
    %111 = vmatpush1.msra.mxu0 %v74
    %112 = vmatprep.subr.mxu0 0.0
    %113 = vmatpush1.msra.mxu0 %v75
    %114 = vmatprep.subr.mxu0 0.0
    %115 = vmatpush1.msra.mxu0 %v76
    %116 = vmatprep.subr.mxu0 0.0
    %117 = vmatpush1.msra.mxu0 %v77
    %118 = vmatprep.subr.mxu0 0.0
    %119 = vmatpush1.msra.mxu0 %v78
    %120 = vmatprep.subr.mxu0 0.0
    %121 = vmatpush1.msra.mxu0 %v79
    %122 = vmatprep.subr.mxu0 0.0
    %123 = vmatpush1.msra.mxu0 %v80
    %124 = vmatprep.subr.mxu0 0.0
    %125 = vmatpush1.msra.mxu0 %v81
    %126 = vmatprep.subr.mxu0 0.0
    %127 = vmatpush1.msra.mxu0 %v82
    %128 = vmatprep.subr.mxu0 0.0
    %129 = vmatpush1.msra.mxu0 %v83
    %130 = vmatprep.subr.mxu0 0.0
    %131 = vmatpush1.msra.mxu0 %v84
    %132 = vmatprep.subr.mxu0 0.0
    %133 = vmatpush1.msra.mxu0 %v85
    %134 = vmatprep.subr.mxu0 0.0
    %135 = vmatpush1.msra.mxu0 %v86
    %136 = vmatprep.subr.mxu0 0.0
    %137 = vmatpush1.msra.mxu0 %v87
    %138 = vmatprep.subr.mxu0 0.0
    %139 = vmatpush1.msra.mxu0 %v88
    %140 = vmatprep.subr.mxu0 0.0
    %141 = vmatpush1.msra.mxu0 %v89
    %142 = vmatprep.subr.mxu0 0.0
    %143 = vmatpush1.msra.mxu0 %v90
    %144 = vmatprep.subr.mxu0 0.0
    %145 = vmatpush1.msra.mxu0 %v91
    %146 = vmatprep.subr.mxu0 0.0
    %147 = vmatpush1.msra.mxu0 %v92
    %148 = vmatprep.subr.mxu0 0.0
    %149 = vmatpush1.msra.mxu0 %v93
    %150 = vmatprep.subr.mxu0 0.0
    %151 = vmatpush1.msra.mxu0 %v94
    %152 = vmatprep.subr.mxu0 0.0
    %153 = vmatpush1.msra.mxu0 0.0
    %154 = vmatprep.subr.mxu0 0.0
    %155 = vmatpush1.msra.mxu0 0.0
    %156 = vmatprep.subr.mxu0 0.0
    %157 = vmatpush1.msra.mxu0 0.0
    %158 = vmatprep.subr.mxu0 0.0
    %159 = vmatpush1.msra.mxu0 0.0
    %160 = vmatprep.subr.mxu0 0.0
    %161 = vmatpush1.msra.mxu0 0.0
    %162 = vmatprep.subr.mxu0 0.0
    %163 = vmatpush1.msra.mxu0 0.0
    %164 = vmatprep.subr.mxu0 0.0
    %165 = vmatpush1.msra.mxu0 0.0
    %166 = vmatprep.subr.mxu0 0.0
    %167 = vmatpush1.msra.mxu0 0.0
    %168 = vmatprep.mubr.f32.mxu0 %v99
    %169 = vmatmul.mubr.f32.gmra.mrb[0].mxu0 %v67
    %v170 = vpop.f32.mrb[0].mxu0
    %v171 = vadd.f32 %v95, %v170
    %v172 = vpop.f32.mrb[0].mxu0
    %173 = vmatprep.mubr.f32.mxu0 %v102
    %174 = vmatmul.mubr.f32.gmra.mrb[0].mxu0 %v69
    %v175 = vpop.f32.mrb[0].mxu0
    %v176 = vadd.f32 %v96, %v175
    %v177 = vpop.f32.mrb[0].mxu0
    %178 = vdwg.mxu0
    %v179 = vld [vmem:[%s3] sm:$0x1]
    %v180 = vld [vmem:[%s4] sm:$0x1]
    %vm181 = vcmask 261120
    %v182 = vsel %vm181, %v171, 0.0
    %183 = vadd.xlane.f32.xlu0 %v182
    %v184 = vpop.xlane.xlu0 %183
    %v185 = vsel %vm181, %v176, 0.0
    %186 = vadd.xlane.f32.xlu0 %v185
    %v187 = vpop.xlane.xlu0 %186
    %v188 = vrcp.pop 32.0
    %v189 = vmul.f32 %v184, %v188
    %v190 = vmul.f32 %v187, %v188
    %v191 = vsub.f32 %v171, %v189
    %v192 = vsub.f32 %v176, %v190
    %v193 = vmul.f32 %v191, %v191
    %v194 = vmul.f32 %v192, %v192
    %v195 = vsel %vm181, %v193, 0.0
    %196 = vadd.xlane.f32.xlu0 %v195
    %v197 = vpop.xlane.xlu0 %196
    %v198 = vsel %vm181, %v194, 0.0
    %199 = vadd.xlane.f32.xlu0 %v198
    %v200 = vpop.xlane.xlu0 %199
    %v201 = vmul.f32 %v197, %v188
    %v202 = vmul.f32 %v200, %v188
    %v203 = vadd.f32 %v201, 1e-05
    %v204 = vadd.f32 %v202, 1e-05
    %v205 = vrsqrt.pop %v203
    %v206 = vrsqrt.pop %v204
    %v207 = vmul.f32 %v191, %v205
    %v208 = vmul.f32 %v192, %v206
    %v210 = vlaneseq
    %v211 = vshrl.u32 %v210, 7
    %v212 = vsub.s32 0, %v211
    %v213 = vrot.slane %v179, %v212
    %v215 = vmul.f32 %v207, %v213
    %v216 = vmul.f32 %v208, %v213
    %v218 = vlaneseq
    %v219 = vshrl.u32 %v218, 7
    %v220 = vsub.s32 0, %v219
    %v221 = vrot.slane %v180, %v220
    %v223 = vadd.f32 %v215, %v221
    %v224 = vadd.f32 %v216, %v221
    %v225 = vld [vmem:[%s5] sm:$0xff]
    %v226 = vld [vmem:[%s5 + $0x8] sm:$0xff]
    %v227 = vld [vmem:[%s5 + $0x10] sm:$0xff]
    %v228 = vld [vmem:[%s5 + $0x18] sm:$0xff]
    %v229 = vld [vmem:[%s6] sm:$0x1]
    %v231 = vlaneseq
    %v232 = vshrl.u32 %v231, 7
    %v233 = vsub.s32 0, %v232
    %v234 = vrot.slane %v229, %v233
    %v237 = vsel %vm181, %v223, 0
    %v240 = vsel %vm181, %v224, 0
    %242 = vmatprep.subr.mxu0 0.0
    %243 = vmatpush1.msra.mxu0 %v225
    %244 = vmatprep.subr.mxu0 0.0
    %245 = vmatpush1.msra.mxu0 %v226
    %246 = vmatprep.subr.mxu0 0.0
    %247 = vmatpush1.msra.mxu0 %v227
    %248 = vmatprep.subr.mxu0 0.0
    %249 = vmatpush1.msra.mxu0 %v228
    %250 = vmatprep.subr.mxu0 0.0
    %251 = vmatpush1.msra.mxu0 0.0
    %252 = vmatprep.subr.mxu0 0.0
    %253 = vmatpush1.msra.mxu0 0.0
    %254 = vmatprep.subr.mxu0 0.0
    %255 = vmatpush1.msra.mxu0 0.0
    %256 = vmatprep.subr.mxu0 0.0
    %257 = vmatpush1.msra.mxu0 0.0
    %258 = vmatprep.subr.mxu0 0.0
    %259 = vmatpush1.msra.mxu0 0.0
    %260 = vmatprep.subr.mxu0 0.0
    %261 = vmatpush1.msra.mxu0 0.0
    %262 = vmatprep.subr.mxu0 0.0
    %263 = vmatpush1.msra.mxu0 0.0
    %264 = vmatprep.subr.mxu0 0.0
    %265 = vmatpush1.msra.mxu0 0.0
    %266 = vmatprep.subr.mxu0 0.0
    %267 = vmatpush1.msra.mxu0 0.0
    %268 = vmatprep.subr.mxu0 0.0
    %269 = vmatpush1.msra.mxu0 0.0
    %270 = vmatprep.subr.mxu0 0.0
    %271 = vmatpush1.msra.mxu0 0.0
    %272 = vmatprep.subr.mxu0 0.0
    %273 = vmatpush1.msra.mxu0 0.0
    %274 = vmatprep.subr.mxu0 0.0
    %275 = vmatpush1.msra.mxu0 0.0
    %276 = vmatprep.subr.mxu0 0.0
    %277 = vmatpush1.msra.mxu0 0.0
    %278 = vmatprep.subr.mxu0 0.0
    %279 = vmatpush1.msra.mxu0 0.0
    %280 = vmatprep.subr.mxu0 0.0
    %281 = vmatpush1.msra.mxu0 0.0
    %282 = vmatprep.subr.mxu0 0.0
    %283 = vmatpush1.msra.mxu0 0.0
    %284 = vmatprep.subr.mxu0 0.0
    %285 = vmatpush1.msra.mxu0 0.0
    %286 = vmatprep.subr.mxu0 0.0
    %287 = vmatpush1.msra.mxu0 0.0
    %288 = vmatprep.subr.mxu0 0.0
    %289 = vmatpush1.msra.mxu0 0.0
    %290 = vmatprep.subr.mxu0 0.0
    %291 = vmatpush1.msra.mxu0 0.0
    %292 = vmatprep.subr.mxu0 0.0
    %293 = vmatpush1.msra.mxu0 0.0
    %294 = vmatprep.subr.mxu0 0.0
    %295 = vmatpush1.msra.mxu0 0.0
    %296 = vmatprep.subr.mxu0 0.0
    %297 = vmatpush1.msra.mxu0 0.0
    %298 = vmatprep.subr.mxu0 0.0
    %299 = vmatpush1.msra.mxu0 0.0
    %300 = vmatprep.subr.mxu0 0.0
    %301 = vmatpush1.msra.mxu0 0.0
    %302 = vmatprep.subr.mxu0 0.0
    %303 = vmatpush1.msra.mxu0 0.0
    %304 = vmatprep.subr.mxu0 0.0
    %305 = vmatpush1.msra.mxu0 0.0
    %306 = vmatprep.mubr.f32.mxu0 0.0
    %307 = vmatmul.mubr.f32.gmra.mrb[0].mxu0 %v237
    %v308 = vpop.f32.mrb[0].mxu0
    %v309 = vadd.f32 %v234, %v308
    %v310 = vpop.f32.mrb[0].mxu0
    %311 = vmatprep.mubr.f32.mxu0 0.0
    %312 = vmatmul.mubr.f32.gmra.mrb[0].mxu0 %v240
    %v313 = vpop.f32.mrb[0].mxu0
    %v314 = vadd.f32 %v234, %v313
    %v315 = vpop.f32.mrb[0].mxu0
    %316 = vdwg.mxu0
    %318 = vrot.lane.b32.xlu0 %v309, 96
    %v319 = vpop.permute.xlu0 %318
    %vm320 = vcmask 64512
    %v321 = vsel %vm320, %v309, 0
    %v323 = vsel %vm320, %v319, 0
    %325 = vmatprep.subr.mxu0 0.0
    %326 = vmatpush1.xpose.msra.mxu0 %v323
    %327 = vmatprep.subr.mxu0 0.0
    %328 = vmatpush1.xpose.msra.mxu0 0.0
    %329 = vmatprep.subr.mxu0 0.0
    %330 = vmatpush1.xpose.msra.mxu0 0.0
    %331 = vmatprep.subr.mxu0 0.0
    %332 = vmatpush1.xpose.msra.mxu0 0.0
    %333 = vmatprep.subr.mxu0 0.0
    %334 = vmatpush1.xpose.msra.mxu0 0.0
    %335 = vmatprep.subr.mxu0 0.0
    %336 = vmatpush1.xpose.msra.mxu0 0.0
    %337 = vmatprep.subr.mxu0 0.0
    %338 = vmatpush1.xpose.msra.mxu0 0.0
    %339 = vmatprep.subr.mxu0 0.0
    %340 = vmatpush1.xpose.msra.mxu0 0.0
    %341 = vmatprep.subr.mxu0 0.0
    %342 = vmatpush1.xpose.msra.mxu0 0.0
    %343 = vmatprep.subr.mxu0 0.0
    %344 = vmatpush1.xpose.msra.mxu0 0.0
    %345 = vmatprep.subr.mxu0 0.0
    %346 = vmatpush1.xpose.msra.mxu0 0.0
    %347 = vmatprep.subr.mxu0 0.0
    %348 = vmatpush1.xpose.msra.mxu0 0.0
    %349 = vmatprep.subr.mxu0 0.0
    %350 = vmatpush1.xpose.msra.mxu0 0.0
    %351 = vmatprep.subr.mxu0 0.0
    %352 = vmatpush1.xpose.msra.mxu0 0.0
    %353 = vmatprep.subr.mxu0 0.0
    %354 = vmatpush1.xpose.msra.mxu0 0.0
    %355 = vmatprep.subr.mxu0 0.0
    %356 = vmatpush1.xpose.msra.mxu0 0.0
    %357 = vmatprep.subr.mxu0 0.0
    %358 = vmatpush1.xpose.msra.mxu0 0.0
    %359 = vmatprep.subr.mxu0 0.0
    %360 = vmatpush1.xpose.msra.mxu0 0.0
    %361 = vmatprep.subr.mxu0 0.0
    %362 = vmatpush1.xpose.msra.mxu0 0.0
    %363 = vmatprep.subr.mxu0 0.0
    %364 = vmatpush1.xpose.msra.mxu0 0.0
    %365 = vmatprep.subr.mxu0 0.0
    %366 = vmatpush1.xpose.msra.mxu0 0.0
    %367 = vmatprep.subr.mxu0 0.0
    %368 = vmatpush1.xpose.msra.mxu0 0.0
    %369 = vmatprep.subr.mxu0 0.0
    %370 = vmatpush1.xpose.msra.mxu0 0.0
    %371 = vmatprep.subr.mxu0 0.0
    %372 = vmatpush1.xpose.msra.mxu0 0.0
    %373 = vmatprep.subr.mxu0 0.0
    %374 = vmatpush1.xpose.msra.mxu0 0.0
    %375 = vmatprep.subr.mxu0 0.0
    %376 = vmatpush1.xpose.msra.mxu0 0.0
    %377 = vmatprep.subr.mxu0 0.0
    %378 = vmatpush1.xpose.msra.mxu0 0.0
    %379 = vmatprep.subr.mxu0 0.0
    %380 = vmatpush1.xpose.msra.mxu0 0.0
    %381 = vmatprep.subr.mxu0 0.0
    %382 = vmatpush1.xpose.msra.mxu0 0.0
    %383 = vmatprep.subr.mxu0 0.0
    %384 = vmatpush1.xpose.msra.mxu0 0.0
    %385 = vmatprep.subr.mxu0 0.0
    %386 = vmatpush1.xpose.msra.mxu0 0.0
    %387 = vmatprep.subr.mxu0 0.0
    %388 = vmatpush1.xpose.msra.mxu0 0.0
    %389 = vmatprep.mubr.f32.mxu0 0.0
    %390 = vmatmul.mubr.f32.gmra.mrb[0].mxu0 %v321
    %v391 = vpop.f32.mrb[0].mxu0
    %v392 = vadd.f32 %v66, %v391
    %v393 = vpop.f32.mrb[0].mxu0
    %394 = vdwg.mxu0
    %v395 = vsel %vm320, %v392, -inf
    %396 = vmax.xlane.f32.xlu0 %v395
    %v397 = vpop.xlane.xlu0 %396
    %v398 = vsub.f32 %v392, %v397
    %v399 = vmul.f32 %v398, 1.442695
    %v400 = vpow.pop %v399
    %v401 = vsel %vm320, %v400, 0.0
    %402 = vadd.xlane.f32.xlu0 %v401
    %v403 = vpop.xlane.xlu0 %402
    %v404 = vrcp.pop %v403
    %v405 = vmul.f32 %v400, %v404
    %406 = vrot.lane.b32.xlu0 %v309, 64
    %v407 = vpop.permute.xlu0 %406
    %v410 = vsel %vm320, %v405, 0
    %412 = vmatprep.subr.mxu0 0.0
    %413 = vmatpush1.msra.mxu0 %v407
    %414 = vmatprep.subr.mxu0 0.0
    %415 = vmatpush1.msra.mxu0 0.0
    %416 = vmatprep.subr.mxu0 0.0
    %417 = vmatpush1.msra.mxu0 0.0
    %418 = vmatprep.subr.mxu0 0.0
    %419 = vmatpush1.msra.mxu0 0.0
    %420 = vmatprep.subr.mxu0 0.0
    %421 = vmatpush1.msra.mxu0 0.0
    %422 = vmatprep.subr.mxu0 0.0
    %423 = vmatpush1.msra.mxu0 0.0
    %424 = vmatprep.subr.mxu0 0.0
    %425 = vmatpush1.msra.mxu0 0.0
    %426 = vmatprep.subr.mxu0 0.0
    %427 = vmatpush1.msra.mxu0 0.0
    %428 = vmatprep.subr.mxu0 0.0
    %429 = vmatpush1.msra.mxu0 0.0
    %430 = vmatprep.subr.mxu0 0.0
    %431 = vmatpush1.msra.mxu0 0.0
    %432 = vmatprep.subr.mxu0 0.0
    %433 = vmatpush1.msra.mxu0 0.0
    %434 = vmatprep.subr.mxu0 0.0
    %435 = vmatpush1.msra.mxu0 0.0
    %436 = vmatprep.subr.mxu0 0.0
    %437 = vmatpush1.msra.mxu0 0.0
    %438 = vmatprep.subr.mxu0 0.0
    %439 = vmatpush1.msra.mxu0 0.0
    %440 = vmatprep.subr.mxu0 0.0
    %441 = vmatpush1.msra.mxu0 0.0
    %442 = vmatprep.subr.mxu0 0.0
    %443 = vmatpush1.msra.mxu0 0.0
    %444 = vmatprep.subr.mxu0 0.0
    %445 = vmatpush1.msra.mxu0 0.0
    %446 = vmatprep.subr.mxu0 0.0
    %447 = vmatpush1.msra.mxu0 0.0
    %448 = vmatprep.subr.mxu0 0.0
    %449 = vmatpush1.msra.mxu0 0.0
    %450 = vmatprep.subr.mxu0 0.0
    %451 = vmatpush1.msra.mxu0 0.0
    %452 = vmatprep.subr.mxu0 0.0
    %453 = vmatpush1.msra.mxu0 0.0
    %454 = vmatprep.subr.mxu0 0.0
    %455 = vmatpush1.msra.mxu0 0.0
    %456 = vmatprep.subr.mxu0 0.0
    %457 = vmatpush1.msra.mxu0 0.0
    %458 = vmatprep.subr.mxu0 0.0
    %459 = vmatpush1.msra.mxu0 0.0
    %460 = vmatprep.subr.mxu0 0.0
    %461 = vmatpush1.msra.mxu0 0.0
    %462 = vmatprep.subr.mxu0 0.0
    %463 = vmatpush1.msra.mxu0 0.0
    %464 = vmatprep.subr.mxu0 0.0
    %465 = vmatpush1.msra.mxu0 0.0
    %466 = vmatprep.subr.mxu0 0.0
    %467 = vmatpush1.msra.mxu0 0.0
    %468 = vmatprep.subr.mxu0 0.0
    %469 = vmatpush1.msra.mxu0 0.0
    %470 = vmatprep.subr.mxu0 0.0
    %471 = vmatpush1.msra.mxu0 0.0
    %472 = vmatprep.subr.mxu0 0.0
    %473 = vmatpush1.msra.mxu0 0.0
    %474 = vmatprep.subr.mxu0 0.0
    %475 = vmatpush1.msra.mxu0 0.0
    %476 = vmatprep.mubr.f32.mxu0 0.0
    %477 = vmatmul.mubr.f32.gmra.mrb[0].mxu0 %v410
    %v478 = vpop.f32.mrb[0].mxu0
    %v479 = vadd.f32 0.0, %v478
    %v480 = vpop.f32.mrb[0].mxu0
    %481 = vdwg.mxu0
    %482 = vrot.lane.b32.xlu0 %v309, 120
    %v483 = vpop.permute.xlu0 %482
    %484 = vrot.lane.b32.xlu0 %v309, 88
    %v485 = vpop.permute.xlu0 %484
    %v486 = vsel %vm320, %v483, 0
    %v488 = vsel %vm320, %v485, 0
    %490 = vmatprep.subr.mxu0 0.0
    %491 = vmatpush1.xpose.msra.mxu0 %v488
    %492 = vmatprep.subr.mxu0 0.0
    %493 = vmatpush1.xpose.msra.mxu0 0.0
    %494 = vmatprep.subr.mxu0 0.0
    %495 = vmatpush1.xpose.msra.mxu0 0.0
    %496 = vmatprep.subr.mxu0 0.0
    %497 = vmatpush1.xpose.msra.mxu0 0.0
    %498 = vmatprep.subr.mxu0 0.0
    %499 = vmatpush1.xpose.msra.mxu0 0.0
    %500 = vmatprep.subr.mxu0 0.0
    %501 = vmatpush1.xpose.msra.mxu0 0.0
    %502 = vmatprep.subr.mxu0 0.0
    %503 = vmatpush1.xpose.msra.mxu0 0.0
    %504 = vmatprep.subr.mxu0 0.0
    %505 = vmatpush1.xpose.msra.mxu0 0.0
    %506 = vmatprep.subr.mxu0 0.0
    %507 = vmatpush1.xpose.msra.mxu0 0.0
    %508 = vmatprep.subr.mxu0 0.0
    %509 = vmatpush1.xpose.msra.mxu0 0.0
    %510 = vmatprep.subr.mxu0 0.0
    %511 = vmatpush1.xpose.msra.mxu0 0.0
    %512 = vmatprep.subr.mxu0 0.0
    %513 = vmatpush1.xpose.msra.mxu0 0.0
    %514 = vmatprep.subr.mxu0 0.0
    %515 = vmatpush1.xpose.msra.mxu0 0.0
    %516 = vmatprep.subr.mxu0 0.0
    %517 = vmatpush1.xpose.msra.mxu0 0.0
    %518 = vmatprep.subr.mxu0 0.0
    %519 = vmatpush1.xpose.msra.mxu0 0.0
    %520 = vmatprep.subr.mxu0 0.0
    %521 = vmatpush1.xpose.msra.mxu0 0.0
    %522 = vmatprep.subr.mxu0 0.0
    %523 = vmatpush1.xpose.msra.mxu0 0.0
    %524 = vmatprep.subr.mxu0 0.0
    %525 = vmatpush1.xpose.msra.mxu0 0.0
    %526 = vmatprep.subr.mxu0 0.0
    %527 = vmatpush1.xpose.msra.mxu0 0.0
    %528 = vmatprep.subr.mxu0 0.0
    %529 = vmatpush1.xpose.msra.mxu0 0.0
    %530 = vmatprep.subr.mxu0 0.0
    %531 = vmatpush1.xpose.msra.mxu0 0.0
    %532 = vmatprep.subr.mxu0 0.0
    %533 = vmatpush1.xpose.msra.mxu0 0.0
    %534 = vmatprep.subr.mxu0 0.0
    %535 = vmatpush1.xpose.msra.mxu0 0.0
    %536 = vmatprep.subr.mxu0 0.0
    %537 = vmatpush1.xpose.msra.mxu0 0.0
    %538 = vmatprep.subr.mxu0 0.0
    %539 = vmatpush1.xpose.msra.mxu0 0.0
    %540 = vmatprep.subr.mxu0 0.0
    %541 = vmatpush1.xpose.msra.mxu0 0.0
    %542 = vmatprep.subr.mxu0 0.0
    %543 = vmatpush1.xpose.msra.mxu0 0.0
    %544 = vmatprep.subr.mxu0 0.0
    %545 = vmatpush1.xpose.msra.mxu0 0.0
    %546 = vmatprep.subr.mxu0 0.0
    %547 = vmatpush1.xpose.msra.mxu0 0.0
    %548 = vmatprep.subr.mxu0 0.0
    %549 = vmatpush1.xpose.msra.mxu0 0.0
    %550 = vmatprep.subr.mxu0 0.0
    %551 = vmatpush1.xpose.msra.mxu0 0.0
    %552 = vmatprep.subr.mxu0 0.0
    %553 = vmatpush1.xpose.msra.mxu0 0.0
    %554 = vmatprep.mubr.f32.mxu0 0.0
    %555 = vmatmul.mubr.f32.gmra.mrb[0].mxu0 %v486
    %v556 = vpop.f32.mrb[0].mxu0
    %v557 = vadd.f32 %v66, %v556
    %v558 = vpop.f32.mrb[0].mxu0
    %559 = vdwg.mxu0
    %v560 = vsel %vm320, %v557, -inf
    %561 = vmax.xlane.f32.xlu0 %v560
    %v562 = vpop.xlane.xlu0 %561
    %v563 = vsub.f32 %v557, %v562
    %v564 = vmul.f32 %v563, 1.442695
    %v565 = vpow.pop %v564
    %v566 = vsel %vm320, %v565, 0.0
    %567 = vadd.xlane.f32.xlu0 %v566
    %v568 = vpop.xlane.xlu0 %567
    %v569 = vrcp.pop %v568
    %v570 = vmul.f32 %v565, %v569
    %571 = vrot.lane.b32.xlu0 %v309, 56
    %v572 = vpop.permute.xlu0 %571
    %v575 = vsel %vm320, %v570, 0
    %577 = vmatprep.subr.mxu0 0.0
    %578 = vmatpush1.msra.mxu0 %v572
    %579 = vmatprep.subr.mxu0 0.0
    %580 = vmatpush1.msra.mxu0 0.0
    %581 = vmatprep.subr.mxu0 0.0
    %582 = vmatpush1.msra.mxu0 0.0
    %583 = vmatprep.subr.mxu0 0.0
    %584 = vmatpush1.msra.mxu0 0.0
    %585 = vmatprep.subr.mxu0 0.0
    %586 = vmatpush1.msra.mxu0 0.0
    %587 = vmatprep.subr.mxu0 0.0
    %588 = vmatpush1.msra.mxu0 0.0
    %589 = vmatprep.subr.mxu0 0.0
    %590 = vmatpush1.msra.mxu0 0.0
    %591 = vmatprep.subr.mxu0 0.0
    %592 = vmatpush1.msra.mxu0 0.0
    %593 = vmatprep.subr.mxu0 0.0
    %594 = vmatpush1.msra.mxu0 0.0
    %595 = vmatprep.subr.mxu0 0.0
    %596 = vmatpush1.msra.mxu0 0.0
    %597 = vmatprep.subr.mxu0 0.0
    %598 = vmatpush1.msra.mxu0 0.0
    %599 = vmatprep.subr.mxu0 0.0
    %600 = vmatpush1.msra.mxu0 0.0
    %601 = vmatprep.subr.mxu0 0.0
    %602 = vmatpush1.msra.mxu0 0.0
    %603 = vmatprep.subr.mxu0 0.0
    %604 = vmatpush1.msra.mxu0 0.0
    %605 = vmatprep.subr.mxu0 0.0
    %606 = vmatpush1.msra.mxu0 0.0
    %607 = vmatprep.subr.mxu0 0.0
    %608 = vmatpush1.msra.mxu0 0.0
    %609 = vmatprep.subr.mxu0 0.0
    %610 = vmatpush1.msra.mxu0 0.0
    %611 = vmatprep.subr.mxu0 0.0
    %612 = vmatpush1.msra.mxu0 0.0
    %613 = vmatprep.subr.mxu0 0.0
    %614 = vmatpush1.msra.mxu0 0.0
    %615 = vmatprep.subr.mxu0 0.0
    %616 = vmatpush1.msra.mxu0 0.0
    %617 = vmatprep.subr.mxu0 0.0
    %618 = vmatpush1.msra.mxu0 0.0
    %619 = vmatprep.subr.mxu0 0.0
    %620 = vmatpush1.msra.mxu0 0.0
    %621 = vmatprep.subr.mxu0 0.0
    %622 = vmatpush1.msra.mxu0 0.0
    %623 = vmatprep.subr.mxu0 0.0
    %624 = vmatpush1.msra.mxu0 0.0
    %625 = vmatprep.subr.mxu0 0.0
    %626 = vmatpush1.msra.mxu0 0.0
    %627 = vmatprep.subr.mxu0 0.0
    %628 = vmatpush1.msra.mxu0 0.0
    %629 = vmatprep.subr.mxu0 0.0
    %630 = vmatpush1.msra.mxu0 0.0
    %631 = vmatprep.subr.mxu0 0.0
    %632 = vmatpush1.msra.mxu0 0.0
    %633 = vmatprep.subr.mxu0 0.0
    %634 = vmatpush1.msra.mxu0 0.0
    %635 = vmatprep.subr.mxu0 0.0
    %636 = vmatpush1.msra.mxu0 0.0
    %637 = vmatprep.subr.mxu0 0.0
    %638 = vmatpush1.msra.mxu0 0.0
    %639 = vmatprep.subr.mxu0 0.0
    %640 = vmatpush1.msra.mxu0 0.0
    %641 = vmatprep.mubr.f32.mxu0 0.0
    %642 = vmatmul.mubr.f32.gmra.mrb[0].mxu0 %v575
    %v643 = vpop.f32.mrb[0].mxu0
    %v644 = vadd.f32 0.0, %v643
    %v645 = vpop.f32.mrb[0].mxu0
    %646 = vdwg.mxu0
    %647 = vrot.lane.b32.xlu0 %v309, 112
    %v648 = vpop.permute.xlu0 %647
    %649 = vrot.lane.b32.xlu0 %v309, 80
    %v650 = vpop.permute.xlu0 %649
    %v651 = vsel %vm320, %v648, 0
    %v653 = vsel %vm320, %v650, 0
    %655 = vmatprep.subr.mxu0 0.0
    %656 = vmatpush1.xpose.msra.mxu0 %v653
    %657 = vmatprep.subr.mxu0 0.0
    %658 = vmatpush1.xpose.msra.mxu0 0.0
    %659 = vmatprep.subr.mxu0 0.0
    %660 = vmatpush1.xpose.msra.mxu0 0.0
    %661 = vmatprep.subr.mxu0 0.0
    %662 = vmatpush1.xpose.msra.mxu0 0.0
    %663 = vmatprep.subr.mxu0 0.0
    %664 = vmatpush1.xpose.msra.mxu0 0.0
    %665 = vmatprep.subr.mxu0 0.0
    %666 = vmatpush1.xpose.msra.mxu0 0.0
    %667 = vmatprep.subr.mxu0 0.0
    %668 = vmatpush1.xpose.msra.mxu0 0.0
    %669 = vmatprep.subr.mxu0 0.0
    %670 = vmatpush1.xpose.msra.mxu0 0.0
    %671 = vmatprep.subr.mxu0 0.0
    %672 = vmatpush1.xpose.msra.mxu0 0.0
    %673 = vmatprep.subr.mxu0 0.0
    %674 = vmatpush1.xpose.msra.mxu0 0.0
    %675 = vmatprep.subr.mxu0 0.0
    %676 = vmatpush1.xpose.msra.mxu0 0.0
    %677 = vmatprep.subr.mxu0 0.0
    %678 = vmatpush1.xpose.msra.mxu0 0.0
    %679 = vmatprep.subr.mxu0 0.0
    %680 = vmatpush1.xpose.msra.mxu0 0.0
    %681 = vmatprep.subr.mxu0 0.0
    %682 = vmatpush1.xpose.msra.mxu0 0.0
    %683 = vmatprep.subr.mxu0 0.0
    %684 = vmatpush1.xpose.msra.mxu0 0.0
    %685 = vmatprep.subr.mxu0 0.0
    %686 = vmatpush1.xpose.msra.mxu0 0.0
    %687 = vmatprep.subr.mxu0 0.0
    %688 = vmatpush1.xpose.msra.mxu0 0.0
    %689 = vmatprep.subr.mxu0 0.0
    %690 = vmatpush1.xpose.msra.mxu0 0.0
    %691 = vmatprep.subr.mxu0 0.0
    %692 = vmatpush1.xpose.msra.mxu0 0.0
    %693 = vmatprep.subr.mxu0 0.0
    %694 = vmatpush1.xpose.msra.mxu0 0.0
    %695 = vmatprep.subr.mxu0 0.0
    %696 = vmatpush1.xpose.msra.mxu0 0.0
    %697 = vmatprep.subr.mxu0 0.0
    %698 = vmatpush1.xpose.msra.mxu0 0.0
    %699 = vmatprep.subr.mxu0 0.0
    %700 = vmatpush1.xpose.msra.mxu0 0.0
    %701 = vmatprep.subr.mxu0 0.0
    %702 = vmatpush1.xpose.msra.mxu0 0.0
    %703 = vmatprep.subr.mxu0 0.0
    %704 = vmatpush1.xpose.msra.mxu0 0.0
    %705 = vmatprep.subr.mxu0 0.0
    %706 = vmatpush1.xpose.msra.mxu0 0.0
    %707 = vmatprep.subr.mxu0 0.0
    %708 = vmatpush1.xpose.msra.mxu0 0.0
    %709 = vmatprep.subr.mxu0 0.0
    %710 = vmatpush1.xpose.msra.mxu0 0.0
    %711 = vmatprep.subr.mxu0 0.0
    %712 = vmatpush1.xpose.msra.mxu0 0.0
    %713 = vmatprep.subr.mxu0 0.0
    %714 = vmatpush1.xpose.msra.mxu0 0.0
    %715 = vmatprep.subr.mxu0 0.0
    %716 = vmatpush1.xpose.msra.mxu0 0.0
    %717 = vmatprep.subr.mxu0 0.0
    %718 = vmatpush1.xpose.msra.mxu0 0.0
    %719 = vmatprep.mubr.f32.mxu0 0.0
    %720 = vmatmul.mubr.f32.gmra.mrb[0].mxu0 %v651
    %v721 = vpop.f32.mrb[0].mxu0
    %v722 = vadd.f32 %v66, %v721
    %v723 = vpop.f32.mrb[0].mxu0
    %724 = vdwg.mxu0
    %v725 = vsel %vm320, %v722, -inf
    %726 = vmax.xlane.f32.xlu0 %v725
    %v727 = vpop.xlane.xlu0 %726
    %v728 = vsub.f32 %v722, %v727
    %v729 = vmul.f32 %v728, 1.442695
    %v730 = vpow.pop %v729
    %v731 = vsel %vm320, %v730, 0.0
    %732 = vadd.xlane.f32.xlu0 %v731
    %v733 = vpop.xlane.xlu0 %732
    %v734 = vrcp.pop %v733
    %v735 = vmul.f32 %v730, %v734
    %736 = vrot.lane.b32.xlu0 %v309, 48
    %v737 = vpop.permute.xlu0 %736
    %v740 = vsel %vm320, %v735, 0
    %742 = vmatprep.subr.mxu0 0.0
    %743 = vmatpush1.msra.mxu0 %v737
    %744 = vmatprep.subr.mxu0 0.0
    %745 = vmatpush1.msra.mxu0 0.0
    %746 = vmatprep.subr.mxu0 0.0
    %747 = vmatpush1.msra.mxu0 0.0
    %748 = vmatprep.subr.mxu0 0.0
    %749 = vmatpush1.msra.mxu0 0.0
    %750 = vmatprep.subr.mxu0 0.0
    %751 = vmatpush1.msra.mxu0 0.0
    %752 = vmatprep.subr.mxu0 0.0
    %753 = vmatpush1.msra.mxu0 0.0
    %754 = vmatprep.subr.mxu0 0.0
    %755 = vmatpush1.msra.mxu0 0.0
    %756 = vmatprep.subr.mxu0 0.0
    %757 = vmatpush1.msra.mxu0 0.0
    %758 = vmatprep.subr.mxu0 0.0
    %759 = vmatpush1.msra.mxu0 0.0
    %760 = vmatprep.subr.mxu0 0.0
    %761 = vmatpush1.msra.mxu0 0.0
    %762 = vmatprep.subr.mxu0 0.0
    %763 = vmatpush1.msra.mxu0 0.0
    %764 = vmatprep.subr.mxu0 0.0
    %765 = vmatpush1.msra.mxu0 0.0
    %766 = vmatprep.subr.mxu0 0.0
    %767 = vmatpush1.msra.mxu0 0.0
    %768 = vmatprep.subr.mxu0 0.0
    %769 = vmatpush1.msra.mxu0 0.0
    %770 = vmatprep.subr.mxu0 0.0
    %771 = vmatpush1.msra.mxu0 0.0
    %772 = vmatprep.subr.mxu0 0.0
    %773 = vmatpush1.msra.mxu0 0.0
    %774 = vmatprep.subr.mxu0 0.0
    %775 = vmatpush1.msra.mxu0 0.0
    %776 = vmatprep.subr.mxu0 0.0
    %777 = vmatpush1.msra.mxu0 0.0
    %778 = vmatprep.subr.mxu0 0.0
    %779 = vmatpush1.msra.mxu0 0.0
    %780 = vmatprep.subr.mxu0 0.0
    %781 = vmatpush1.msra.mxu0 0.0
    %782 = vmatprep.subr.mxu0 0.0
    %783 = vmatpush1.msra.mxu0 0.0
    %784 = vmatprep.subr.mxu0 0.0
    %785 = vmatpush1.msra.mxu0 0.0
    %786 = vmatprep.subr.mxu0 0.0
    %787 = vmatpush1.msra.mxu0 0.0
    %788 = vmatprep.subr.mxu0 0.0
    %789 = vmatpush1.msra.mxu0 0.0
    %790 = vmatprep.subr.mxu0 0.0
    %791 = vmatpush1.msra.mxu0 0.0
    %792 = vmatprep.subr.mxu0 0.0
    %793 = vmatpush1.msra.mxu0 0.0
    %794 = vmatprep.subr.mxu0 0.0
    %795 = vmatpush1.msra.mxu0 0.0
    %796 = vmatprep.subr.mxu0 0.0
    %797 = vmatpush1.msra.mxu0 0.0
    %798 = vmatprep.subr.mxu0 0.0
    %799 = vmatpush1.msra.mxu0 0.0
    %800 = vmatprep.subr.mxu0 0.0
    %801 = vmatpush1.msra.mxu0 0.0
    %802 = vmatprep.subr.mxu0 0.0
    %803 = vmatpush1.msra.mxu0 0.0
    %804 = vmatprep.subr.mxu0 0.0
    %805 = vmatpush1.msra.mxu0 0.0
    %806 = vmatprep.mubr.f32.mxu0 0.0
    %807 = vmatmul.mubr.f32.gmra.mrb[0].mxu0 %v740
    %v808 = vpop.f32.mrb[0].mxu0
    %v809 = vadd.f32 0.0, %v808
    %v810 = vpop.f32.mrb[0].mxu0
    %811 = vdwg.mxu0
    %812 = vrot.lane.b32.xlu0 %v309, 104
    %v813 = vpop.permute.xlu0 %812
    %814 = vrot.lane.b32.xlu0 %v309, 72
    %v815 = vpop.permute.xlu0 %814
    %v816 = vsel %vm320, %v813, 0
    %v818 = vsel %vm320, %v815, 0
    %820 = vmatprep.subr.mxu0 0.0
    %821 = vmatpush1.xpose.msra.mxu0 %v818
    %822 = vmatprep.subr.mxu0 0.0
    %823 = vmatpush1.xpose.msra.mxu0 0.0
    %824 = vmatprep.subr.mxu0 0.0
    %825 = vmatpush1.xpose.msra.mxu0 0.0
    %826 = vmatprep.subr.mxu0 0.0
    %827 = vmatpush1.xpose.msra.mxu0 0.0
    %828 = vmatprep.subr.mxu0 0.0
    %829 = vmatpush1.xpose.msra.mxu0 0.0
    %830 = vmatprep.subr.mxu0 0.0
    %831 = vmatpush1.xpose.msra.mxu0 0.0
    %832 = vmatprep.subr.mxu0 0.0
    %833 = vmatpush1.xpose.msra.mxu0 0.0
    %834 = vmatprep.subr.mxu0 0.0
    %835 = vmatpush1.xpose.msra.mxu0 0.0
    %836 = vmatprep.subr.mxu0 0.0
    %837 = vmatpush1.xpose.msra.mxu0 0.0
    %838 = vmatprep.subr.mxu0 0.0
    %839 = vmatpush1.xpose.msra.mxu0 0.0
    %840 = vmatprep.subr.mxu0 0.0
    %841 = vmatpush1.xpose.msra.mxu0 0.0
    %842 = vmatprep.subr.mxu0 0.0
    %843 = vmatpush1.xpose.msra.mxu0 0.0
    %844 = vmatprep.subr.mxu0 0.0
    %845 = vmatpush1.xpose.msra.mxu0 0.0
    %846 = vmatprep.subr.mxu0 0.0
    %847 = vmatpush1.xpose.msra.mxu0 0.0
    %848 = vmatprep.subr.mxu0 0.0
    %849 = vmatpush1.xpose.msra.mxu0 0.0
    %850 = vmatprep.subr.mxu0 0.0
    %851 = vmatpush1.xpose.msra.mxu0 0.0
    %852 = vmatprep.subr.mxu0 0.0
    %853 = vmatpush1.xpose.msra.mxu0 0.0
    %854 = vmatprep.subr.mxu0 0.0
    %855 = vmatpush1.xpose.msra.mxu0 0.0
    %856 = vmatprep.subr.mxu0 0.0
    %857 = vmatpush1.xpose.msra.mxu0 0.0
    %858 = vmatprep.subr.mxu0 0.0
    %859 = vmatpush1.xpose.msra.mxu0 0.0
    %860 = vmatprep.subr.mxu0 0.0
    %861 = vmatpush1.xpose.msra.mxu0 0.0
    %862 = vmatprep.subr.mxu0 0.0
    %863 = vmatpush1.xpose.msra.mxu0 0.0
    %864 = vmatprep.subr.mxu0 0.0
    %865 = vmatpush1.xpose.msra.mxu0 0.0
    %866 = vmatprep.subr.mxu0 0.0
    %867 = vmatpush1.xpose.msra.mxu0 0.0
    %868 = vmatprep.subr.mxu0 0.0
    %869 = vmatpush1.xpose.msra.mxu0 0.0
    %870 = vmatprep.subr.mxu0 0.0
    %871 = vmatpush1.xpose.msra.mxu0 0.0
    %872 = vmatprep.subr.mxu0 0.0
    %873 = vmatpush1.xpose.msra.mxu0 0.0
    %874 = vmatprep.subr.mxu0 0.0
    %875 = vmatpush1.xpose.msra.mxu0 0.0
    %876 = vmatprep.subr.mxu0 0.0
    %877 = vmatpush1.xpose.msra.mxu0 0.0
    %878 = vmatprep.subr.mxu0 0.0
    %879 = vmatpush1.xpose.msra.mxu0 0.0
    %880 = vmatprep.subr.mxu0 0.0
    %881 = vmatpush1.xpose.msra.mxu0 0.0
    %882 = vmatprep.subr.mxu0 0.0
    %883 = vmatpush1.xpose.msra.mxu0 0.0
    %884 = vmatprep.mubr.f32.mxu0 0.0
    %885 = vmatmul.mubr.f32.gmra.mrb[0].mxu0 %v816
    %v886 = vpop.f32.mrb[0].mxu0
    %v887 = vadd.f32 %v66, %v886
    %v888 = vpop.f32.mrb[0].mxu0
    %889 = vdwg.mxu0
    %v890 = vsel %vm320, %v887, -inf
    %891 = vmax.xlane.f32.xlu0 %v890
    %v892 = vpop.xlane.xlu0 %891
    %v893 = vsub.f32 %v887, %v892
    %v894 = vmul.f32 %v893, 1.442695
    %v895 = vpow.pop %v894
    %v896 = vsel %vm320, %v895, 0.0
    %897 = vadd.xlane.f32.xlu0 %v896
    %v898 = vpop.xlane.xlu0 %897
    %v899 = vrcp.pop %v898
    %v900 = vmul.f32 %v895, %v899
    %901 = vrot.lane.b32.xlu0 %v309, 40
    %v902 = vpop.permute.xlu0 %901
    %v905 = vsel %vm320, %v900, 0
    %907 = vmatprep.subr.mxu0 0.0
    %908 = vmatpush1.msra.mxu0 %v902
    %909 = vmatprep.subr.mxu0 0.0
    %910 = vmatpush1.msra.mxu0 0.0
    %911 = vmatprep.subr.mxu0 0.0
    %912 = vmatpush1.msra.mxu0 0.0
    %913 = vmatprep.subr.mxu0 0.0
    %914 = vmatpush1.msra.mxu0 0.0
    %915 = vmatprep.subr.mxu0 0.0
    %916 = vmatpush1.msra.mxu0 0.0
    %917 = vmatprep.subr.mxu0 0.0
    %918 = vmatpush1.msra.mxu0 0.0
    %919 = vmatprep.subr.mxu0 0.0
    %920 = vmatpush1.msra.mxu0 0.0
    %921 = vmatprep.subr.mxu0 0.0
    %922 = vmatpush1.msra.mxu0 0.0
    %923 = vmatprep.subr.mxu0 0.0
    %924 = vmatpush1.msra.mxu0 0.0
    %925 = vmatprep.subr.mxu0 0.0
    %926 = vmatpush1.msra.mxu0 0.0
    %927 = vmatprep.subr.mxu0 0.0
    %928 = vmatpush1.msra.mxu0 0.0
    %929 = vmatprep.subr.mxu0 0.0
    %930 = vmatpush1.msra.mxu0 0.0
    %931 = vmatprep.subr.mxu0 0.0
    %932 = vmatpush1.msra.mxu0 0.0
    %933 = vmatprep.subr.mxu0 0.0
    %934 = vmatpush1.msra.mxu0 0.0
    %935 = vmatprep.subr.mxu0 0.0
    %936 = vmatpush1.msra.mxu0 0.0
    %937 = vmatprep.subr.mxu0 0.0
    %938 = vmatpush1.msra.mxu0 0.0
    %939 = vmatprep.subr.mxu0 0.0
    %940 = vmatpush1.msra.mxu0 0.0
    %941 = vmatprep.subr.mxu0 0.0
    %942 = vmatpush1.msra.mxu0 0.0
    %943 = vmatprep.subr.mxu0 0.0
    %944 = vmatpush1.msra.mxu0 0.0
    %945 = vmatprep.subr.mxu0 0.0
    %946 = vmatpush1.msra.mxu0 0.0
    %947 = vmatprep.subr.mxu0 0.0
    %948 = vmatpush1.msra.mxu0 0.0
    %949 = vmatprep.subr.mxu0 0.0
    %950 = vmatpush1.msra.mxu0 0.0
    %951 = vmatprep.subr.mxu0 0.0
    %952 = vmatpush1.msra.mxu0 0.0
    %953 = vmatprep.subr.mxu0 0.0
    %954 = vmatpush1.msra.mxu0 0.0
    %955 = vmatprep.subr.mxu0 0.0
    %956 = vmatpush1.msra.mxu0 0.0
    %957 = vmatprep.subr.mxu0 0.0
    %958 = vmatpush1.msra.mxu0 0.0
    %959 = vmatprep.subr.mxu0 0.0
    %960 = vmatpush1.msra.mxu0 0.0
    %961 = vmatprep.subr.mxu0 0.0
    %962 = vmatpush1.msra.mxu0 0.0
    %963 = vmatprep.subr.mxu0 0.0
    %964 = vmatpush1.msra.mxu0 0.0
    %965 = vmatprep.subr.mxu0 0.0
    %966 = vmatpush1.msra.mxu0 0.0
    %967 = vmatprep.subr.mxu0 0.0
    %968 = vmatpush1.msra.mxu0 0.0
    %969 = vmatprep.subr.mxu0 0.0
    %970 = vmatpush1.msra.mxu0 0.0
    %971 = vmatprep.mubr.f32.mxu0 0.0
    %972 = vmatmul.mubr.f32.gmra.mrb[0].mxu0 %v905
    %v973 = vpop.f32.mrb[0].mxu0
    %v974 = vadd.f32 0.0, %v973
    %v975 = vpop.f32.mrb[0].mxu0
    %976 = vdwg.mxu0
    %978 = vrot.lane.b32.xlu0 %v644, 8
    %v979 = vpop.permute.xlu0 %978
    %982 = vrot.lane.b32.xlu0 %v809, 16
    %v983 = vpop.permute.xlu0 %982
    %986 = vrot.lane.b32.xlu0 %v974, 24
    %v987 = vpop.permute.xlu0 %986
    %v989 = vsel %vm320, %v479, %v979
    %vm990 = vcmask 130048
    %v991 = vsel %vm990, %v989, %v983
    %vm992 = vcmask 195584
    %v993 = vsel %vm992, %v991, %v987
    %995 = vrot.lane.b32.xlu0 %v314, 96
    %v996 = vpop.permute.xlu0 %995
    %v997 = vsel %vm320, %v314, 0
    %v999 = vsel %vm320, %v996, 0
    %1001 = vmatprep.subr.mxu0 0.0
    %1002 = vmatpush1.xpose.msra.mxu0 %v999
    %1003 = vmatprep.subr.mxu0 0.0
    %1004 = vmatpush1.xpose.msra.mxu0 0.0
    %1005 = vmatprep.subr.mxu0 0.0
    %1006 = vmatpush1.xpose.msra.mxu0 0.0
    %1007 = vmatprep.subr.mxu0 0.0
    %1008 = vmatpush1.xpose.msra.mxu0 0.0
    %1009 = vmatprep.subr.mxu0 0.0
    %1010 = vmatpush1.xpose.msra.mxu0 0.0
    %1011 = vmatprep.subr.mxu0 0.0
    %1012 = vmatpush1.xpose.msra.mxu0 0.0
    %1013 = vmatprep.subr.mxu0 0.0
    %1014 = vmatpush1.xpose.msra.mxu0 0.0
    %1015 = vmatprep.subr.mxu0 0.0
    %1016 = vmatpush1.xpose.msra.mxu0 0.0
    %1017 = vmatprep.subr.mxu0 0.0
    %1018 = vmatpush1.xpose.msra.mxu0 0.0
    %1019 = vmatprep.subr.mxu0 0.0
    %1020 = vmatpush1.xpose.msra.mxu0 0.0
    %1021 = vmatprep.subr.mxu0 0.0
    %1022 = vmatpush1.xpose.msra.mxu0 0.0
    %1023 = vmatprep.subr.mxu0 0.0
    %1024 = vmatpush1.xpose.msra.mxu0 0.0
    %1025 = vmatprep.subr.mxu0 0.0
    %1026 = vmatpush1.xpose.msra.mxu0 0.0
    %1027 = vmatprep.subr.mxu0 0.0
    %1028 = vmatpush1.xpose.msra.mxu0 0.0
    %1029 = vmatprep.subr.mxu0 0.0
    %1030 = vmatpush1.xpose.msra.mxu0 0.0
    %1031 = vmatprep.subr.mxu0 0.0
    %1032 = vmatpush1.xpose.msra.mxu0 0.0
    %1033 = vmatprep.subr.mxu0 0.0
    %1034 = vmatpush1.xpose.msra.mxu0 0.0
    %1035 = vmatprep.subr.mxu0 0.0
    %1036 = vmatpush1.xpose.msra.mxu0 0.0
    %1037 = vmatprep.subr.mxu0 0.0
    %1038 = vmatpush1.xpose.msra.mxu0 0.0
    %1039 = vmatprep.subr.mxu0 0.0
    %1040 = vmatpush1.xpose.msra.mxu0 0.0
    %1041 = vmatprep.subr.mxu0 0.0
    %1042 = vmatpush1.xpose.msra.mxu0 0.0
    %1043 = vmatprep.subr.mxu0 0.0
    %1044 = vmatpush1.xpose.msra.mxu0 0.0
    %1045 = vmatprep.subr.mxu0 0.0
    %1046 = vmatpush1.xpose.msra.mxu0 0.0
    %1047 = vmatprep.subr.mxu0 0.0
    %1048 = vmatpush1.xpose.msra.mxu0 0.0
    %1049 = vmatprep.subr.mxu0 0.0
    %1050 = vmatpush1.xpose.msra.mxu0 0.0
    %1051 = vmatprep.subr.mxu0 0.0
    %1052 = vmatpush1.xpose.msra.mxu0 0.0
    %1053 = vmatprep.subr.mxu0 0.0
    %1054 = vmatpush1.xpose.msra.mxu0 0.0
    %1055 = vmatprep.subr.mxu0 0.0
    %1056 = vmatpush1.xpose.msra.mxu0 0.0
    %1057 = vmatprep.subr.mxu0 0.0
    %1058 = vmatpush1.xpose.msra.mxu0 0.0
    %1059 = vmatprep.subr.mxu0 0.0
    %1060 = vmatpush1.xpose.msra.mxu0 0.0
    %1061 = vmatprep.subr.mxu0 0.0
    %1062 = vmatpush1.xpose.msra.mxu0 0.0
    %1063 = vmatprep.subr.mxu0 0.0
    %1064 = vmatpush1.xpose.msra.mxu0 0.0
    %1065 = vmatprep.mubr.f32.mxu0 0.0
    %1066 = vmatmul.mubr.f32.gmra.mrb[0].mxu0 %v997
    %v1067 = vpop.f32.mrb[0].mxu0
    %v1068 = vadd.f32 %v66, %v1067
    %v1069 = vpop.f32.mrb[0].mxu0
    %1070 = vdwg.mxu0
    %v1071 = vsel %vm320, %v1068, -inf
    %1072 = vmax.xlane.f32.xlu0 %v1071
    %v1073 = vpop.xlane.xlu0 %1072
    %v1074 = vsub.f32 %v1068, %v1073
    %v1075 = vmul.f32 %v1074, 1.442695
    %v1076 = vpow.pop %v1075
    %v1077 = vsel %vm320, %v1076, 0.0
    %1078 = vadd.xlane.f32.xlu0 %v1077
    %v1079 = vpop.xlane.xlu0 %1078
    %v1080 = vrcp.pop %v1079
    %v1081 = vmul.f32 %v1076, %v1080
    %1082 = vrot.lane.b32.xlu0 %v314, 64
    %v1083 = vpop.permute.xlu0 %1082
    %v1086 = vsel %vm320, %v1081, 0
    %1088 = vmatprep.subr.mxu0 0.0
    %1089 = vmatpush1.msra.mxu0 %v1083
    %1090 = vmatprep.subr.mxu0 0.0
    %1091 = vmatpush1.msra.mxu0 0.0
    %1092 = vmatprep.subr.mxu0 0.0
    %1093 = vmatpush1.msra.mxu0 0.0
    %1094 = vmatprep.subr.mxu0 0.0
    %1095 = vmatpush1.msra.mxu0 0.0
    %1096 = vmatprep.subr.mxu0 0.0
    %1097 = vmatpush1.msra.mxu0 0.0
    %1098 = vmatprep.subr.mxu0 0.0
    %1099 = vmatpush1.msra.mxu0 0.0
    %1100 = vmatprep.subr.mxu0 0.0
    %1101 = vmatpush1.msra.mxu0 0.0
    %1102 = vmatprep.subr.mxu0 0.0
    %1103 = vmatpush1.msra.mxu0 0.0
    %1104 = vmatprep.subr.mxu0 0.0
    %1105 = vmatpush1.msra.mxu0 0.0
    %1106 = vmatprep.subr.mxu0 0.0
    %1107 = vmatpush1.msra.mxu0 0.0
    %1108 = vmatprep.subr.mxu0 0.0
    %1109 = vmatpush1.msra.mxu0 0.0
    %1110 = vmatprep.subr.mxu0 0.0
    %1111 = vmatpush1.msra.mxu0 0.0
    %1112 = vmatprep.subr.mxu0 0.0
    %1113 = vmatpush1.msra.mxu0 0.0
    %1114 = vmatprep.subr.mxu0 0.0
    %1115 = vmatpush1.msra.mxu0 0.0
    %1116 = vmatprep.subr.mxu0 0.0
    %1117 = vmatpush1.msra.mxu0 0.0
    %1118 = vmatprep.subr.mxu0 0.0
    %1119 = vmatpush1.msra.mxu0 0.0
    %1120 = vmatprep.subr.mxu0 0.0
    %1121 = vmatpush1.msra.mxu0 0.0
    %1122 = vmatprep.subr.mxu0 0.0
    %1123 = vmatpush1.msra.mxu0 0.0
    %1124 = vmatprep.subr.mxu0 0.0
    %1125 = vmatpush1.msra.mxu0 0.0
    %1126 = vmatprep.subr.mxu0 0.0
    %1127 = vmatpush1.msra.mxu0 0.0
    %1128 = vmatprep.subr.mxu0 0.0
    %1129 = vmatpush1.msra.mxu0 0.0
    %1130 = vmatprep.subr.mxu0 0.0
    %1131 = vmatpush1.msra.mxu0 0.0
    %1132 = vmatprep.subr.mxu0 0.0
    %1133 = vmatpush1.msra.mxu0 0.0
    %1134 = vmatprep.subr.mxu0 0.0
    %1135 = vmatpush1.msra.mxu0 0.0
    %1136 = vmatprep.subr.mxu0 0.0
    %1137 = vmatpush1.msra.mxu0 0.0
    %1138 = vmatprep.subr.mxu0 0.0
    %1139 = vmatpush1.msra.mxu0 0.0
    %1140 = vmatprep.subr.mxu0 0.0
    %1141 = vmatpush1.msra.mxu0 0.0
    %1142 = vmatprep.subr.mxu0 0.0
    %1143 = vmatpush1.msra.mxu0 0.0
    %1144 = vmatprep.subr.mxu0 0.0
    %1145 = vmatpush1.msra.mxu0 0.0
    %1146 = vmatprep.subr.mxu0 0.0
    %1147 = vmatpush1.msra.mxu0 0.0
    %1148 = vmatprep.subr.mxu0 0.0
    %1149 = vmatpush1.msra.mxu0 0.0
    %1150 = vmatprep.subr.mxu0 0.0
    %1151 = vmatpush1.msra.mxu0 0.0
    %1152 = vmatprep.mubr.f32.mxu0 0.0
    %1153 = vmatmul.mubr.f32.gmra.mrb[0].mxu0 %v1086
    %v1154 = vpop.f32.mrb[0].mxu0
    %v1155 = vadd.f32 0.0, %v1154
    %v1156 = vpop.f32.mrb[0].mxu0
    %1157 = vdwg.mxu0
    %1158 = vrot.lane.b32.xlu0 %v314, 120
    %v1159 = vpop.permute.xlu0 %1158
    %1160 = vrot.lane.b32.xlu0 %v314, 88
    %v1161 = vpop.permute.xlu0 %1160
    %v1162 = vsel %vm320, %v1159, 0
    %v1164 = vsel %vm320, %v1161, 0
    %1166 = vmatprep.subr.mxu0 0.0
    %1167 = vmatpush1.xpose.msra.mxu0 %v1164
    %1168 = vmatprep.subr.mxu0 0.0
    %1169 = vmatpush1.xpose.msra.mxu0 0.0
    %1170 = vmatprep.subr.mxu0 0.0
    %1171 = vmatpush1.xpose.msra.mxu0 0.0
    %1172 = vmatprep.subr.mxu0 0.0
    %1173 = vmatpush1.xpose.msra.mxu0 0.0
    %1174 = vmatprep.subr.mxu0 0.0
    %1175 = vmatpush1.xpose.msra.mxu0 0.0
    %1176 = vmatprep.subr.mxu0 0.0
    %1177 = vmatpush1.xpose.msra.mxu0 0.0
    %1178 = vmatprep.subr.mxu0 0.0
    %1179 = vmatpush1.xpose.msra.mxu0 0.0
    %1180 = vmatprep.subr.mxu0 0.0
    %1181 = vmatpush1.xpose.msra.mxu0 0.0
    %1182 = vmatprep.subr.mxu0 0.0
    %1183 = vmatpush1.xpose.msra.mxu0 0.0
    %1184 = vmatprep.subr.mxu0 0.0
    %1185 = vmatpush1.xpose.msra.mxu0 0.0
    %1186 = vmatprep.subr.mxu0 0.0
    %1187 = vmatpush1.xpose.msra.mxu0 0.0
    %1188 = vmatprep.subr.mxu0 0.0
    %1189 = vmatpush1.xpose.msra.mxu0 0.0
    %1190 = vmatprep.subr.mxu0 0.0
    %1191 = vmatpush1.xpose.msra.mxu0 0.0
    %1192 = vmatprep.subr.mxu0 0.0
    %1193 = vmatpush1.xpose.msra.mxu0 0.0
    %1194 = vmatprep.subr.mxu0 0.0
    %1195 = vmatpush1.xpose.msra.mxu0 0.0
    %1196 = vmatprep.subr.mxu0 0.0
    %1197 = vmatpush1.xpose.msra.mxu0 0.0
    %1198 = vmatprep.subr.mxu0 0.0
    %1199 = vmatpush1.xpose.msra.mxu0 0.0
    %1200 = vmatprep.subr.mxu0 0.0
    %1201 = vmatpush1.xpose.msra.mxu0 0.0
    %1202 = vmatprep.subr.mxu0 0.0
    %1203 = vmatpush1.xpose.msra.mxu0 0.0
    %1204 = vmatprep.subr.mxu0 0.0
    %1205 = vmatpush1.xpose.msra.mxu0 0.0
    %1206 = vmatprep.subr.mxu0 0.0
    %1207 = vmatpush1.xpose.msra.mxu0 0.0
    %1208 = vmatprep.subr.mxu0 0.0
    %1209 = vmatpush1.xpose.msra.mxu0 0.0
    %1210 = vmatprep.subr.mxu0 0.0
    %1211 = vmatpush1.xpose.msra.mxu0 0.0
    %1212 = vmatprep.subr.mxu0 0.0
    %1213 = vmatpush1.xpose.msra.mxu0 0.0
    %1214 = vmatprep.subr.mxu0 0.0
    %1215 = vmatpush1.xpose.msra.mxu0 0.0
    %1216 = vmatprep.subr.mxu0 0.0
    %1217 = vmatpush1.xpose.msra.mxu0 0.0
    %1218 = vmatprep.subr.mxu0 0.0
    %1219 = vmatpush1.xpose.msra.mxu0 0.0
    %1220 = vmatprep.subr.mxu0 0.0
    %1221 = vmatpush1.xpose.msra.mxu0 0.0
    %1222 = vmatprep.subr.mxu0 0.0
    %1223 = vmatpush1.xpose.msra.mxu0 0.0
    %1224 = vmatprep.subr.mxu0 0.0
    %1225 = vmatpush1.xpose.msra.mxu0 0.0
    %1226 = vmatprep.subr.mxu0 0.0
    %1227 = vmatpush1.xpose.msra.mxu0 0.0
    %1228 = vmatprep.subr.mxu0 0.0
    %1229 = vmatpush1.xpose.msra.mxu0 0.0
    %1230 = vmatprep.mubr.f32.mxu0 0.0
    %1231 = vmatmul.mubr.f32.gmra.mrb[0].mxu0 %v1162
    %v1232 = vpop.f32.mrb[0].mxu0
    %v1233 = vadd.f32 %v66, %v1232
    %v1234 = vpop.f32.mrb[0].mxu0
    %1235 = vdwg.mxu0
    %v1236 = vsel %vm320, %v1233, -inf
    %1237 = vmax.xlane.f32.xlu0 %v1236
    %v1238 = vpop.xlane.xlu0 %1237
    %v1239 = vsub.f32 %v1233, %v1238
    %v1240 = vmul.f32 %v1239, 1.442695
    %v1241 = vpow.pop %v1240
    %v1242 = vsel %vm320, %v1241, 0.0
    %1243 = vadd.xlane.f32.xlu0 %v1242
    %v1244 = vpop.xlane.xlu0 %1243
    %v1245 = vrcp.pop %v1244
    %v1246 = vmul.f32 %v1241, %v1245
    %1247 = vrot.lane.b32.xlu0 %v314, 56
    %v1248 = vpop.permute.xlu0 %1247
    %v1251 = vsel %vm320, %v1246, 0
    %1253 = vmatprep.subr.mxu0 0.0
    %1254 = vmatpush1.msra.mxu0 %v1248
    %1255 = vmatprep.subr.mxu0 0.0
    %1256 = vmatpush1.msra.mxu0 0.0
    %1257 = vmatprep.subr.mxu0 0.0
    %1258 = vmatpush1.msra.mxu0 0.0
    %1259 = vmatprep.subr.mxu0 0.0
    %1260 = vmatpush1.msra.mxu0 0.0
    %1261 = vmatprep.subr.mxu0 0.0
    %1262 = vmatpush1.msra.mxu0 0.0
    %1263 = vmatprep.subr.mxu0 0.0
    %1264 = vmatpush1.msra.mxu0 0.0
    %1265 = vmatprep.subr.mxu0 0.0
    %1266 = vmatpush1.msra.mxu0 0.0
    %1267 = vmatprep.subr.mxu0 0.0
    %1268 = vmatpush1.msra.mxu0 0.0
    %1269 = vmatprep.subr.mxu0 0.0
    %1270 = vmatpush1.msra.mxu0 0.0
    %1271 = vmatprep.subr.mxu0 0.0
    %1272 = vmatpush1.msra.mxu0 0.0
    %1273 = vmatprep.subr.mxu0 0.0
    %1274 = vmatpush1.msra.mxu0 0.0
    %1275 = vmatprep.subr.mxu0 0.0
    %1276 = vmatpush1.msra.mxu0 0.0
    %1277 = vmatprep.subr.mxu0 0.0
    %1278 = vmatpush1.msra.mxu0 0.0
    %1279 = vmatprep.subr.mxu0 0.0
    %1280 = vmatpush1.msra.mxu0 0.0
    %1281 = vmatprep.subr.mxu0 0.0
    %1282 = vmatpush1.msra.mxu0 0.0
    %1283 = vmatprep.subr.mxu0 0.0
    %1284 = vmatpush1.msra.mxu0 0.0
    %1285 = vmatprep.subr.mxu0 0.0
    %1286 = vmatpush1.msra.mxu0 0.0
    %1287 = vmatprep.subr.mxu0 0.0
    %1288 = vmatpush1.msra.mxu0 0.0
    %1289 = vmatprep.subr.mxu0 0.0
    %1290 = vmatpush1.msra.mxu0 0.0
    %1291 = vmatprep.subr.mxu0 0.0
    %1292 = vmatpush1.msra.mxu0 0.0
    %1293 = vmatprep.subr.mxu0 0.0
    %1294 = vmatpush1.msra.mxu0 0.0
    %1295 = vmatprep.subr.mxu0 0.0
    %1296 = vmatpush1.msra.mxu0 0.0
    %1297 = vmatprep.subr.mxu0 0.0
    %1298 = vmatpush1.msra.mxu0 0.0
    %1299 = vmatprep.subr.mxu0 0.0
    %1300 = vmatpush1.msra.mxu0 0.0
    %1301 = vmatprep.subr.mxu0 0.0
    %1302 = vmatpush1.msra.mxu0 0.0
    %1303 = vmatprep.subr.mxu0 0.0
    %1304 = vmatpush1.msra.mxu0 0.0
    %1305 = vmatprep.subr.mxu0 0.0
    %1306 = vmatpush1.msra.mxu0 0.0
    %1307 = vmatprep.subr.mxu0 0.0
    %1308 = vmatpush1.msra.mxu0 0.0
    %1309 = vmatprep.subr.mxu0 0.0
    %1310 = vmatpush1.msra.mxu0 0.0
    %1311 = vmatprep.subr.mxu0 0.0
    %1312 = vmatpush1.msra.mxu0 0.0
    %1313 = vmatprep.subr.mxu0 0.0
    %1314 = vmatpush1.msra.mxu0 0.0
    %1315 = vmatprep.subr.mxu0 0.0
    %1316 = vmatpush1.msra.mxu0 0.0
    %1317 = vmatprep.mubr.f32.mxu0 0.0
    %1318 = vmatmul.mubr.f32.gmra.mrb[0].mxu0 %v1251
    %v1319 = vpop.f32.mrb[0].mxu0
    %v1320 = vadd.f32 0.0, %v1319
    %v1321 = vpop.f32.mrb[0].mxu0
    %1322 = vdwg.mxu0
    %1323 = vrot.lane.b32.xlu0 %v314, 112
    %v1324 = vpop.permute.xlu0 %1323
    %1325 = vrot.lane.b32.xlu0 %v314, 80
    %v1326 = vpop.permute.xlu0 %1325
    %v1327 = vsel %vm320, %v1324, 0
    %v1329 = vsel %vm320, %v1326, 0
    %1331 = vmatprep.subr.mxu0 0.0
    %1332 = vmatpush1.xpose.msra.mxu0 %v1329
    %1333 = vmatprep.subr.mxu0 0.0
    %1334 = vmatpush1.xpose.msra.mxu0 0.0
    %1335 = vmatprep.subr.mxu0 0.0
    %1336 = vmatpush1.xpose.msra.mxu0 0.0
    %1337 = vmatprep.subr.mxu0 0.0
    %1338 = vmatpush1.xpose.msra.mxu0 0.0
    %1339 = vmatprep.subr.mxu0 0.0
    %1340 = vmatpush1.xpose.msra.mxu0 0.0
    %1341 = vmatprep.subr.mxu0 0.0
    %1342 = vmatpush1.xpose.msra.mxu0 0.0
    %1343 = vmatprep.subr.mxu0 0.0
    %1344 = vmatpush1.xpose.msra.mxu0 0.0
    %1345 = vmatprep.subr.mxu0 0.0
    %1346 = vmatpush1.xpose.msra.mxu0 0.0
    %1347 = vmatprep.subr.mxu0 0.0
    %1348 = vmatpush1.xpose.msra.mxu0 0.0
    %1349 = vmatprep.subr.mxu0 0.0
    %1350 = vmatpush1.xpose.msra.mxu0 0.0
    %1351 = vmatprep.subr.mxu0 0.0
    %1352 = vmatpush1.xpose.msra.mxu0 0.0
    %1353 = vmatprep.subr.mxu0 0.0
    %1354 = vmatpush1.xpose.msra.mxu0 0.0
    %1355 = vmatprep.subr.mxu0 0.0
    %1356 = vmatpush1.xpose.msra.mxu0 0.0
    %1357 = vmatprep.subr.mxu0 0.0
    %1358 = vmatpush1.xpose.msra.mxu0 0.0
    %1359 = vmatprep.subr.mxu0 0.0
    %1360 = vmatpush1.xpose.msra.mxu0 0.0
    %1361 = vmatprep.subr.mxu0 0.0
    %1362 = vmatpush1.xpose.msra.mxu0 0.0
    %1363 = vmatprep.subr.mxu0 0.0
    %1364 = vmatpush1.xpose.msra.mxu0 0.0
    %1365 = vmatprep.subr.mxu0 0.0
    %1366 = vmatpush1.xpose.msra.mxu0 0.0
    %1367 = vmatprep.subr.mxu0 0.0
    %1368 = vmatpush1.xpose.msra.mxu0 0.0
    %1369 = vmatprep.subr.mxu0 0.0
    %1370 = vmatpush1.xpose.msra.mxu0 0.0
    %1371 = vmatprep.subr.mxu0 0.0
    %1372 = vmatpush1.xpose.msra.mxu0 0.0
    %1373 = vmatprep.subr.mxu0 0.0
    %1374 = vmatpush1.xpose.msra.mxu0 0.0
    %1375 = vmatprep.subr.mxu0 0.0
    %1376 = vmatpush1.xpose.msra.mxu0 0.0
    %1377 = vmatprep.subr.mxu0 0.0
    %1378 = vmatpush1.xpose.msra.mxu0 0.0
    %1379 = vmatprep.subr.mxu0 0.0
    %1380 = vmatpush1.xpose.msra.mxu0 0.0
    %1381 = vmatprep.subr.mxu0 0.0
    %1382 = vmatpush1.xpose.msra.mxu0 0.0
    %1383 = vmatprep.subr.mxu0 0.0
    %1384 = vmatpush1.xpose.msra.mxu0 0.0
    %1385 = vmatprep.subr.mxu0 0.0
    %1386 = vmatpush1.xpose.msra.mxu0 0.0
    %1387 = vmatprep.subr.mxu0 0.0
    %1388 = vmatpush1.xpose.msra.mxu0 0.0
    %1389 = vmatprep.subr.mxu0 0.0
    %1390 = vmatpush1.xpose.msra.mxu0 0.0
    %1391 = vmatprep.subr.mxu0 0.0
    %1392 = vmatpush1.xpose.msra.mxu0 0.0
    %1393 = vmatprep.subr.mxu0 0.0
    %1394 = vmatpush1.xpose.msra.mxu0 0.0
    %1395 = vmatprep.mubr.f32.mxu0 0.0
    %1396 = vmatmul.mubr.f32.gmra.mrb[0].mxu0 %v1327
    %v1397 = vpop.f32.mrb[0].mxu0
    %v1398 = vadd.f32 %v66, %v1397
    %v1399 = vpop.f32.mrb[0].mxu0
    %1400 = vdwg.mxu0
    %v1401 = vsel %vm320, %v1398, -inf
    %1402 = vmax.xlane.f32.xlu0 %v1401
    %v1403 = vpop.xlane.xlu0 %1402
    %v1404 = vsub.f32 %v1398, %v1403
    %v1405 = vmul.f32 %v1404, 1.442695
    %v1406 = vpow.pop %v1405
    %v1407 = vsel %vm320, %v1406, 0.0
    %1408 = vadd.xlane.f32.xlu0 %v1407
    %v1409 = vpop.xlane.xlu0 %1408
    %v1410 = vrcp.pop %v1409
    %v1411 = vmul.f32 %v1406, %v1410
    %1412 = vrot.lane.b32.xlu0 %v314, 48
    %v1413 = vpop.permute.xlu0 %1412
    %v1416 = vsel %vm320, %v1411, 0
    %1418 = vmatprep.subr.mxu0 0.0
    %1419 = vmatpush1.msra.mxu0 %v1413
    %1420 = vmatprep.subr.mxu0 0.0
    %1421 = vmatpush1.msra.mxu0 0.0
    %1422 = vmatprep.subr.mxu0 0.0
    %1423 = vmatpush1.msra.mxu0 0.0
    %1424 = vmatprep.subr.mxu0 0.0
    %1425 = vmatpush1.msra.mxu0 0.0
    %1426 = vmatprep.subr.mxu0 0.0
    %1427 = vmatpush1.msra.mxu0 0.0
    %1428 = vmatprep.subr.mxu0 0.0
    %1429 = vmatpush1.msra.mxu0 0.0
    %1430 = vmatprep.subr.mxu0 0.0
    %1431 = vmatpush1.msra.mxu0 0.0
    %1432 = vmatprep.subr.mxu0 0.0
    %1433 = vmatpush1.msra.mxu0 0.0
    %1434 = vmatprep.subr.mxu0 0.0
    %1435 = vmatpush1.msra.mxu0 0.0
    %1436 = vmatprep.subr.mxu0 0.0
    %1437 = vmatpush1.msra.mxu0 0.0
    %1438 = vmatprep.subr.mxu0 0.0
    %1439 = vmatpush1.msra.mxu0 0.0
    %1440 = vmatprep.subr.mxu0 0.0
    %1441 = vmatpush1.msra.mxu0 0.0
    %1442 = vmatprep.subr.mxu0 0.0
    %1443 = vmatpush1.msra.mxu0 0.0
    %1444 = vmatprep.subr.mxu0 0.0
    %1445 = vmatpush1.msra.mxu0 0.0
    %1446 = vmatprep.subr.mxu0 0.0
    %1447 = vmatpush1.msra.mxu0 0.0
    %1448 = vmatprep.subr.mxu0 0.0
    %1449 = vmatpush1.msra.mxu0 0.0
    %1450 = vmatprep.subr.mxu0 0.0
    %1451 = vmatpush1.msra.mxu0 0.0
    %1452 = vmatprep.subr.mxu0 0.0
    %1453 = vmatpush1.msra.mxu0 0.0
    %1454 = vmatprep.subr.mxu0 0.0
    %1455 = vmatpush1.msra.mxu0 0.0
    %1456 = vmatprep.subr.mxu0 0.0
    %1457 = vmatpush1.msra.mxu0 0.0
    %1458 = vmatprep.subr.mxu0 0.0
    %1459 = vmatpush1.msra.mxu0 0.0
    %1460 = vmatprep.subr.mxu0 0.0
    %1461 = vmatpush1.msra.mxu0 0.0
    %1462 = vmatprep.subr.mxu0 0.0
    %1463 = vmatpush1.msra.mxu0 0.0
    %1464 = vmatprep.subr.mxu0 0.0
    %1465 = vmatpush1.msra.mxu0 0.0
    %1466 = vmatprep.subr.mxu0 0.0
    %1467 = vmatpush1.msra.mxu0 0.0
    %1468 = vmatprep.subr.mxu0 0.0
    %1469 = vmatpush1.msra.mxu0 0.0
    %1470 = vmatprep.subr.mxu0 0.0
    %1471 = vmatpush1.msra.mxu0 0.0
    %1472 = vmatprep.subr.mxu0 0.0
    %1473 = vmatpush1.msra.mxu0 0.0
    %1474 = vmatprep.subr.mxu0 0.0
    %1475 = vmatpush1.msra.mxu0 0.0
    %1476 = vmatprep.subr.mxu0 0.0
    %1477 = vmatpush1.msra.mxu0 0.0
    %1478 = vmatprep.subr.mxu0 0.0
    %1479 = vmatpush1.msra.mxu0 0.0
    %1480 = vmatprep.subr.mxu0 0.0
    %1481 = vmatpush1.msra.mxu0 0.0
    %1482 = vmatprep.mubr.f32.mxu0 0.0
    %1483 = vmatmul.mubr.f32.gmra.mrb[0].mxu0 %v1416
    %v1484 = vpop.f32.mrb[0].mxu0
    %v1485 = vadd.f32 0.0, %v1484
    %v1486 = vpop.f32.mrb[0].mxu0
    %1487 = vdwg.mxu0
    %1488 = vrot.lane.b32.xlu0 %v314, 104
    %v1489 = vpop.permute.xlu0 %1488
    %1490 = vrot.lane.b32.xlu0 %v314, 72
    %v1491 = vpop.permute.xlu0 %1490
    %v1492 = vsel %vm320, %v1489, 0
    %v1494 = vsel %vm320, %v1491, 0
    %1496 = vmatprep.subr.mxu0 0.0
    %1497 = vmatpush1.xpose.msra.mxu0 %v1494
    %1498 = vmatprep.subr.mxu0 0.0
    %1499 = vmatpush1.xpose.msra.mxu0 0.0
    %1500 = vmatprep.subr.mxu0 0.0
    %1501 = vmatpush1.xpose.msra.mxu0 0.0
    %1502 = vmatprep.subr.mxu0 0.0
    %1503 = vmatpush1.xpose.msra.mxu0 0.0
    %1504 = vmatprep.subr.mxu0 0.0
    %1505 = vmatpush1.xpose.msra.mxu0 0.0
    %1506 = vmatprep.subr.mxu0 0.0
    %1507 = vmatpush1.xpose.msra.mxu0 0.0
    %1508 = vmatprep.subr.mxu0 0.0
    %1509 = vmatpush1.xpose.msra.mxu0 0.0
    %1510 = vmatprep.subr.mxu0 0.0
    %1511 = vmatpush1.xpose.msra.mxu0 0.0
    %1512 = vmatprep.subr.mxu0 0.0
    %1513 = vmatpush1.xpose.msra.mxu0 0.0
    %1514 = vmatprep.subr.mxu0 0.0
    %1515 = vmatpush1.xpose.msra.mxu0 0.0
    %1516 = vmatprep.subr.mxu0 0.0
    %1517 = vmatpush1.xpose.msra.mxu0 0.0
    %1518 = vmatprep.subr.mxu0 0.0
    %1519 = vmatpush1.xpose.msra.mxu0 0.0
    %1520 = vmatprep.subr.mxu0 0.0
    %1521 = vmatpush1.xpose.msra.mxu0 0.0
    %1522 = vmatprep.subr.mxu0 0.0
    %1523 = vmatpush1.xpose.msra.mxu0 0.0
    %1524 = vmatprep.subr.mxu0 0.0
    %1525 = vmatpush1.xpose.msra.mxu0 0.0
    %1526 = vmatprep.subr.mxu0 0.0
    %1527 = vmatpush1.xpose.msra.mxu0 0.0
    %1528 = vmatprep.subr.mxu0 0.0
    %1529 = vmatpush1.xpose.msra.mxu0 0.0
    %1530 = vmatprep.subr.mxu0 0.0
    %1531 = vmatpush1.xpose.msra.mxu0 0.0
    %1532 = vmatprep.subr.mxu0 0.0
    %1533 = vmatpush1.xpose.msra.mxu0 0.0
    %1534 = vmatprep.subr.mxu0 0.0
    %1535 = vmatpush1.xpose.msra.mxu0 0.0
    %1536 = vmatprep.subr.mxu0 0.0
    %1537 = vmatpush1.xpose.msra.mxu0 0.0
    %1538 = vmatprep.subr.mxu0 0.0
    %1539 = vmatpush1.xpose.msra.mxu0 0.0
    %1540 = vmatprep.subr.mxu0 0.0
    %1541 = vmatpush1.xpose.msra.mxu0 0.0
    %1542 = vmatprep.subr.mxu0 0.0
    %1543 = vmatpush1.xpose.msra.mxu0 0.0
    %1544 = vmatprep.subr.mxu0 0.0
    %1545 = vmatpush1.xpose.msra.mxu0 0.0
    %1546 = vmatprep.subr.mxu0 0.0
    %1547 = vmatpush1.xpose.msra.mxu0 0.0
    %1548 = vmatprep.subr.mxu0 0.0
    %1549 = vmatpush1.xpose.msra.mxu0 0.0
    %1550 = vmatprep.subr.mxu0 0.0
    %1551 = vmatpush1.xpose.msra.mxu0 0.0
    %1552 = vmatprep.subr.mxu0 0.0
    %1553 = vmatpush1.xpose.msra.mxu0 0.0
    %1554 = vmatprep.subr.mxu0 0.0
    %1555 = vmatpush1.xpose.msra.mxu0 0.0
    %1556 = vmatprep.subr.mxu0 0.0
    %1557 = vmatpush1.xpose.msra.mxu0 0.0
    %1558 = vmatprep.subr.mxu0 0.0
    %1559 = vmatpush1.xpose.msra.mxu0 0.0
    %1560 = vmatprep.mubr.f32.mxu0 0.0
    %1561 = vmatmul.mubr.f32.gmra.mrb[0].mxu0 %v1492
    %v1562 = vpop.f32.mrb[0].mxu0
    %v1563 = vadd.f32 %v66, %v1562
    %v1564 = vpop.f32.mrb[0].mxu0
    %1565 = vdwg.mxu0
    %v1566 = vsel %vm320, %v1563, -inf
    %1567 = vmax.xlane.f32.xlu0 %v1566
    %v1568 = vpop.xlane.xlu0 %1567
    %v1569 = vsub.f32 %v1563, %v1568
    %v1570 = vmul.f32 %v1569, 1.442695
    %v1571 = vpow.pop %v1570
    %v1572 = vsel %vm320, %v1571, 0.0
    %1573 = vadd.xlane.f32.xlu0 %v1572
    %v1574 = vpop.xlane.xlu0 %1573
    %v1575 = vrcp.pop %v1574
    %v1576 = vmul.f32 %v1571, %v1575
    %1577 = vrot.lane.b32.xlu0 %v314, 40
    %v1578 = vpop.permute.xlu0 %1577
    %v1581 = vsel %vm320, %v1576, 0
    %1583 = vmatprep.subr.mxu0 0.0
    %1584 = vmatpush1.msra.mxu0 %v1578
    %1585 = vmatprep.subr.mxu0 0.0
    %1586 = vmatpush1.msra.mxu0 0.0
    %1587 = vmatprep.subr.mxu0 0.0
    %1588 = vmatpush1.msra.mxu0 0.0
    %1589 = vmatprep.subr.mxu0 0.0
    %1590 = vmatpush1.msra.mxu0 0.0
    %1591 = vmatprep.subr.mxu0 0.0
    %1592 = vmatpush1.msra.mxu0 0.0
    %1593 = vmatprep.subr.mxu0 0.0
    %1594 = vmatpush1.msra.mxu0 0.0
    %1595 = vmatprep.subr.mxu0 0.0
    %1596 = vmatpush1.msra.mxu0 0.0
    %1597 = vmatprep.subr.mxu0 0.0
    %1598 = vmatpush1.msra.mxu0 0.0
    %1599 = vmatprep.subr.mxu0 0.0
    %1600 = vmatpush1.msra.mxu0 0.0
    %1601 = vmatprep.subr.mxu0 0.0
    %1602 = vmatpush1.msra.mxu0 0.0
    %1603 = vmatprep.subr.mxu0 0.0
    %1604 = vmatpush1.msra.mxu0 0.0
    %1605 = vmatprep.subr.mxu0 0.0
    %1606 = vmatpush1.msra.mxu0 0.0
    %1607 = vmatprep.subr.mxu0 0.0
    %1608 = vmatpush1.msra.mxu0 0.0
    %1609 = vmatprep.subr.mxu0 0.0
    %1610 = vmatpush1.msra.mxu0 0.0
    %1611 = vmatprep.subr.mxu0 0.0
    %1612 = vmatpush1.msra.mxu0 0.0
    %1613 = vmatprep.subr.mxu0 0.0
    %1614 = vmatpush1.msra.mxu0 0.0
    %1615 = vmatprep.subr.mxu0 0.0
    %1616 = vmatpush1.msra.mxu0 0.0
    %1617 = vmatprep.subr.mxu0 0.0
    %1618 = vmatpush1.msra.mxu0 0.0
    %1619 = vmatprep.subr.mxu0 0.0
    %1620 = vmatpush1.msra.mxu0 0.0
    %1621 = vmatprep.subr.mxu0 0.0
    %1622 = vmatpush1.msra.mxu0 0.0
    %1623 = vmatprep.subr.mxu0 0.0
    %1624 = vmatpush1.msra.mxu0 0.0
    %1625 = vmatprep.subr.mxu0 0.0
    %1626 = vmatpush1.msra.mxu0 0.0
    %1627 = vmatprep.subr.mxu0 0.0
    %1628 = vmatpush1.msra.mxu0 0.0
    %1629 = vmatprep.subr.mxu0 0.0
    %1630 = vmatpush1.msra.mxu0 0.0
    %1631 = vmatprep.subr.mxu0 0.0
    %1632 = vmatpush1.msra.mxu0 0.0
    %1633 = vmatprep.subr.mxu0 0.0
    %1634 = vmatpush1.msra.mxu0 0.0
    %1635 = vmatprep.subr.mxu0 0.0
    %1636 = vmatpush1.msra.mxu0 0.0
    %1637 = vmatprep.subr.mxu0 0.0
    %1638 = vmatpush1.msra.mxu0 0.0
    %1639 = vmatprep.subr.mxu0 0.0
    %1640 = vmatpush1.msra.mxu0 0.0
    %1641 = vmatprep.subr.mxu0 0.0
    %1642 = vmatpush1.msra.mxu0 0.0
    %1643 = vmatprep.subr.mxu0 0.0
    %1644 = vmatpush1.msra.mxu0 0.0
    %1645 = vmatprep.subr.mxu0 0.0
    %1646 = vmatpush1.msra.mxu0 0.0
    %1647 = vmatprep.mubr.f32.mxu0 0.0
    %1648 = vmatmul.mubr.f32.gmra.mrb[0].mxu0 %v1581
    %v1649 = vpop.f32.mrb[0].mxu0
    %v1650 = vadd.f32 0.0, %v1649
    %v1651 = vpop.f32.mrb[0].mxu0
    %1652 = vdwg.mxu0
    %1654 = vrot.lane.b32.xlu0 %v1320, 8
    %v1655 = vpop.permute.xlu0 %1654
    %1658 = vrot.lane.b32.xlu0 %v1485, 16
    %v1659 = vpop.permute.xlu0 %1658
    %1662 = vrot.lane.b32.xlu0 %v1650, 24
    %v1663 = vpop.permute.xlu0 %1662
    %v1665 = vsel %vm320, %v1155, %v1655
    %v1666 = vsel %vm990, %v1665, %v1659
    %v1667 = vsel %vm992, %v1666, %v1663
    %v1668 = vld [vmem:[%s7] sm:$0xff]
    %v1669 = vld [vmem:[%s7 + $0x8] sm:$0xff]
    %v1670 = vld [vmem:[%s7 + $0x10] sm:$0xff]
    %v1671 = vld [vmem:[%s7 + $0x18] sm:$0xff]
    %v1673 = vsel %vm181, %v993, 0
    %v1676 = vsel %vm181, %v1667, 0
    %1678 = vmatprep.subr.mxu0 0.0
    %1679 = vmatpush1.msra.mxu0 %v1668
    %1680 = vmatprep.subr.mxu0 0.0
    %1681 = vmatpush1.msra.mxu0 %v1669
    %1682 = vmatprep.subr.mxu0 0.0
    %1683 = vmatpush1.msra.mxu0 %v1670
    %1684 = vmatprep.subr.mxu0 0.0
    %1685 = vmatpush1.msra.mxu0 %v1671
    %1686 = vmatprep.subr.mxu0 0.0
    %1687 = vmatpush1.msra.mxu0 0.0
    %1688 = vmatprep.subr.mxu0 0.0
    %1689 = vmatpush1.msra.mxu0 0.0
    %1690 = vmatprep.subr.mxu0 0.0
    %1691 = vmatpush1.msra.mxu0 0.0
    %1692 = vmatprep.subr.mxu0 0.0
    %1693 = vmatpush1.msra.mxu0 0.0
    %1694 = vmatprep.subr.mxu0 0.0
    %1695 = vmatpush1.msra.mxu0 0.0
    %1696 = vmatprep.subr.mxu0 0.0
    %1697 = vmatpush1.msra.mxu0 0.0
    %1698 = vmatprep.subr.mxu0 0.0
    %1699 = vmatpush1.msra.mxu0 0.0
    %1700 = vmatprep.subr.mxu0 0.0
    %1701 = vmatpush1.msra.mxu0 0.0
    %1702 = vmatprep.subr.mxu0 0.0
    %1703 = vmatpush1.msra.mxu0 0.0
    %1704 = vmatprep.subr.mxu0 0.0
    %1705 = vmatpush1.msra.mxu0 0.0
    %1706 = vmatprep.subr.mxu0 0.0
    %1707 = vmatpush1.msra.mxu0 0.0
    %1708 = vmatprep.subr.mxu0 0.0
    %1709 = vmatpush1.msra.mxu0 0.0
    %1710 = vmatprep.subr.mxu0 0.0
    %1711 = vmatpush1.msra.mxu0 0.0
    %1712 = vmatprep.subr.mxu0 0.0
    %1713 = vmatpush1.msra.mxu0 0.0
    %1714 = vmatprep.subr.mxu0 0.0
    %1715 = vmatpush1.msra.mxu0 0.0
    %1716 = vmatprep.subr.mxu0 0.0
    %1717 = vmatpush1.msra.mxu0 0.0
    %1718 = vmatprep.subr.mxu0 0.0
    %1719 = vmatpush1.msra.mxu0 0.0
    %1720 = vmatprep.subr.mxu0 0.0
    %1721 = vmatpush1.msra.mxu0 0.0
    %1722 = vmatprep.subr.mxu0 0.0
    %1723 = vmatpush1.msra.mxu0 0.0
    %1724 = vmatprep.subr.mxu0 0.0
    %1725 = vmatpush1.msra.mxu0 0.0
    %1726 = vmatprep.subr.mxu0 0.0
    %1727 = vmatpush1.msra.mxu0 0.0
    %1728 = vmatprep.subr.mxu0 0.0
    %1729 = vmatpush1.msra.mxu0 0.0
    %1730 = vmatprep.subr.mxu0 0.0
    %1731 = vmatpush1.msra.mxu0 0.0
    %1732 = vmatprep.subr.mxu0 0.0
    %1733 = vmatpush1.msra.mxu0 0.0
    %1734 = vmatprep.subr.mxu0 0.0
    %1735 = vmatpush1.msra.mxu0 0.0
    %1736 = vmatprep.subr.mxu0 0.0
    %1737 = vmatpush1.msra.mxu0 0.0
    %1738 = vmatprep.subr.mxu0 0.0
    %1739 = vmatpush1.msra.mxu0 0.0
    %1740 = vmatprep.subr.mxu0 0.0
    %1741 = vmatpush1.msra.mxu0 0.0
    %1742 = vmatprep.mubr.f32.mxu0 0.0
    %1743 = vmatmul.mubr.f32.gmra.mrb[0].mxu0 %v1673
    %v1744 = vpop.f32.mrb[0].mxu0
    %v1745 = vadd.f32 0.0, %v1744
    %v1746 = vpop.f32.mrb[0].mxu0
    %1747 = vmatprep.mubr.f32.mxu0 0.0
    %1748 = vmatmul.mubr.f32.gmra.mrb[0].mxu0 %v1676
    %v1749 = vpop.f32.mrb[0].mxu0
    %v1750 = vadd.f32 0.0, %v1749
    %v1751 = vpop.f32.mrb[0].mxu0
    %1752 = vdwg.mxu0
    %v1753 = vadd.f32 %v171, %v1745
    %v1754 = vadd.f32 %v176, %v1750
    %v1755 = vld [vmem:[%s8] sm:$0x1]
    %v1757 = vlaneseq
    %v1758 = vshrl.u32 %v1757, 7
    %v1759 = vsub.s32 0, %v1758
    %v1760 = vrot.slane %v1755, %v1759
    %v1762 = vadd.f32 %v1753, %v1760
    %v1763 = vadd.f32 %v1754, %v1760
    %v1764 = vld [vmem:[%s9] sm:$0x1]
    %v1765 = vld [vmem:[%s10] sm:$0x1]
    %v1766 = vsel %vm181, %v1762, 0.0
    %1767 = vadd.xlane.f32.xlu0 %v1766
    %v1768 = vpop.xlane.xlu0 %1767
    %v1769 = vsel %vm181, %v1763, 0.0
    %1770 = vadd.xlane.f32.xlu0 %v1769
    %v1771 = vpop.xlane.xlu0 %1770
    %v1772 = vmul.f32 %v1768, %v188
    %v1773 = vmul.f32 %v1771, %v188
    %v1774 = vsub.f32 %v1762, %v1772
    %v1775 = vsub.f32 %v1763, %v1773
    %v1776 = vmul.f32 %v1774, %v1774
    %v1777 = vmul.f32 %v1775, %v1775
    %v1778 = vsel %vm181, %v1776, 0.0
    %1779 = vadd.xlane.f32.xlu0 %v1778
    %v1780 = vpop.xlane.xlu0 %1779
    %v1781 = vsel %vm181, %v1777, 0.0
    %1782 = vadd.xlane.f32.xlu0 %v1781
    %v1783 = vpop.xlane.xlu0 %1782
    %v1784 = vmul.f32 %v1780, %v188
    %v1785 = vmul.f32 %v1783, %v188
    %v1786 = vadd.f32 %v1784, 1e-05
    %v1787 = vadd.f32 %v1785, 1e-05
    %v1788 = vrsqrt.pop %v1786
    %v1789 = vrsqrt.pop %v1787
    %v1790 = vmul.f32 %v1774, %v1788
    %v1791 = vmul.f32 %v1775, %v1789
    %v1793 = vlaneseq
    %v1794 = vshrl.u32 %v1793, 7
    %v1795 = vsub.s32 0, %v1794
    %v1796 = vrot.slane %v1764, %v1795
    %v1798 = vmul.f32 %v1790, %v1796
    %v1799 = vmul.f32 %v1791, %v1796
    %v1801 = vlaneseq
    %v1802 = vshrl.u32 %v1801, 7
    %v1803 = vsub.s32 0, %v1802
    %v1804 = vrot.slane %v1765, %v1803
    %v1806 = vadd.f32 %v1798, %v1804
    %v1807 = vadd.f32 %v1799, %v1804
    %v1808 = vld [vmem:[%s11] sm:$0xff]
    %v1809 = vld [vmem:[%s11 + $0x8] sm:$0xff]
    %v1810 = vld [vmem:[%s11 + $0x10] sm:$0xff]
    %v1811 = vld [vmem:[%s11 + $0x18] sm:$0xff]
    %v1812 = vld [vmem:[%s12] sm:$0x1]
    %v1814 = vlaneseq
    %v1815 = vshrl.u32 %v1814, 7
    %v1816 = vsub.s32 0, %v1815
    %v1817 = vrot.slane %v1812, %v1816
    %v1820 = vsel %vm181, %v1806, 0
    %v1823 = vsel %vm181, %v1807, 0
    %1825 = vmatprep.subr.mxu0 0.0
    %1826 = vmatpush1.msra.mxu0 %v1808
    %1827 = vmatprep.subr.mxu0 0.0
    %1828 = vmatpush1.msra.mxu0 %v1809
    %1829 = vmatprep.subr.mxu0 0.0
    %1830 = vmatpush1.msra.mxu0 %v1810
    %1831 = vmatprep.subr.mxu0 0.0
    %1832 = vmatpush1.msra.mxu0 %v1811
    %1833 = vmatprep.subr.mxu0 0.0
    %1834 = vmatpush1.msra.mxu0 0.0
    %1835 = vmatprep.subr.mxu0 0.0
    %1836 = vmatpush1.msra.mxu0 0.0
    %1837 = vmatprep.subr.mxu0 0.0
    %1838 = vmatpush1.msra.mxu0 0.0
    %1839 = vmatprep.subr.mxu0 0.0
    %1840 = vmatpush1.msra.mxu0 0.0
    %1841 = vmatprep.subr.mxu0 0.0
    %1842 = vmatpush1.msra.mxu0 0.0
    %1843 = vmatprep.subr.mxu0 0.0
    %1844 = vmatpush1.msra.mxu0 0.0
    %1845 = vmatprep.subr.mxu0 0.0
    %1846 = vmatpush1.msra.mxu0 0.0
    %1847 = vmatprep.subr.mxu0 0.0
    %1848 = vmatpush1.msra.mxu0 0.0
    %1849 = vmatprep.subr.mxu0 0.0
    %1850 = vmatpush1.msra.mxu0 0.0
    %1851 = vmatprep.subr.mxu0 0.0
    %1852 = vmatpush1.msra.mxu0 0.0
    %1853 = vmatprep.subr.mxu0 0.0
    %1854 = vmatpush1.msra.mxu0 0.0
    %1855 = vmatprep.subr.mxu0 0.0
    %1856 = vmatpush1.msra.mxu0 0.0
    %1857 = vmatprep.subr.mxu0 0.0
    %1858 = vmatpush1.msra.mxu0 0.0
    %1859 = vmatprep.subr.mxu0 0.0
    %1860 = vmatpush1.msra.mxu0 0.0
    %1861 = vmatprep.subr.mxu0 0.0
    %1862 = vmatpush1.msra.mxu0 0.0
    %1863 = vmatprep.subr.mxu0 0.0
    %1864 = vmatpush1.msra.mxu0 0.0
    %1865 = vmatprep.subr.mxu0 0.0
    %1866 = vmatpush1.msra.mxu0 0.0
    %1867 = vmatprep.subr.mxu0 0.0
    %1868 = vmatpush1.msra.mxu0 0.0
    %1869 = vmatprep.subr.mxu0 0.0
    %1870 = vmatpush1.msra.mxu0 0.0
    %1871 = vmatprep.subr.mxu0 0.0
    %1872 = vmatpush1.msra.mxu0 0.0
    %1873 = vmatprep.subr.mxu0 0.0
    %1874 = vmatpush1.msra.mxu0 0.0
    %1875 = vmatprep.subr.mxu0 0.0
    %1876 = vmatpush1.msra.mxu0 0.0
    %1877 = vmatprep.subr.mxu0 0.0
    %1878 = vmatpush1.msra.mxu0 0.0
    %1879 = vmatprep.subr.mxu0 0.0
    %1880 = vmatpush1.msra.mxu0 0.0
    %1881 = vmatprep.subr.mxu0 0.0
    %1882 = vmatpush1.msra.mxu0 0.0
    %1883 = vmatprep.subr.mxu0 0.0
    %1884 = vmatpush1.msra.mxu0 0.0
    %1885 = vmatprep.subr.mxu0 0.0
    %1886 = vmatpush1.msra.mxu0 0.0
    %1887 = vmatprep.subr.mxu0 0.0
    %1888 = vmatpush1.msra.mxu0 0.0
    %1889 = vmatprep.mubr.f32.mxu0 0.0
    %1890 = vmatmul.mubr.f32.gmra.mrb[0].mxu0 %v1820
    %v1891 = vpop.f32.mrb[0].mxu0
    %v1892 = vadd.f32 %v1817, %v1891
    %v1893 = vpop.f32.mrb[0].mxu0
    %1894 = vmatprep.mubr.f32.mxu0 0.0
    %1895 = vmatmul.mubr.f32.gmra.mrb[0].mxu0 %v1823
    %v1896 = vpop.f32.mrb[0].mxu0
    %v1897 = vadd.f32 %v1817, %v1896
    %v1898 = vpop.f32.mrb[0].mxu0
    %1899 = vdwg.mxu0
    %v1900 = vmul.f32 %v1892, 0.70710677
    %v1901 = vmul.f32 %v1897, 0.70710677
    %v1902 = vand.u32 2147483647, %v1900
    %v1903 = vand.u32 2147483647, %v1901
    %v1904 = vmul.f32 %v1902, 0.3275911
    %v1905 = vmul.f32 %v1903, 0.3275911
    %v1906 = vadd.f32 %v1904, 1.0
    %v1907 = vadd.f32 %v1905, 1.0
    %v1908 = vrcp.pop %v1906
    %v1909 = vmul.f32 1.0, %v1908
    %v1910 = vrcp.pop %v1907
    %v1911 = vmul.f32 1.0, %v1910
    %v1912 = vmul.f32 %v1909, 1.0614054
    %v1913 = vmul.f32 %v1911, 1.0614054
    %v1914 = vadd.f32 %v1912, -1.4531521
    %v1915 = vadd.f32 %v1913, -1.4531521
    %v1916 = vmul.f32 %v1909, %v1914
    %v1917 = vmul.f32 %v1911, %v1915
    %v1918 = vadd.f32 %v1916, 1.4214138
    %v1919 = vadd.f32 %v1917, 1.4214138
    %v1920 = vmul.f32 %v1909, %v1918
    %v1921 = vmul.f32 %v1911, %v1919
    %v1922 = vadd.f32 %v1920, -0.28449672
    %v1923 = vadd.f32 %v1921, -0.28449672
    %v1924 = vmul.f32 %v1909, %v1922
    %v1925 = vmul.f32 %v1911, %v1923
    %v1926 = vadd.f32 %v1924, 0.2548296
    %v1927 = vadd.f32 %v1925, 0.2548296
    %v1928 = vmul.f32 %v1909, %v1926
    %v1929 = vmul.f32 %v1911, %v1927
    %v1930 = vsub.f32 0.0, %v1902
    %v1931 = vsub.f32 0.0, %v1903
    %v1932 = vmul.f32 %v1930, %v1902
    %v1933 = vmul.f32 %v1931, %v1903
    %v1934 = vmul.f32 %v1932, 1.442695
    %v1935 = vpow.pop %v1934
    %v1936 = vmul.f32 %v1933, 1.442695
    %v1937 = vpow.pop %v1936
    %v1938 = vmul.f32 %v1928, %v1935
    %v1939 = vmul.f32 %v1929, %v1937
    %v1940 = vsub.f32 1.0, %v1938
    %v1941 = vsub.f32 1.0, %v1939
    %vm1942 = vcmp.ge.f32.partialorder %v1900, 0.0
    %vm1943 = vcmp.ge.f32.partialorder %v1901, 0.0
    %v1944 = vsub.f32 0.0, %v1940
    %v1945 = vsub.f32 0.0, %v1941
    %v1946 = vsel %vm1942, %v1940, %v1944
    %v1947 = vsel %vm1943, %v1941, %v1945
    %v1948 = vmul.f32 %v1892, 0.5
    %v1949 = vmul.f32 %v1897, 0.5
    %v1950 = vadd.f32 %v1946, 1.0
    %v1951 = vadd.f32 %v1947, 1.0
    %v1952 = vmul.f32 %v1948, %v1950
    %v1953 = vmul.f32 %v1949, %v1951
    %v1954 = vld [vmem:[%s13] sm:$0xff]
    %v1955 = vld [vmem:[%s13 + $0x8] sm:$0xff]
    %v1956 = vld [vmem:[%s13 + $0x10] sm:$0xff]
    %v1957 = vld [vmem:[%s13 + $0x18] sm:$0xff]
    %v1958 = vld [vmem:[%s13 + $0x20] sm:$0xff]
    %v1959 = vld [vmem:[%s13 + $0x28] sm:$0xff]
    %v1960 = vld [vmem:[%s13 + $0x30] sm:$0xff]
    %v1961 = vld [vmem:[%s13 + $0x38] sm:$0xff]
    %v1963 = vsel %vm97, %v1952, 0
    %v1966 = vsel %vm97, %v1953, 0
    %1968 = vmatprep.subr.mxu0 0.0
    %1969 = vmatpush1.msra.mxu0 %v1954
    %1970 = vmatprep.subr.mxu0 0.0
    %1971 = vmatpush1.msra.mxu0 %v1955
    %1972 = vmatprep.subr.mxu0 0.0
    %1973 = vmatpush1.msra.mxu0 %v1956
    %1974 = vmatprep.subr.mxu0 0.0
    %1975 = vmatpush1.msra.mxu0 %v1957
    %1976 = vmatprep.subr.mxu0 0.0
    %1977 = vmatpush1.msra.mxu0 %v1958
    %1978 = vmatprep.subr.mxu0 0.0
    %1979 = vmatpush1.msra.mxu0 %v1959
    %1980 = vmatprep.subr.mxu0 0.0
    %1981 = vmatpush1.msra.mxu0 %v1960
    %1982 = vmatprep.subr.mxu0 0.0
    %1983 = vmatpush1.msra.mxu0 %v1961
    %1984 = vmatprep.subr.mxu0 0.0
    %1985 = vmatpush1.msra.mxu0 0.0
    %1986 = vmatprep.subr.mxu0 0.0
    %1987 = vmatpush1.msra.mxu0 0.0
    %1988 = vmatprep.subr.mxu0 0.0
    %1989 = vmatpush1.msra.mxu0 0.0
    %1990 = vmatprep.subr.mxu0 0.0
    %1991 = vmatpush1.msra.mxu0 0.0
    %1992 = vmatprep.subr.mxu0 0.0
    %1993 = vmatpush1.msra.mxu0 0.0
    %1994 = vmatprep.subr.mxu0 0.0
    %1995 = vmatpush1.msra.mxu0 0.0
    %1996 = vmatprep.subr.mxu0 0.0
    %1997 = vmatpush1.msra.mxu0 0.0
    %1998 = vmatprep.subr.mxu0 0.0
    %1999 = vmatpush1.msra.mxu0 0.0
    %2000 = vmatprep.subr.mxu0 0.0
    %2001 = vmatpush1.msra.mxu0 0.0
    %2002 = vmatprep.subr.mxu0 0.0
    %2003 = vmatpush1.msra.mxu0 0.0
    %2004 = vmatprep.subr.mxu0 0.0
    %2005 = vmatpush1.msra.mxu0 0.0
    %2006 = vmatprep.subr.mxu0 0.0
    %2007 = vmatpush1.msra.mxu0 0.0
    %2008 = vmatprep.subr.mxu0 0.0
    %2009 = vmatpush1.msra.mxu0 0.0
    %2010 = vmatprep.subr.mxu0 0.0
    %2011 = vmatpush1.msra.mxu0 0.0
    %2012 = vmatprep.subr.mxu0 0.0
    %2013 = vmatpush1.msra.mxu0 0.0
    %2014 = vmatprep.subr.mxu0 0.0
    %2015 = vmatpush1.msra.mxu0 0.0
    %2016 = vmatprep.subr.mxu0 0.0
    %2017 = vmatpush1.msra.mxu0 0.0
    %2018 = vmatprep.subr.mxu0 0.0
    %2019 = vmatpush1.msra.mxu0 0.0
    %2020 = vmatprep.subr.mxu0 0.0
    %2021 = vmatpush1.msra.mxu0 0.0
    %2022 = vmatprep.subr.mxu0 0.0
    %2023 = vmatpush1.msra.mxu0 0.0
    %2024 = vmatprep.subr.mxu0 0.0
    %2025 = vmatpush1.msra.mxu0 0.0
    %2026 = vmatprep.subr.mxu0 0.0
    %2027 = vmatpush1.msra.mxu0 0.0
    %2028 = vmatprep.subr.mxu0 0.0
    %2029 = vmatpush1.msra.mxu0 0.0
    %2030 = vmatprep.subr.mxu0 0.0
    %2031 = vmatpush1.msra.mxu0 0.0
    %2032 = vmatprep.mubr.f32.mxu0 0.0
    %2033 = vmatmul.mubr.f32.gmra.mrb[0].mxu0 %v1963
    %v2034 = vpop.f32.mrb[0].mxu0
    %v2035 = vadd.f32 0.0, %v2034
    %v2036 = vpop.f32.mrb[0].mxu0
    %2037 = vmatprep.mubr.f32.mxu0 0.0
    %2038 = vmatmul.mubr.f32.gmra.mrb[0].mxu0 %v1966
    %v2039 = vpop.f32.mrb[0].mxu0
    %v2040 = vadd.f32 0.0, %v2039
    %v2041 = vpop.f32.mrb[0].mxu0
    %2042 = vdwg.mxu0
    %v2043 = vadd.f32 %v1762, %v2035
    %v2044 = vadd.f32 %v1763, %v2040
    %v2045 = vld [vmem:[%s14] sm:$0x1]
    %v2047 = vlaneseq
    %v2048 = vshrl.u32 %v2047, 7
    %v2049 = vsub.s32 0, %v2048
    %v2050 = vrot.slane %v2045, %v2049
    %v2052 = vadd.f32 %v2043, %v2050
    %v2053 = vadd.f32 %v2044, %v2050
    %s2054 = scalar_lea.vmem %s3, 1
    %v2055 = vld [vmem:[%s2054] sm:$0x1]
    %s2056 = scalar_lea.vmem %s4, 1
    %v2057 = vld [vmem:[%s2056] sm:$0x1]
    %v2058 = vsel %vm181, %v2052, 0.0
    %2059 = vadd.xlane.f32.xlu0 %v2058
    %v2060 = vpop.xlane.xlu0 %2059
    %v2061 = vsel %vm181, %v2053, 0.0
    %2062 = vadd.xlane.f32.xlu0 %v2061
    %v2063 = vpop.xlane.xlu0 %2062
    %v2064 = vmul.f32 %v2060, %v188
    %v2065 = vmul.f32 %v2063, %v188
    %v2066 = vsub.f32 %v2052, %v2064
    %v2067 = vsub.f32 %v2053, %v2065
    %v2068 = vmul.f32 %v2066, %v2066
    %v2069 = vmul.f32 %v2067, %v2067
    %v2070 = vsel %vm181, %v2068, 0.0
    %2071 = vadd.xlane.f32.xlu0 %v2070
    %v2072 = vpop.xlane.xlu0 %2071
    %v2073 = vsel %vm181, %v2069, 0.0
    %2074 = vadd.xlane.f32.xlu0 %v2073
    %v2075 = vpop.xlane.xlu0 %2074
    %v2076 = vmul.f32 %v2072, %v188
    %v2077 = vmul.f32 %v2075, %v188
    %v2078 = vadd.f32 %v2076, 1e-05
    %v2079 = vadd.f32 %v2077, 1e-05
    %v2080 = vrsqrt.pop %v2078
    %v2081 = vrsqrt.pop %v2079
    %v2082 = vmul.f32 %v2066, %v2080
    %v2083 = vmul.f32 %v2067, %v2081
    %v2085 = vlaneseq
    %v2086 = vshrl.u32 %v2085, 7
    %v2087 = vsub.s32 0, %v2086
    %v2088 = vrot.slane %v2055, %v2087
    %v2090 = vmul.f32 %v2082, %v2088
    %v2091 = vmul.f32 %v2083, %v2088
    %v2093 = vlaneseq
    %v2094 = vshrl.u32 %v2093, 7
    %v2095 = vsub.s32 0, %v2094
    %v2096 = vrot.slane %v2057, %v2095
    %v2098 = vadd.f32 %v2090, %v2096
    %v2099 = vadd.f32 %v2091, %v2096
    %s2100 = scalar_lea.vmem %s5, 32
    %v2101 = vld [vmem:[%s2100] sm:$0xff]
    %v2102 = vld [vmem:[%s2100 + $0x8] sm:$0xff]
    %v2103 = vld [vmem:[%s2100 + $0x10] sm:$0xff]
    %v2104 = vld [vmem:[%s2100 + $0x18] sm:$0xff]
    %s2105 = scalar_lea.vmem %s6, 1
    %v2106 = vld [vmem:[%s2105] sm:$0x1]
    %v2108 = vlaneseq
    %v2109 = vshrl.u32 %v2108, 7
    %v2110 = vsub.s32 0, %v2109
    %v2111 = vrot.slane %v2106, %v2110
    %v2114 = vsel %vm181, %v2098, 0
    %v2117 = vsel %vm181, %v2099, 0
    %2119 = vmatprep.subr.mxu0 0.0
    %2120 = vmatpush1.msra.mxu0 %v2101
    %2121 = vmatprep.subr.mxu0 0.0
    %2122 = vmatpush1.msra.mxu0 %v2102
    %2123 = vmatprep.subr.mxu0 0.0
    %2124 = vmatpush1.msra.mxu0 %v2103
    %2125 = vmatprep.subr.mxu0 0.0
    %2126 = vmatpush1.msra.mxu0 %v2104
    %2127 = vmatprep.subr.mxu0 0.0
    %2128 = vmatpush1.msra.mxu0 0.0
    %2129 = vmatprep.subr.mxu0 0.0
    %2130 = vmatpush1.msra.mxu0 0.0
    %2131 = vmatprep.subr.mxu0 0.0
    %2132 = vmatpush1.msra.mxu0 0.0
    %2133 = vmatprep.subr.mxu0 0.0
    %2134 = vmatpush1.msra.mxu0 0.0
    %2135 = vmatprep.subr.mxu0 0.0
    %2136 = vmatpush1.msra.mxu0 0.0
    %2137 = vmatprep.subr.mxu0 0.0
    %2138 = vmatpush1.msra.mxu0 0.0
    %2139 = vmatprep.subr.mxu0 0.0
    %2140 = vmatpush1.msra.mxu0 0.0
    %2141 = vmatprep.subr.mxu0 0.0
    %2142 = vmatpush1.msra.mxu0 0.0
    %2143 = vmatprep.subr.mxu0 0.0
    %2144 = vmatpush1.msra.mxu0 0.0
    %2145 = vmatprep.subr.mxu0 0.0
    %2146 = vmatpush1.msra.mxu0 0.0
    %2147 = vmatprep.subr.mxu0 0.0
    %2148 = vmatpush1.msra.mxu0 0.0
    %2149 = vmatprep.subr.mxu0 0.0
    %2150 = vmatpush1.msra.mxu0 0.0
    %2151 = vmatprep.subr.mxu0 0.0
    %2152 = vmatpush1.msra.mxu0 0.0
    %2153 = vmatprep.subr.mxu0 0.0
    %2154 = vmatpush1.msra.mxu0 0.0
    %2155 = vmatprep.subr.mxu0 0.0
    %2156 = vmatpush1.msra.mxu0 0.0
    %2157 = vmatprep.subr.mxu0 0.0
    %2158 = vmatpush1.msra.mxu0 0.0
    %2159 = vmatprep.subr.mxu0 0.0
    %2160 = vmatpush1.msra.mxu0 0.0
    %2161 = vmatprep.subr.mxu0 0.0
    %2162 = vmatpush1.msra.mxu0 0.0
    %2163 = vmatprep.subr.mxu0 0.0
    %2164 = vmatpush1.msra.mxu0 0.0
    %2165 = vmatprep.subr.mxu0 0.0
    %2166 = vmatpush1.msra.mxu0 0.0
    %2167 = vmatprep.subr.mxu0 0.0
    %2168 = vmatpush1.msra.mxu0 0.0
    %2169 = vmatprep.subr.mxu0 0.0
    %2170 = vmatpush1.msra.mxu0 0.0
    %2171 = vmatprep.subr.mxu0 0.0
    %2172 = vmatpush1.msra.mxu0 0.0
    %2173 = vmatprep.subr.mxu0 0.0
    %2174 = vmatpush1.msra.mxu0 0.0
    %2175 = vmatprep.subr.mxu0 0.0
    %2176 = vmatpush1.msra.mxu0 0.0
    %2177 = vmatprep.subr.mxu0 0.0
    %2178 = vmatpush1.msra.mxu0 0.0
    %2179 = vmatprep.subr.mxu0 0.0
    %2180 = vmatpush1.msra.mxu0 0.0
    %2181 = vmatprep.subr.mxu0 0.0
    %2182 = vmatpush1.msra.mxu0 0.0
    %2183 = vmatprep.mubr.f32.mxu0 0.0
    %2184 = vmatmul.mubr.f32.gmra.mrb[0].mxu0 %v2114
    %v2185 = vpop.f32.mrb[0].mxu0
    %v2186 = vadd.f32 %v2111, %v2185
    %v2187 = vpop.f32.mrb[0].mxu0
    %2188 = vmatprep.mubr.f32.mxu0 0.0
    %2189 = vmatmul.mubr.f32.gmra.mrb[0].mxu0 %v2117
    %v2190 = vpop.f32.mrb[0].mxu0
    %v2191 = vadd.f32 %v2111, %v2190
    %v2192 = vpop.f32.mrb[0].mxu0
    %2193 = vdwg.mxu0
    %2195 = vrot.lane.b32.xlu0 %v2186, 96
    %v2196 = vpop.permute.xlu0 %2195
    %v2197 = vsel %vm320, %v2186, 0
    %v2199 = vsel %vm320, %v2196, 0
    %2201 = vmatprep.subr.mxu0 0.0
    %2202 = vmatpush1.xpose.msra.mxu0 %v2199
    %2203 = vmatprep.subr.mxu0 0.0
    %2204 = vmatpush1.xpose.msra.mxu0 0.0
    %2205 = vmatprep.subr.mxu0 0.0
    %2206 = vmatpush1.xpose.msra.mxu0 0.0
    %2207 = vmatprep.subr.mxu0 0.0
    %2208 = vmatpush1.xpose.msra.mxu0 0.0
    %2209 = vmatprep.subr.mxu0 0.0
    %2210 = vmatpush1.xpose.msra.mxu0 0.0
    %2211 = vmatprep.subr.mxu0 0.0
    %2212 = vmatpush1.xpose.msra.mxu0 0.0
    %2213 = vmatprep.subr.mxu0 0.0
    %2214 = vmatpush1.xpose.msra.mxu0 0.0
    %2215 = vmatprep.subr.mxu0 0.0
    %2216 = vmatpush1.xpose.msra.mxu0 0.0
    %2217 = vmatprep.subr.mxu0 0.0
    %2218 = vmatpush1.xpose.msra.mxu0 0.0
    %2219 = vmatprep.subr.mxu0 0.0
    %2220 = vmatpush1.xpose.msra.mxu0 0.0
    %2221 = vmatprep.subr.mxu0 0.0
    %2222 = vmatpush1.xpose.msra.mxu0 0.0
    %2223 = vmatprep.subr.mxu0 0.0
    %2224 = vmatpush1.xpose.msra.mxu0 0.0
    %2225 = vmatprep.subr.mxu0 0.0
    %2226 = vmatpush1.xpose.msra.mxu0 0.0
    %2227 = vmatprep.subr.mxu0 0.0
    %2228 = vmatpush1.xpose.msra.mxu0 0.0
    %2229 = vmatprep.subr.mxu0 0.0
    %2230 = vmatpush1.xpose.msra.mxu0 0.0
    %2231 = vmatprep.subr.mxu0 0.0
    %2232 = vmatpush1.xpose.msra.mxu0 0.0
    %2233 = vmatprep.subr.mxu0 0.0
    %2234 = vmatpush1.xpose.msra.mxu0 0.0
    %2235 = vmatprep.subr.mxu0 0.0
    %2236 = vmatpush1.xpose.msra.mxu0 0.0
    %2237 = vmatprep.subr.mxu0 0.0
    %2238 = vmatpush1.xpose.msra.mxu0 0.0
    %2239 = vmatprep.subr.mxu0 0.0
    %2240 = vmatpush1.xpose.msra.mxu0 0.0
    %2241 = vmatprep.subr.mxu0 0.0
    %2242 = vmatpush1.xpose.msra.mxu0 0.0
    %2243 = vmatprep.subr.mxu0 0.0
    %2244 = vmatpush1.xpose.msra.mxu0 0.0
    %2245 = vmatprep.subr.mxu0 0.0
    %2246 = vmatpush1.xpose.msra.mxu0 0.0
    %2247 = vmatprep.subr.mxu0 0.0
    %2248 = vmatpush1.xpose.msra.mxu0 0.0
    %2249 = vmatprep.subr.mxu0 0.0
    %2250 = vmatpush1.xpose.msra.mxu0 0.0
    %2251 = vmatprep.subr.mxu0 0.0
    %2252 = vmatpush1.xpose.msra.mxu0 0.0
    %2253 = vmatprep.subr.mxu0 0.0
    %2254 = vmatpush1.xpose.msra.mxu0 0.0
    %2255 = vmatprep.subr.mxu0 0.0
    %2256 = vmatpush1.xpose.msra.mxu0 0.0
    %2257 = vmatprep.subr.mxu0 0.0
    %2258 = vmatpush1.xpose.msra.mxu0 0.0
    %2259 = vmatprep.subr.mxu0 0.0
    %2260 = vmatpush1.xpose.msra.mxu0 0.0
    %2261 = vmatprep.subr.mxu0 0.0
    %2262 = vmatpush1.xpose.msra.mxu0 0.0
    %2263 = vmatprep.subr.mxu0 0.0
    %2264 = vmatpush1.xpose.msra.mxu0 0.0
    %2265 = vmatprep.mubr.f32.mxu0 0.0
    %2266 = vmatmul.mubr.f32.gmra.mrb[0].mxu0 %v2197
    %v2267 = vpop.f32.mrb[0].mxu0
    %v2268 = vadd.f32 %v66, %v2267
    %v2269 = vpop.f32.mrb[0].mxu0
    %2270 = vdwg.mxu0
    %v2271 = vsel %vm320, %v2268, -inf
    %2272 = vmax.xlane.f32.xlu0 %v2271
    %v2273 = vpop.xlane.xlu0 %2272
    %v2274 = vsub.f32 %v2268, %v2273
    %v2275 = vmul.f32 %v2274, 1.442695
    %v2276 = vpow.pop %v2275
    %v2277 = vsel %vm320, %v2276, 0.0
    %2278 = vadd.xlane.f32.xlu0 %v2277
    %v2279 = vpop.xlane.xlu0 %2278
    %v2280 = vrcp.pop %v2279
    %v2281 = vmul.f32 %v2276, %v2280
    %2282 = vrot.lane.b32.xlu0 %v2186, 64
    %v2283 = vpop.permute.xlu0 %2282
    %v2286 = vsel %vm320, %v2281, 0
    %2288 = vmatprep.subr.mxu0 0.0
    %2289 = vmatpush1.msra.mxu0 %v2283
    %2290 = vmatprep.subr.mxu0 0.0
    %2291 = vmatpush1.msra.mxu0 0.0
    %2292 = vmatprep.subr.mxu0 0.0
    %2293 = vmatpush1.msra.mxu0 0.0
    %2294 = vmatprep.subr.mxu0 0.0
    %2295 = vmatpush1.msra.mxu0 0.0
    %2296 = vmatprep.subr.mxu0 0.0
    %2297 = vmatpush1.msra.mxu0 0.0
    %2298 = vmatprep.subr.mxu0 0.0
    %2299 = vmatpush1.msra.mxu0 0.0
    %2300 = vmatprep.subr.mxu0 0.0
    %2301 = vmatpush1.msra.mxu0 0.0
    %2302 = vmatprep.subr.mxu0 0.0
    %2303 = vmatpush1.msra.mxu0 0.0
    %2304 = vmatprep.subr.mxu0 0.0
    %2305 = vmatpush1.msra.mxu0 0.0
    %2306 = vmatprep.subr.mxu0 0.0
    %2307 = vmatpush1.msra.mxu0 0.0
    %2308 = vmatprep.subr.mxu0 0.0
    %2309 = vmatpush1.msra.mxu0 0.0
    %2310 = vmatprep.subr.mxu0 0.0
    %2311 = vmatpush1.msra.mxu0 0.0
    %2312 = vmatprep.subr.mxu0 0.0
    %2313 = vmatpush1.msra.mxu0 0.0
    %2314 = vmatprep.subr.mxu0 0.0
    %2315 = vmatpush1.msra.mxu0 0.0
    %2316 = vmatprep.subr.mxu0 0.0
    %2317 = vmatpush1.msra.mxu0 0.0
    %2318 = vmatprep.subr.mxu0 0.0
    %2319 = vmatpush1.msra.mxu0 0.0
    %2320 = vmatprep.subr.mxu0 0.0
    %2321 = vmatpush1.msra.mxu0 0.0
    %2322 = vmatprep.subr.mxu0 0.0
    %2323 = vmatpush1.msra.mxu0 0.0
    %2324 = vmatprep.subr.mxu0 0.0
    %2325 = vmatpush1.msra.mxu0 0.0
    %2326 = vmatprep.subr.mxu0 0.0
    %2327 = vmatpush1.msra.mxu0 0.0
    %2328 = vmatprep.subr.mxu0 0.0
    %2329 = vmatpush1.msra.mxu0 0.0
    %2330 = vmatprep.subr.mxu0 0.0
    %2331 = vmatpush1.msra.mxu0 0.0
    %2332 = vmatprep.subr.mxu0 0.0
    %2333 = vmatpush1.msra.mxu0 0.0
    %2334 = vmatprep.subr.mxu0 0.0
    %2335 = vmatpush1.msra.mxu0 0.0
    %2336 = vmatprep.subr.mxu0 0.0
    %2337 = vmatpush1.msra.mxu0 0.0
    %2338 = vmatprep.subr.mxu0 0.0
    %2339 = vmatpush1.msra.mxu0 0.0
    %2340 = vmatprep.subr.mxu0 0.0
    %2341 = vmatpush1.msra.mxu0 0.0
    %2342 = vmatprep.subr.mxu0 0.0
    %2343 = vmatpush1.msra.mxu0 0.0
    %2344 = vmatprep.subr.mxu0 0.0
    %2345 = vmatpush1.msra.mxu0 0.0
    %2346 = vmatprep.subr.mxu0 0.0
    %2347 = vmatpush1.msra.mxu0 0.0
    %2348 = vmatprep.subr.mxu0 0.0
    %2349 = vmatpush1.msra.mxu0 0.0
    %2350 = vmatprep.subr.mxu0 0.0
    %2351 = vmatpush1.msra.mxu0 0.0
    %2352 = vmatprep.mubr.f32.mxu0 0.0
    %2353 = vmatmul.mubr.f32.gmra.mrb[0].mxu0 %v2286
    %v2354 = vpop.f32.mrb[0].mxu0
    %v2355 = vadd.f32 0.0, %v2354
    %v2356 = vpop.f32.mrb[0].mxu0
    %2357 = vdwg.mxu0
    %2358 = vrot.lane.b32.xlu0 %v2186, 120
    %v2359 = vpop.permute.xlu0 %2358
    %2360 = vrot.lane.b32.xlu0 %v2186, 88
    %v2361 = vpop.permute.xlu0 %2360
    %v2362 = vsel %vm320, %v2359, 0
    %v2364 = vsel %vm320, %v2361, 0
    %2366 = vmatprep.subr.mxu0 0.0
    %2367 = vmatpush1.xpose.msra.mxu0 %v2364
    %2368 = vmatprep.subr.mxu0 0.0
    %2369 = vmatpush1.xpose.msra.mxu0 0.0
    %2370 = vmatprep.subr.mxu0 0.0
    %2371 = vmatpush1.xpose.msra.mxu0 0.0
    %2372 = vmatprep.subr.mxu0 0.0
    %2373 = vmatpush1.xpose.msra.mxu0 0.0
    %2374 = vmatprep.subr.mxu0 0.0
    %2375 = vmatpush1.xpose.msra.mxu0 0.0
    %2376 = vmatprep.subr.mxu0 0.0
    %2377 = vmatpush1.xpose.msra.mxu0 0.0
    %2378 = vmatprep.subr.mxu0 0.0
    %2379 = vmatpush1.xpose.msra.mxu0 0.0
    %2380 = vmatprep.subr.mxu0 0.0
    %2381 = vmatpush1.xpose.msra.mxu0 0.0
    %2382 = vmatprep.subr.mxu0 0.0
    %2383 = vmatpush1.xpose.msra.mxu0 0.0
    %2384 = vmatprep.subr.mxu0 0.0
    %2385 = vmatpush1.xpose.msra.mxu0 0.0
    %2386 = vmatprep.subr.mxu0 0.0
    %2387 = vmatpush1.xpose.msra.mxu0 0.0
    %2388 = vmatprep.subr.mxu0 0.0
    %2389 = vmatpush1.xpose.msra.mxu0 0.0
    %2390 = vmatprep.subr.mxu0 0.0
    %2391 = vmatpush1.xpose.msra.mxu0 0.0
    %2392 = vmatprep.subr.mxu0 0.0
    %2393 = vmatpush1.xpose.msra.mxu0 0.0
    %2394 = vmatprep.subr.mxu0 0.0
    %2395 = vmatpush1.xpose.msra.mxu0 0.0
    %2396 = vmatprep.subr.mxu0 0.0
    %2397 = vmatpush1.xpose.msra.mxu0 0.0
    %2398 = vmatprep.subr.mxu0 0.0
    %2399 = vmatpush1.xpose.msra.mxu0 0.0
    %2400 = vmatprep.subr.mxu0 0.0
    %2401 = vmatpush1.xpose.msra.mxu0 0.0
    %2402 = vmatprep.subr.mxu0 0.0
    %2403 = vmatpush1.xpose.msra.mxu0 0.0
    %2404 = vmatprep.subr.mxu0 0.0
    %2405 = vmatpush1.xpose.msra.mxu0 0.0
    %2406 = vmatprep.subr.mxu0 0.0
    %2407 = vmatpush1.xpose.msra.mxu0 0.0
    %2408 = vmatprep.subr.mxu0 0.0
    %2409 = vmatpush1.xpose.msra.mxu0 0.0
    %2410 = vmatprep.subr.mxu0 0.0
    %2411 = vmatpush1.xpose.msra.mxu0 0.0
    %2412 = vmatprep.subr.mxu0 0.0
    %2413 = vmatpush1.xpose.msra.mxu0 0.0
    %2414 = vmatprep.subr.mxu0 0.0
    %2415 = vmatpush1.xpose.msra.mxu0 0.0
    %2416 = vmatprep.subr.mxu0 0.0
    %2417 = vmatpush1.xpose.msra.mxu0 0.0
    %2418 = vmatprep.subr.mxu0 0.0
    %2419 = vmatpush1.xpose.msra.mxu0 0.0
    %2420 = vmatprep.subr.mxu0 0.0
    %2421 = vmatpush1.xpose.msra.mxu0 0.0
    %2422 = vmatprep.subr.mxu0 0.0
    %2423 = vmatpush1.xpose.msra.mxu0 0.0
    %2424 = vmatprep.subr.mxu0 0.0
    %2425 = vmatpush1.xpose.msra.mxu0 0.0
    %2426 = vmatprep.subr.mxu0 0.0
    %2427 = vmatpush1.xpose.msra.mxu0 0.0
    %2428 = vmatprep.subr.mxu0 0.0
    %2429 = vmatpush1.xpose.msra.mxu0 0.0
    %2430 = vmatprep.mubr.f32.mxu0 0.0
    %2431 = vmatmul.mubr.f32.gmra.mrb[0].mxu0 %v2362
    %v2432 = vpop.f32.mrb[0].mxu0
    %v2433 = vadd.f32 %v66, %v2432
    %v2434 = vpop.f32.mrb[0].mxu0
    %2435 = vdwg.mxu0
    %v2436 = vsel %vm320, %v2433, -inf
    %2437 = vmax.xlane.f32.xlu0 %v2436
    %v2438 = vpop.xlane.xlu0 %2437
    %v2439 = vsub.f32 %v2433, %v2438
    %v2440 = vmul.f32 %v2439, 1.442695
    %v2441 = vpow.pop %v2440
    %v2442 = vsel %vm320, %v2441, 0.0
    %2443 = vadd.xlane.f32.xlu0 %v2442
    %v2444 = vpop.xlane.xlu0 %2443
    %v2445 = vrcp.pop %v2444
    %v2446 = vmul.f32 %v2441, %v2445
    %2447 = vrot.lane.b32.xlu0 %v2186, 56
    %v2448 = vpop.permute.xlu0 %2447
    %v2451 = vsel %vm320, %v2446, 0
    %2453 = vmatprep.subr.mxu0 0.0
    %2454 = vmatpush1.msra.mxu0 %v2448
    %2455 = vmatprep.subr.mxu0 0.0
    %2456 = vmatpush1.msra.mxu0 0.0
    %2457 = vmatprep.subr.mxu0 0.0
    %2458 = vmatpush1.msra.mxu0 0.0
    %2459 = vmatprep.subr.mxu0 0.0
    %2460 = vmatpush1.msra.mxu0 0.0
    %2461 = vmatprep.subr.mxu0 0.0
    %2462 = vmatpush1.msra.mxu0 0.0
    %2463 = vmatprep.subr.mxu0 0.0
    %2464 = vmatpush1.msra.mxu0 0.0
    %2465 = vmatprep.subr.mxu0 0.0
    %2466 = vmatpush1.msra.mxu0 0.0
    %2467 = vmatprep.subr.mxu0 0.0
    %2468 = vmatpush1.msra.mxu0 0.0
    %2469 = vmatprep.subr.mxu0 0.0
    %2470 = vmatpush1.msra.mxu0 0.0
    %2471 = vmatprep.subr.mxu0 0.0
    %2472 = vmatpush1.msra.mxu0 0.0
    %2473 = vmatprep.subr.mxu0 0.0
    %2474 = vmatpush1.msra.mxu0 0.0
    %2475 = vmatprep.subr.mxu0 0.0
    %2476 = vmatpush1.msra.mxu0 0.0
    %2477 = vmatprep.subr.mxu0 0.0
    %2478 = vmatpush1.msra.mxu0 0.0
    %2479 = vmatprep.subr.mxu0 0.0
    %2480 = vmatpush1.msra.mxu0 0.0
    %2481 = vmatprep.subr.mxu0 0.0
    %2482 = vmatpush1.msra.mxu0 0.0
    %2483 = vmatprep.subr.mxu0 0.0
    %2484 = vmatpush1.msra.mxu0 0.0
    %2485 = vmatprep.subr.mxu0 0.0
    %2486 = vmatpush1.msra.mxu0 0.0
    %2487 = vmatprep.subr.mxu0 0.0
    %2488 = vmatpush1.msra.mxu0 0.0
    %2489 = vmatprep.subr.mxu0 0.0
    %2490 = vmatpush1.msra.mxu0 0.0
    %2491 = vmatprep.subr.mxu0 0.0
    %2492 = vmatpush1.msra.mxu0 0.0
    %2493 = vmatprep.subr.mxu0 0.0
    %2494 = vmatpush1.msra.mxu0 0.0
    %2495 = vmatprep.subr.mxu0 0.0
    %2496 = vmatpush1.msra.mxu0 0.0
    %2497 = vmatprep.subr.mxu0 0.0
    %2498 = vmatpush1.msra.mxu0 0.0
    %2499 = vmatprep.subr.mxu0 0.0
    %2500 = vmatpush1.msra.mxu0 0.0
    %2501 = vmatprep.subr.mxu0 0.0
    %2502 = vmatpush1.msra.mxu0 0.0
    %2503 = vmatprep.subr.mxu0 0.0
    %2504 = vmatpush1.msra.mxu0 0.0
    %2505 = vmatprep.subr.mxu0 0.0
    %2506 = vmatpush1.msra.mxu0 0.0
    %2507 = vmatprep.subr.mxu0 0.0
    %2508 = vmatpush1.msra.mxu0 0.0
    %2509 = vmatprep.subr.mxu0 0.0
    %2510 = vmatpush1.msra.mxu0 0.0
    %2511 = vmatprep.subr.mxu0 0.0
    %2512 = vmatpush1.msra.mxu0 0.0
    %2513 = vmatprep.subr.mxu0 0.0
    %2514 = vmatpush1.msra.mxu0 0.0
    %2515 = vmatprep.subr.mxu0 0.0
    %2516 = vmatpush1.msra.mxu0 0.0
    %2517 = vmatprep.mubr.f32.mxu0 0.0
    %2518 = vmatmul.mubr.f32.gmra.mrb[0].mxu0 %v2451
    %v2519 = vpop.f32.mrb[0].mxu0
    %v2520 = vadd.f32 0.0, %v2519
    %v2521 = vpop.f32.mrb[0].mxu0
    %2522 = vdwg.mxu0
    %2523 = vrot.lane.b32.xlu0 %v2186, 112
    %v2524 = vpop.permute.xlu0 %2523
    %2525 = vrot.lane.b32.xlu0 %v2186, 80
    %v2526 = vpop.permute.xlu0 %2525
    %v2527 = vsel %vm320, %v2524, 0
    %v2529 = vsel %vm320, %v2526, 0
    %2531 = vmatprep.subr.mxu0 0.0
    %2532 = vmatpush1.xpose.msra.mxu0 %v2529
    %2533 = vmatprep.subr.mxu0 0.0
    %2534 = vmatpush1.xpose.msra.mxu0 0.0
    %2535 = vmatprep.subr.mxu0 0.0
    %2536 = vmatpush1.xpose.msra.mxu0 0.0
    %2537 = vmatprep.subr.mxu0 0.0
    %2538 = vmatpush1.xpose.msra.mxu0 0.0
    %2539 = vmatprep.subr.mxu0 0.0
    %2540 = vmatpush1.xpose.msra.mxu0 0.0
    %2541 = vmatprep.subr.mxu0 0.0
    %2542 = vmatpush1.xpose.msra.mxu0 0.0
    %2543 = vmatprep.subr.mxu0 0.0
    %2544 = vmatpush1.xpose.msra.mxu0 0.0
    %2545 = vmatprep.subr.mxu0 0.0
    %2546 = vmatpush1.xpose.msra.mxu0 0.0
    %2547 = vmatprep.subr.mxu0 0.0
    %2548 = vmatpush1.xpose.msra.mxu0 0.0
    %2549 = vmatprep.subr.mxu0 0.0
    %2550 = vmatpush1.xpose.msra.mxu0 0.0
    %2551 = vmatprep.subr.mxu0 0.0
    %2552 = vmatpush1.xpose.msra.mxu0 0.0
    %2553 = vmatprep.subr.mxu0 0.0
    %2554 = vmatpush1.xpose.msra.mxu0 0.0
    %2555 = vmatprep.subr.mxu0 0.0
    %2556 = vmatpush1.xpose.msra.mxu0 0.0
    %2557 = vmatprep.subr.mxu0 0.0
    %2558 = vmatpush1.xpose.msra.mxu0 0.0
    %2559 = vmatprep.subr.mxu0 0.0
    %2560 = vmatpush1.xpose.msra.mxu0 0.0
    %2561 = vmatprep.subr.mxu0 0.0
    %2562 = vmatpush1.xpose.msra.mxu0 0.0
    %2563 = vmatprep.subr.mxu0 0.0
    %2564 = vmatpush1.xpose.msra.mxu0 0.0
    %2565 = vmatprep.subr.mxu0 0.0
    %2566 = vmatpush1.xpose.msra.mxu0 0.0
    %2567 = vmatprep.subr.mxu0 0.0
    %2568 = vmatpush1.xpose.msra.mxu0 0.0
    %2569 = vmatprep.subr.mxu0 0.0
    %2570 = vmatpush1.xpose.msra.mxu0 0.0
    %2571 = vmatprep.subr.mxu0 0.0
    %2572 = vmatpush1.xpose.msra.mxu0 0.0
    %2573 = vmatprep.subr.mxu0 0.0
    %2574 = vmatpush1.xpose.msra.mxu0 0.0
    %2575 = vmatprep.subr.mxu0 0.0
    %2576 = vmatpush1.xpose.msra.mxu0 0.0
    %2577 = vmatprep.subr.mxu0 0.0
    %2578 = vmatpush1.xpose.msra.mxu0 0.0
    %2579 = vmatprep.subr.mxu0 0.0
    %2580 = vmatpush1.xpose.msra.mxu0 0.0
    %2581 = vmatprep.subr.mxu0 0.0
    %2582 = vmatpush1.xpose.msra.mxu0 0.0
    %2583 = vmatprep.subr.mxu0 0.0
    %2584 = vmatpush1.xpose.msra.mxu0 0.0
    %2585 = vmatprep.subr.mxu0 0.0
    %2586 = vmatpush1.xpose.msra.mxu0 0.0
    %2587 = vmatprep.subr.mxu0 0.0
    %2588 = vmatpush1.xpose.msra.mxu0 0.0
    %2589 = vmatprep.subr.mxu0 0.0
    %2590 = vmatpush1.xpose.msra.mxu0 0.0
    %2591 = vmatprep.subr.mxu0 0.0
    %2592 = vmatpush1.xpose.msra.mxu0 0.0
    %2593 = vmatprep.subr.mxu0 0.0
    %2594 = vmatpush1.xpose.msra.mxu0 0.0
    %2595 = vmatprep.mubr.f32.mxu0 0.0
    %2596 = vmatmul.mubr.f32.gmra.mrb[0].mxu0 %v2527
    %v2597 = vpop.f32.mrb[0].mxu0
    %v2598 = vadd.f32 %v66, %v2597
    %v2599 = vpop.f32.mrb[0].mxu0
    %2600 = vdwg.mxu0
    %v2601 = vsel %vm320, %v2598, -inf
    %2602 = vmax.xlane.f32.xlu0 %v2601
    %v2603 = vpop.xlane.xlu0 %2602
    %v2604 = vsub.f32 %v2598, %v2603
    %v2605 = vmul.f32 %v2604, 1.442695
    %v2606 = vpow.pop %v2605
    %v2607 = vsel %vm320, %v2606, 0.0
    %2608 = vadd.xlane.f32.xlu0 %v2607
    %v2609 = vpop.xlane.xlu0 %2608
    %v2610 = vrcp.pop %v2609
    %v2611 = vmul.f32 %v2606, %v2610
    %2612 = vrot.lane.b32.xlu0 %v2186, 48
    %v2613 = vpop.permute.xlu0 %2612
    %v2616 = vsel %vm320, %v2611, 0
    %2618 = vmatprep.subr.mxu0 0.0
    %2619 = vmatpush1.msra.mxu0 %v2613
    %2620 = vmatprep.subr.mxu0 0.0
    %2621 = vmatpush1.msra.mxu0 0.0
    %2622 = vmatprep.subr.mxu0 0.0
    %2623 = vmatpush1.msra.mxu0 0.0
    %2624 = vmatprep.subr.mxu0 0.0
    %2625 = vmatpush1.msra.mxu0 0.0
    %2626 = vmatprep.subr.mxu0 0.0
    %2627 = vmatpush1.msra.mxu0 0.0
    %2628 = vmatprep.subr.mxu0 0.0
    %2629 = vmatpush1.msra.mxu0 0.0
    %2630 = vmatprep.subr.mxu0 0.0
    %2631 = vmatpush1.msra.mxu0 0.0
    %2632 = vmatprep.subr.mxu0 0.0
    %2633 = vmatpush1.msra.mxu0 0.0
    %2634 = vmatprep.subr.mxu0 0.0
    %2635 = vmatpush1.msra.mxu0 0.0
    %2636 = vmatprep.subr.mxu0 0.0
    %2637 = vmatpush1.msra.mxu0 0.0
    %2638 = vmatprep.subr.mxu0 0.0
    %2639 = vmatpush1.msra.mxu0 0.0
    %2640 = vmatprep.subr.mxu0 0.0
    %2641 = vmatpush1.msra.mxu0 0.0
    %2642 = vmatprep.subr.mxu0 0.0
    %2643 = vmatpush1.msra.mxu0 0.0
    %2644 = vmatprep.subr.mxu0 0.0
    %2645 = vmatpush1.msra.mxu0 0.0
    %2646 = vmatprep.subr.mxu0 0.0
    %2647 = vmatpush1.msra.mxu0 0.0
    %2648 = vmatprep.subr.mxu0 0.0
    %2649 = vmatpush1.msra.mxu0 0.0
    %2650 = vmatprep.subr.mxu0 0.0
    %2651 = vmatpush1.msra.mxu0 0.0
    %2652 = vmatprep.subr.mxu0 0.0
    %2653 = vmatpush1.msra.mxu0 0.0
    %2654 = vmatprep.subr.mxu0 0.0
    %2655 = vmatpush1.msra.mxu0 0.0
    %2656 = vmatprep.subr.mxu0 0.0
    %2657 = vmatpush1.msra.mxu0 0.0
    %2658 = vmatprep.subr.mxu0 0.0
    %2659 = vmatpush1.msra.mxu0 0.0
    %2660 = vmatprep.subr.mxu0 0.0
    %2661 = vmatpush1.msra.mxu0 0.0
    %2662 = vmatprep.subr.mxu0 0.0
    %2663 = vmatpush1.msra.mxu0 0.0
    %2664 = vmatprep.subr.mxu0 0.0
    %2665 = vmatpush1.msra.mxu0 0.0
    %2666 = vmatprep.subr.mxu0 0.0
    %2667 = vmatpush1.msra.mxu0 0.0
    %2668 = vmatprep.subr.mxu0 0.0
    %2669 = vmatpush1.msra.mxu0 0.0
    %2670 = vmatprep.subr.mxu0 0.0
    %2671 = vmatpush1.msra.mxu0 0.0
    %2672 = vmatprep.subr.mxu0 0.0
    %2673 = vmatpush1.msra.mxu0 0.0
    %2674 = vmatprep.subr.mxu0 0.0
    %2675 = vmatpush1.msra.mxu0 0.0
    %2676 = vmatprep.subr.mxu0 0.0
    %2677 = vmatpush1.msra.mxu0 0.0
    %2678 = vmatprep.subr.mxu0 0.0
    %2679 = vmatpush1.msra.mxu0 0.0
    %2680 = vmatprep.subr.mxu0 0.0
    %2681 = vmatpush1.msra.mxu0 0.0
    %2682 = vmatprep.mubr.f32.mxu0 0.0
    %2683 = vmatmul.mubr.f32.gmra.mrb[0].mxu0 %v2616
    %v2684 = vpop.f32.mrb[0].mxu0
    %v2685 = vadd.f32 0.0, %v2684
    %v2686 = vpop.f32.mrb[0].mxu0
    %2687 = vdwg.mxu0
    %2688 = vrot.lane.b32.xlu0 %v2186, 104
    %v2689 = vpop.permute.xlu0 %2688
    %2690 = vrot.lane.b32.xlu0 %v2186, 72
    %v2691 = vpop.permute.xlu0 %2690
    %v2692 = vsel %vm320, %v2689, 0
    %v2694 = vsel %vm320, %v2691, 0
    %2696 = vmatprep.subr.mxu0 0.0
    %2697 = vmatpush1.xpose.msra.mxu0 %v2694
    %2698 = vmatprep.subr.mxu0 0.0
    %2699 = vmatpush1.xpose.msra.mxu0 0.0
    %2700 = vmatprep.subr.mxu0 0.0
    %2701 = vmatpush1.xpose.msra.mxu0 0.0
    %2702 = vmatprep.subr.mxu0 0.0
    %2703 = vmatpush1.xpose.msra.mxu0 0.0
    %2704 = vmatprep.subr.mxu0 0.0
    %2705 = vmatpush1.xpose.msra.mxu0 0.0
    %2706 = vmatprep.subr.mxu0 0.0
    %2707 = vmatpush1.xpose.msra.mxu0 0.0
    %2708 = vmatprep.subr.mxu0 0.0
    %2709 = vmatpush1.xpose.msra.mxu0 0.0
    %2710 = vmatprep.subr.mxu0 0.0
    %2711 = vmatpush1.xpose.msra.mxu0 0.0
    %2712 = vmatprep.subr.mxu0 0.0
    %2713 = vmatpush1.xpose.msra.mxu0 0.0
    %2714 = vmatprep.subr.mxu0 0.0
    %2715 = vmatpush1.xpose.msra.mxu0 0.0
    %2716 = vmatprep.subr.mxu0 0.0
    %2717 = vmatpush1.xpose.msra.mxu0 0.0
    %2718 = vmatprep.subr.mxu0 0.0
    %2719 = vmatpush1.xpose.msra.mxu0 0.0
    %2720 = vmatprep.subr.mxu0 0.0
    %2721 = vmatpush1.xpose.msra.mxu0 0.0
    %2722 = vmatprep.subr.mxu0 0.0
    %2723 = vmatpush1.xpose.msra.mxu0 0.0
    %2724 = vmatprep.subr.mxu0 0.0
    %2725 = vmatpush1.xpose.msra.mxu0 0.0
    %2726 = vmatprep.subr.mxu0 0.0
    %2727 = vmatpush1.xpose.msra.mxu0 0.0
    %2728 = vmatprep.subr.mxu0 0.0
    %2729 = vmatpush1.xpose.msra.mxu0 0.0
    %2730 = vmatprep.subr.mxu0 0.0
    %2731 = vmatpush1.xpose.msra.mxu0 0.0
    %2732 = vmatprep.subr.mxu0 0.0
    %2733 = vmatpush1.xpose.msra.mxu0 0.0
    %2734 = vmatprep.subr.mxu0 0.0
    %2735 = vmatpush1.xpose.msra.mxu0 0.0
    %2736 = vmatprep.subr.mxu0 0.0
    %2737 = vmatpush1.xpose.msra.mxu0 0.0
    %2738 = vmatprep.subr.mxu0 0.0
    %2739 = vmatpush1.xpose.msra.mxu0 0.0
    %2740 = vmatprep.subr.mxu0 0.0
    %2741 = vmatpush1.xpose.msra.mxu0 0.0
    %2742 = vmatprep.subr.mxu0 0.0
    %2743 = vmatpush1.xpose.msra.mxu0 0.0
    %2744 = vmatprep.subr.mxu0 0.0
    %2745 = vmatpush1.xpose.msra.mxu0 0.0
    %2746 = vmatprep.subr.mxu0 0.0
    %2747 = vmatpush1.xpose.msra.mxu0 0.0
    %2748 = vmatprep.subr.mxu0 0.0
    %2749 = vmatpush1.xpose.msra.mxu0 0.0
    %2750 = vmatprep.subr.mxu0 0.0
    %2751 = vmatpush1.xpose.msra.mxu0 0.0
    %2752 = vmatprep.subr.mxu0 0.0
    %2753 = vmatpush1.xpose.msra.mxu0 0.0
    %2754 = vmatprep.subr.mxu0 0.0
    %2755 = vmatpush1.xpose.msra.mxu0 0.0
    %2756 = vmatprep.subr.mxu0 0.0
    %2757 = vmatpush1.xpose.msra.mxu0 0.0
    %2758 = vmatprep.subr.mxu0 0.0
    %2759 = vmatpush1.xpose.msra.mxu0 0.0
    %2760 = vmatprep.mubr.f32.mxu0 0.0
    %2761 = vmatmul.mubr.f32.gmra.mrb[0].mxu0 %v2692
    %v2762 = vpop.f32.mrb[0].mxu0
    %v2763 = vadd.f32 %v66, %v2762
    %v2764 = vpop.f32.mrb[0].mxu0
    %2765 = vdwg.mxu0
    %v2766 = vsel %vm320, %v2763, -inf
    %2767 = vmax.xlane.f32.xlu0 %v2766
    %v2768 = vpop.xlane.xlu0 %2767
    %v2769 = vsub.f32 %v2763, %v2768
    %v2770 = vmul.f32 %v2769, 1.442695
    %v2771 = vpow.pop %v2770
    %v2772 = vsel %vm320, %v2771, 0.0
    %2773 = vadd.xlane.f32.xlu0 %v2772
    %v2774 = vpop.xlane.xlu0 %2773
    %v2775 = vrcp.pop %v2774
    %v2776 = vmul.f32 %v2771, %v2775
    %2777 = vrot.lane.b32.xlu0 %v2186, 40
    %v2778 = vpop.permute.xlu0 %2777
    %v2781 = vsel %vm320, %v2776, 0
    %2783 = vmatprep.subr.mxu0 0.0
    %2784 = vmatpush1.msra.mxu0 %v2778
    %2785 = vmatprep.subr.mxu0 0.0
    %2786 = vmatpush1.msra.mxu0 0.0
    %2787 = vmatprep.subr.mxu0 0.0
    %2788 = vmatpush1.msra.mxu0 0.0
    %2789 = vmatprep.subr.mxu0 0.0
    %2790 = vmatpush1.msra.mxu0 0.0
    %2791 = vmatprep.subr.mxu0 0.0
    %2792 = vmatpush1.msra.mxu0 0.0
    %2793 = vmatprep.subr.mxu0 0.0
    %2794 = vmatpush1.msra.mxu0 0.0
    %2795 = vmatprep.subr.mxu0 0.0
    %2796 = vmatpush1.msra.mxu0 0.0
    %2797 = vmatprep.subr.mxu0 0.0
    %2798 = vmatpush1.msra.mxu0 0.0
    %2799 = vmatprep.subr.mxu0 0.0
    %2800 = vmatpush1.msra.mxu0 0.0
    %2801 = vmatprep.subr.mxu0 0.0
    %2802 = vmatpush1.msra.mxu0 0.0
    %2803 = vmatprep.subr.mxu0 0.0
    %2804 = vmatpush1.msra.mxu0 0.0
    %2805 = vmatprep.subr.mxu0 0.0
    %2806 = vmatpush1.msra.mxu0 0.0
    %2807 = vmatprep.subr.mxu0 0.0
    %2808 = vmatpush1.msra.mxu0 0.0
    %2809 = vmatprep.subr.mxu0 0.0
    %2810 = vmatpush1.msra.mxu0 0.0
    %2811 = vmatprep.subr.mxu0 0.0
    %2812 = vmatpush1.msra.mxu0 0.0
    %2813 = vmatprep.subr.mxu0 0.0
    %2814 = vmatpush1.msra.mxu0 0.0
    %2815 = vmatprep.subr.mxu0 0.0
    %2816 = vmatpush1.msra.mxu0 0.0
    %2817 = vmatprep.subr.mxu0 0.0
    %2818 = vmatpush1.msra.mxu0 0.0
    %2819 = vmatprep.subr.mxu0 0.0
    %2820 = vmatpush1.msra.mxu0 0.0
    %2821 = vmatprep.subr.mxu0 0.0
    %2822 = vmatpush1.msra.mxu0 0.0
    %2823 = vmatprep.subr.mxu0 0.0
    %2824 = vmatpush1.msra.mxu0 0.0
    %2825 = vmatprep.subr.mxu0 0.0
    %2826 = vmatpush1.msra.mxu0 0.0
    %2827 = vmatprep.subr.mxu0 0.0
    %2828 = vmatpush1.msra.mxu0 0.0
    %2829 = vmatprep.subr.mxu0 0.0
    %2830 = vmatpush1.msra.mxu0 0.0
    %2831 = vmatprep.subr.mxu0 0.0
    %2832 = vmatpush1.msra.mxu0 0.0
    %2833 = vmatprep.subr.mxu0 0.0
    %2834 = vmatpush1.msra.mxu0 0.0
    %2835 = vmatprep.subr.mxu0 0.0
    %2836 = vmatpush1.msra.mxu0 0.0
    %2837 = vmatprep.subr.mxu0 0.0
    %2838 = vmatpush1.msra.mxu0 0.0
    %2839 = vmatprep.subr.mxu0 0.0
    %2840 = vmatpush1.msra.mxu0 0.0
    %2841 = vmatprep.subr.mxu0 0.0
    %2842 = vmatpush1.msra.mxu0 0.0
    %2843 = vmatprep.subr.mxu0 0.0
    %2844 = vmatpush1.msra.mxu0 0.0
    %2845 = vmatprep.subr.mxu0 0.0
    %2846 = vmatpush1.msra.mxu0 0.0
    %2847 = vmatprep.mubr.f32.mxu0 0.0
    %2848 = vmatmul.mubr.f32.gmra.mrb[0].mxu0 %v2781
    %v2849 = vpop.f32.mrb[0].mxu0
    %v2850 = vadd.f32 0.0, %v2849
    %v2851 = vpop.f32.mrb[0].mxu0
    %2852 = vdwg.mxu0
    %2854 = vrot.lane.b32.xlu0 %v2520, 8
    %v2855 = vpop.permute.xlu0 %2854
    %2858 = vrot.lane.b32.xlu0 %v2685, 16
    %v2859 = vpop.permute.xlu0 %2858
    %2862 = vrot.lane.b32.xlu0 %v2850, 24
    %v2863 = vpop.permute.xlu0 %2862
    %v2865 = vsel %vm320, %v2355, %v2855
    %v2866 = vsel %vm990, %v2865, %v2859
    %v2867 = vsel %vm992, %v2866, %v2863
    %2869 = vrot.lane.b32.xlu0 %v2191, 96
    %v2870 = vpop.permute.xlu0 %2869
    %v2871 = vsel %vm320, %v2191, 0
    %v2873 = vsel %vm320, %v2870, 0
    %2875 = vmatprep.subr.mxu0 0.0
    %2876 = vmatpush1.xpose.msra.mxu0 %v2873
    %2877 = vmatprep.subr.mxu0 0.0
    %2878 = vmatpush1.xpose.msra.mxu0 0.0
    %2879 = vmatprep.subr.mxu0 0.0
    %2880 = vmatpush1.xpose.msra.mxu0 0.0
    %2881 = vmatprep.subr.mxu0 0.0
    %2882 = vmatpush1.xpose.msra.mxu0 0.0
    %2883 = vmatprep.subr.mxu0 0.0
    %2884 = vmatpush1.xpose.msra.mxu0 0.0
    %2885 = vmatprep.subr.mxu0 0.0
    %2886 = vmatpush1.xpose.msra.mxu0 0.0
    %2887 = vmatprep.subr.mxu0 0.0
    %2888 = vmatpush1.xpose.msra.mxu0 0.0
    %2889 = vmatprep.subr.mxu0 0.0
    %2890 = vmatpush1.xpose.msra.mxu0 0.0
    %2891 = vmatprep.subr.mxu0 0.0
    %2892 = vmatpush1.xpose.msra.mxu0 0.0
    %2893 = vmatprep.subr.mxu0 0.0
    %2894 = vmatpush1.xpose.msra.mxu0 0.0
    %2895 = vmatprep.subr.mxu0 0.0
    %2896 = vmatpush1.xpose.msra.mxu0 0.0
    %2897 = vmatprep.subr.mxu0 0.0
    %2898 = vmatpush1.xpose.msra.mxu0 0.0
    %2899 = vmatprep.subr.mxu0 0.0
    %2900 = vmatpush1.xpose.msra.mxu0 0.0
    %2901 = vmatprep.subr.mxu0 0.0
    %2902 = vmatpush1.xpose.msra.mxu0 0.0
    %2903 = vmatprep.subr.mxu0 0.0
    %2904 = vmatpush1.xpose.msra.mxu0 0.0
    %2905 = vmatprep.subr.mxu0 0.0
    %2906 = vmatpush1.xpose.msra.mxu0 0.0
    %2907 = vmatprep.subr.mxu0 0.0
    %2908 = vmatpush1.xpose.msra.mxu0 0.0
    %2909 = vmatprep.subr.mxu0 0.0
    %2910 = vmatpush1.xpose.msra.mxu0 0.0
    %2911 = vmatprep.subr.mxu0 0.0
    %2912 = vmatpush1.xpose.msra.mxu0 0.0
    %2913 = vmatprep.subr.mxu0 0.0
    %2914 = vmatpush1.xpose.msra.mxu0 0.0
    %2915 = vmatprep.subr.mxu0 0.0
    %2916 = vmatpush1.xpose.msra.mxu0 0.0
    %2917 = vmatprep.subr.mxu0 0.0
    %2918 = vmatpush1.xpose.msra.mxu0 0.0
    %2919 = vmatprep.subr.mxu0 0.0
    %2920 = vmatpush1.xpose.msra.mxu0 0.0
    %2921 = vmatprep.subr.mxu0 0.0
    %2922 = vmatpush1.xpose.msra.mxu0 0.0
    %2923 = vmatprep.subr.mxu0 0.0
    %2924 = vmatpush1.xpose.msra.mxu0 0.0
    %2925 = vmatprep.subr.mxu0 0.0
    %2926 = vmatpush1.xpose.msra.mxu0 0.0
    %2927 = vmatprep.subr.mxu0 0.0
    %2928 = vmatpush1.xpose.msra.mxu0 0.0
    %2929 = vmatprep.subr.mxu0 0.0
    %2930 = vmatpush1.xpose.msra.mxu0 0.0
    %2931 = vmatprep.subr.mxu0 0.0
    %2932 = vmatpush1.xpose.msra.mxu0 0.0
    %2933 = vmatprep.subr.mxu0 0.0
    %2934 = vmatpush1.xpose.msra.mxu0 0.0
    %2935 = vmatprep.subr.mxu0 0.0
    %2936 = vmatpush1.xpose.msra.mxu0 0.0
    %2937 = vmatprep.subr.mxu0 0.0
    %2938 = vmatpush1.xpose.msra.mxu0 0.0
    %2939 = vmatprep.mubr.f32.mxu0 0.0
    %2940 = vmatmul.mubr.f32.gmra.mrb[0].mxu0 %v2871
    %v2941 = vpop.f32.mrb[0].mxu0
    %v2942 = vadd.f32 %v66, %v2941
    %v2943 = vpop.f32.mrb[0].mxu0
    %2944 = vdwg.mxu0
    %v2945 = vsel %vm320, %v2942, -inf
    %2946 = vmax.xlane.f32.xlu0 %v2945
    %v2947 = vpop.xlane.xlu0 %2946
    %v2948 = vsub.f32 %v2942, %v2947
    %v2949 = vmul.f32 %v2948, 1.442695
    %v2950 = vpow.pop %v2949
    %v2951 = vsel %vm320, %v2950, 0.0
    %2952 = vadd.xlane.f32.xlu0 %v2951
    %v2953 = vpop.xlane.xlu0 %2952
    %v2954 = vrcp.pop %v2953
    %v2955 = vmul.f32 %v2950, %v2954
    %2956 = vrot.lane.b32.xlu0 %v2191, 64
    %v2957 = vpop.permute.xlu0 %2956
    %v2960 = vsel %vm320, %v2955, 0
    %2962 = vmatprep.subr.mxu0 0.0
    %2963 = vmatpush1.msra.mxu0 %v2957
    %2964 = vmatprep.subr.mxu0 0.0
    %2965 = vmatpush1.msra.mxu0 0.0
    %2966 = vmatprep.subr.mxu0 0.0
    %2967 = vmatpush1.msra.mxu0 0.0
    %2968 = vmatprep.subr.mxu0 0.0
    %2969 = vmatpush1.msra.mxu0 0.0
    %2970 = vmatprep.subr.mxu0 0.0
    %2971 = vmatpush1.msra.mxu0 0.0
    %2972 = vmatprep.subr.mxu0 0.0
    %2973 = vmatpush1.msra.mxu0 0.0
    %2974 = vmatprep.subr.mxu0 0.0
    %2975 = vmatpush1.msra.mxu0 0.0
    %2976 = vmatprep.subr.mxu0 0.0
    %2977 = vmatpush1.msra.mxu0 0.0
    %2978 = vmatprep.subr.mxu0 0.0
    %2979 = vmatpush1.msra.mxu0 0.0
    %2980 = vmatprep.subr.mxu0 0.0
    %2981 = vmatpush1.msra.mxu0 0.0
    %2982 = vmatprep.subr.mxu0 0.0
    %2983 = vmatpush1.msra.mxu0 0.0
    %2984 = vmatprep.subr.mxu0 0.0
    %2985 = vmatpush1.msra.mxu0 0.0
    %2986 = vmatprep.subr.mxu0 0.0
    %2987 = vmatpush1.msra.mxu0 0.0
    %2988 = vmatprep.subr.mxu0 0.0
    %2989 = vmatpush1.msra.mxu0 0.0
    %2990 = vmatprep.subr.mxu0 0.0
    %2991 = vmatpush1.msra.mxu0 0.0
    %2992 = vmatprep.subr.mxu0 0.0
    %2993 = vmatpush1.msra.mxu0 0.0
    %2994 = vmatprep.subr.mxu0 0.0
    %2995 = vmatpush1.msra.mxu0 0.0
    %2996 = vmatprep.subr.mxu0 0.0
    %2997 = vmatpush1.msra.mxu0 0.0
    %2998 = vmatprep.subr.mxu0 0.0
    %2999 = vmatpush1.msra.mxu0 0.0
    %3000 = vmatprep.subr.mxu0 0.0
    %3001 = vmatpush1.msra.mxu0 0.0
    %3002 = vmatprep.subr.mxu0 0.0
    %3003 = vmatpush1.msra.mxu0 0.0
    %3004 = vmatprep.subr.mxu0 0.0
    %3005 = vmatpush1.msra.mxu0 0.0
    %3006 = vmatprep.subr.mxu0 0.0
    %3007 = vmatpush1.msra.mxu0 0.0
    %3008 = vmatprep.subr.mxu0 0.0
    %3009 = vmatpush1.msra.mxu0 0.0
    %3010 = vmatprep.subr.mxu0 0.0
    %3011 = vmatpush1.msra.mxu0 0.0
    %3012 = vmatprep.subr.mxu0 0.0
    %3013 = vmatpush1.msra.mxu0 0.0
    %3014 = vmatprep.subr.mxu0 0.0
    %3015 = vmatpush1.msra.mxu0 0.0
    %3016 = vmatprep.subr.mxu0 0.0
    %3017 = vmatpush1.msra.mxu0 0.0
    %3018 = vmatprep.subr.mxu0 0.0
    %3019 = vmatpush1.msra.mxu0 0.0
    %3020 = vmatprep.subr.mxu0 0.0
    %3021 = vmatpush1.msra.mxu0 0.0
    %3022 = vmatprep.subr.mxu0 0.0
    %3023 = vmatpush1.msra.mxu0 0.0
    %3024 = vmatprep.subr.mxu0 0.0
    %3025 = vmatpush1.msra.mxu0 0.0
    %3026 = vmatprep.mubr.f32.mxu0 0.0
    %3027 = vmatmul.mubr.f32.gmra.mrb[0].mxu0 %v2960
    %v3028 = vpop.f32.mrb[0].mxu0
    %v3029 = vadd.f32 0.0, %v3028
    %v3030 = vpop.f32.mrb[0].mxu0
    %3031 = vdwg.mxu0
    %3032 = vrot.lane.b32.xlu0 %v2191, 120
    %v3033 = vpop.permute.xlu0 %3032
    %3034 = vrot.lane.b32.xlu0 %v2191, 88
    %v3035 = vpop.permute.xlu0 %3034
    %v3036 = vsel %vm320, %v3033, 0
    %v3038 = vsel %vm320, %v3035, 0
    %3040 = vmatprep.subr.mxu0 0.0
    %3041 = vmatpush1.xpose.msra.mxu0 %v3038
    %3042 = vmatprep.subr.mxu0 0.0
    %3043 = vmatpush1.xpose.msra.mxu0 0.0
    %3044 = vmatprep.subr.mxu0 0.0
    %3045 = vmatpush1.xpose.msra.mxu0 0.0
    %3046 = vmatprep.subr.mxu0 0.0
    %3047 = vmatpush1.xpose.msra.mxu0 0.0
    %3048 = vmatprep.subr.mxu0 0.0
    %3049 = vmatpush1.xpose.msra.mxu0 0.0
    %3050 = vmatprep.subr.mxu0 0.0
    %3051 = vmatpush1.xpose.msra.mxu0 0.0
    %3052 = vmatprep.subr.mxu0 0.0
    %3053 = vmatpush1.xpose.msra.mxu0 0.0
    %3054 = vmatprep.subr.mxu0 0.0
    %3055 = vmatpush1.xpose.msra.mxu0 0.0
    %3056 = vmatprep.subr.mxu0 0.0
    %3057 = vmatpush1.xpose.msra.mxu0 0.0
    %3058 = vmatprep.subr.mxu0 0.0
    %3059 = vmatpush1.xpose.msra.mxu0 0.0
    %3060 = vmatprep.subr.mxu0 0.0
    %3061 = vmatpush1.xpose.msra.mxu0 0.0
    %3062 = vmatprep.subr.mxu0 0.0
    %3063 = vmatpush1.xpose.msra.mxu0 0.0
    %3064 = vmatprep.subr.mxu0 0.0
    %3065 = vmatpush1.xpose.msra.mxu0 0.0
    %3066 = vmatprep.subr.mxu0 0.0
    %3067 = vmatpush1.xpose.msra.mxu0 0.0
    %3068 = vmatprep.subr.mxu0 0.0
    %3069 = vmatpush1.xpose.msra.mxu0 0.0
    %3070 = vmatprep.subr.mxu0 0.0
    %3071 = vmatpush1.xpose.msra.mxu0 0.0
    %3072 = vmatprep.subr.mxu0 0.0
    %3073 = vmatpush1.xpose.msra.mxu0 0.0
    %3074 = vmatprep.subr.mxu0 0.0
    %3075 = vmatpush1.xpose.msra.mxu0 0.0
    %3076 = vmatprep.subr.mxu0 0.0
    %3077 = vmatpush1.xpose.msra.mxu0 0.0
    %3078 = vmatprep.subr.mxu0 0.0
    %3079 = vmatpush1.xpose.msra.mxu0 0.0
    %3080 = vmatprep.subr.mxu0 0.0
    %3081 = vmatpush1.xpose.msra.mxu0 0.0
    %3082 = vmatprep.subr.mxu0 0.0
    %3083 = vmatpush1.xpose.msra.mxu0 0.0
    %3084 = vmatprep.subr.mxu0 0.0
    %3085 = vmatpush1.xpose.msra.mxu0 0.0
    %3086 = vmatprep.subr.mxu0 0.0
    %3087 = vmatpush1.xpose.msra.mxu0 0.0
    %3088 = vmatprep.subr.mxu0 0.0
    %3089 = vmatpush1.xpose.msra.mxu0 0.0
    %3090 = vmatprep.subr.mxu0 0.0
    %3091 = vmatpush1.xpose.msra.mxu0 0.0
    %3092 = vmatprep.subr.mxu0 0.0
    %3093 = vmatpush1.xpose.msra.mxu0 0.0
    %3094 = vmatprep.subr.mxu0 0.0
    %3095 = vmatpush1.xpose.msra.mxu0 0.0
    %3096 = vmatprep.subr.mxu0 0.0
    %3097 = vmatpush1.xpose.msra.mxu0 0.0
    %3098 = vmatprep.subr.mxu0 0.0
    %3099 = vmatpush1.xpose.msra.mxu0 0.0
    %3100 = vmatprep.subr.mxu0 0.0
    %3101 = vmatpush1.xpose.msra.mxu0 0.0
    %3102 = vmatprep.subr.mxu0 0.0
    %3103 = vmatpush1.xpose.msra.mxu0 0.0
    %3104 = vmatprep.mubr.f32.mxu0 0.0
    %3105 = vmatmul.mubr.f32.gmra.mrb[0].mxu0 %v3036
    %v3106 = vpop.f32.mrb[0].mxu0
    %v3107 = vadd.f32 %v66, %v3106
    %v3108 = vpop.f32.mrb[0].mxu0
    %3109 = vdwg.mxu0
    %v3110 = vsel %vm320, %v3107, -inf
    %3111 = vmax.xlane.f32.xlu0 %v3110
    %v3112 = vpop.xlane.xlu0 %3111
    %v3113 = vsub.f32 %v3107, %v3112
    %v3114 = vmul.f32 %v3113, 1.442695
    %v3115 = vpow.pop %v3114
    %v3116 = vsel %vm320, %v3115, 0.0
    %3117 = vadd.xlane.f32.xlu0 %v3116
    %v3118 = vpop.xlane.xlu0 %3117
    %v3119 = vrcp.pop %v3118
    %v3120 = vmul.f32 %v3115, %v3119
    %3121 = vrot.lane.b32.xlu0 %v2191, 56
    %v3122 = vpop.permute.xlu0 %3121
    %v3125 = vsel %vm320, %v3120, 0
    %3127 = vmatprep.subr.mxu0 0.0
    %3128 = vmatpush1.msra.mxu0 %v3122
    %3129 = vmatprep.subr.mxu0 0.0
    %3130 = vmatpush1.msra.mxu0 0.0
    %3131 = vmatprep.subr.mxu0 0.0
    %3132 = vmatpush1.msra.mxu0 0.0
    %3133 = vmatprep.subr.mxu0 0.0
    %3134 = vmatpush1.msra.mxu0 0.0
    %3135 = vmatprep.subr.mxu0 0.0
    %3136 = vmatpush1.msra.mxu0 0.0
    %3137 = vmatprep.subr.mxu0 0.0
    %3138 = vmatpush1.msra.mxu0 0.0
    %3139 = vmatprep.subr.mxu0 0.0
    %3140 = vmatpush1.msra.mxu0 0.0
    %3141 = vmatprep.subr.mxu0 0.0
    %3142 = vmatpush1.msra.mxu0 0.0
    %3143 = vmatprep.subr.mxu0 0.0
    %3144 = vmatpush1.msra.mxu0 0.0
    %3145 = vmatprep.subr.mxu0 0.0
    %3146 = vmatpush1.msra.mxu0 0.0
    %3147 = vmatprep.subr.mxu0 0.0
    %3148 = vmatpush1.msra.mxu0 0.0
    %3149 = vmatprep.subr.mxu0 0.0
    %3150 = vmatpush1.msra.mxu0 0.0
    %3151 = vmatprep.subr.mxu0 0.0
    %3152 = vmatpush1.msra.mxu0 0.0
    %3153 = vmatprep.subr.mxu0 0.0
    %3154 = vmatpush1.msra.mxu0 0.0
    %3155 = vmatprep.subr.mxu0 0.0
    %3156 = vmatpush1.msra.mxu0 0.0
    %3157 = vmatprep.subr.mxu0 0.0
    %3158 = vmatpush1.msra.mxu0 0.0
    %3159 = vmatprep.subr.mxu0 0.0
    %3160 = vmatpush1.msra.mxu0 0.0
    %3161 = vmatprep.subr.mxu0 0.0
    %3162 = vmatpush1.msra.mxu0 0.0
    %3163 = vmatprep.subr.mxu0 0.0
    %3164 = vmatpush1.msra.mxu0 0.0
    %3165 = vmatprep.subr.mxu0 0.0
    %3166 = vmatpush1.msra.mxu0 0.0
    %3167 = vmatprep.subr.mxu0 0.0
    %3168 = vmatpush1.msra.mxu0 0.0
    %3169 = vmatprep.subr.mxu0 0.0
    %3170 = vmatpush1.msra.mxu0 0.0
    %3171 = vmatprep.subr.mxu0 0.0
    %3172 = vmatpush1.msra.mxu0 0.0
    %3173 = vmatprep.subr.mxu0 0.0
    %3174 = vmatpush1.msra.mxu0 0.0
    %3175 = vmatprep.subr.mxu0 0.0
    %3176 = vmatpush1.msra.mxu0 0.0
    %3177 = vmatprep.subr.mxu0 0.0
    %3178 = vmatpush1.msra.mxu0 0.0
    %3179 = vmatprep.subr.mxu0 0.0
    %3180 = vmatpush1.msra.mxu0 0.0
    %3181 = vmatprep.subr.mxu0 0.0
    %3182 = vmatpush1.msra.mxu0 0.0
    %3183 = vmatprep.subr.mxu0 0.0
    %3184 = vmatpush1.msra.mxu0 0.0
    %3185 = vmatprep.subr.mxu0 0.0
    %3186 = vmatpush1.msra.mxu0 0.0
    %3187 = vmatprep.subr.mxu0 0.0
    %3188 = vmatpush1.msra.mxu0 0.0
    %3189 = vmatprep.subr.mxu0 0.0
    %3190 = vmatpush1.msra.mxu0 0.0
    %3191 = vmatprep.mubr.f32.mxu0 0.0
    %3192 = vmatmul.mubr.f32.gmra.mrb[0].mxu0 %v3125
    %v3193 = vpop.f32.mrb[0].mxu0
    %v3194 = vadd.f32 0.0, %v3193
    %v3195 = vpop.f32.mrb[0].mxu0
    %3196 = vdwg.mxu0
    %3197 = vrot.lane.b32.xlu0 %v2191, 112
    %v3198 = vpop.permute.xlu0 %3197
    %3199 = vrot.lane.b32.xlu0 %v2191, 80
    %v3200 = vpop.permute.xlu0 %3199
    %v3201 = vsel %vm320, %v3198, 0
    %v3203 = vsel %vm320, %v3200, 0
    %3205 = vmatprep.subr.mxu0 0.0
    %3206 = vmatpush1.xpose.msra.mxu0 %v3203
    %3207 = vmatprep.subr.mxu0 0.0
    %3208 = vmatpush1.xpose.msra.mxu0 0.0
    %3209 = vmatprep.subr.mxu0 0.0
    %3210 = vmatpush1.xpose.msra.mxu0 0.0
    %3211 = vmatprep.subr.mxu0 0.0
    %3212 = vmatpush1.xpose.msra.mxu0 0.0
    %3213 = vmatprep.subr.mxu0 0.0
    %3214 = vmatpush1.xpose.msra.mxu0 0.0
    %3215 = vmatprep.subr.mxu0 0.0
    %3216 = vmatpush1.xpose.msra.mxu0 0.0
    %3217 = vmatprep.subr.mxu0 0.0
    %3218 = vmatpush1.xpose.msra.mxu0 0.0
    %3219 = vmatprep.subr.mxu0 0.0
    %3220 = vmatpush1.xpose.msra.mxu0 0.0
    %3221 = vmatprep.subr.mxu0 0.0
    %3222 = vmatpush1.xpose.msra.mxu0 0.0
    %3223 = vmatprep.subr.mxu0 0.0
    %3224 = vmatpush1.xpose.msra.mxu0 0.0
    %3225 = vmatprep.subr.mxu0 0.0
    %3226 = vmatpush1.xpose.msra.mxu0 0.0
    %3227 = vmatprep.subr.mxu0 0.0
    %3228 = vmatpush1.xpose.msra.mxu0 0.0
    %3229 = vmatprep.subr.mxu0 0.0
    %3230 = vmatpush1.xpose.msra.mxu0 0.0
    %3231 = vmatprep.subr.mxu0 0.0
    %3232 = vmatpush1.xpose.msra.mxu0 0.0
    %3233 = vmatprep.subr.mxu0 0.0
    %3234 = vmatpush1.xpose.msra.mxu0 0.0
    %3235 = vmatprep.subr.mxu0 0.0
    %3236 = vmatpush1.xpose.msra.mxu0 0.0
    %3237 = vmatprep.subr.mxu0 0.0
    %3238 = vmatpush1.xpose.msra.mxu0 0.0
    %3239 = vmatprep.subr.mxu0 0.0
    %3240 = vmatpush1.xpose.msra.mxu0 0.0
    %3241 = vmatprep.subr.mxu0 0.0
    %3242 = vmatpush1.xpose.msra.mxu0 0.0
    %3243 = vmatprep.subr.mxu0 0.0
    %3244 = vmatpush1.xpose.msra.mxu0 0.0
    %3245 = vmatprep.subr.mxu0 0.0
    %3246 = vmatpush1.xpose.msra.mxu0 0.0
    %3247 = vmatprep.subr.mxu0 0.0
    %3248 = vmatpush1.xpose.msra.mxu0 0.0
    %3249 = vmatprep.subr.mxu0 0.0
    %3250 = vmatpush1.xpose.msra.mxu0 0.0
    %3251 = vmatprep.subr.mxu0 0.0
    %3252 = vmatpush1.xpose.msra.mxu0 0.0
    %3253 = vmatprep.subr.mxu0 0.0
    %3254 = vmatpush1.xpose.msra.mxu0 0.0
    %3255 = vmatprep.subr.mxu0 0.0
    %3256 = vmatpush1.xpose.msra.mxu0 0.0
    %3257 = vmatprep.subr.mxu0 0.0
    %3258 = vmatpush1.xpose.msra.mxu0 0.0
    %3259 = vmatprep.subr.mxu0 0.0
    %3260 = vmatpush1.xpose.msra.mxu0 0.0
    %3261 = vmatprep.subr.mxu0 0.0
    %3262 = vmatpush1.xpose.msra.mxu0 0.0
    %3263 = vmatprep.subr.mxu0 0.0
    %3264 = vmatpush1.xpose.msra.mxu0 0.0
    %3265 = vmatprep.subr.mxu0 0.0
    %3266 = vmatpush1.xpose.msra.mxu0 0.0
    %3267 = vmatprep.subr.mxu0 0.0
    %3268 = vmatpush1.xpose.msra.mxu0 0.0
    %3269 = vmatprep.mubr.f32.mxu0 0.0
    %3270 = vmatmul.mubr.f32.gmra.mrb[0].mxu0 %v3201
    %v3271 = vpop.f32.mrb[0].mxu0
    %v3272 = vadd.f32 %v66, %v3271
    %v3273 = vpop.f32.mrb[0].mxu0
    %3274 = vdwg.mxu0
    %v3275 = vsel %vm320, %v3272, -inf
    %3276 = vmax.xlane.f32.xlu0 %v3275
    %v3277 = vpop.xlane.xlu0 %3276
    %v3278 = vsub.f32 %v3272, %v3277
    %v3279 = vmul.f32 %v3278, 1.442695
    %v3280 = vpow.pop %v3279
    %v3281 = vsel %vm320, %v3280, 0.0
    %3282 = vadd.xlane.f32.xlu0 %v3281
    %v3283 = vpop.xlane.xlu0 %3282
    %v3284 = vrcp.pop %v3283
    %v3285 = vmul.f32 %v3280, %v3284
    %3286 = vrot.lane.b32.xlu0 %v2191, 48
    %v3287 = vpop.permute.xlu0 %3286
    %v3290 = vsel %vm320, %v3285, 0
    %3292 = vmatprep.subr.mxu0 0.0
    %3293 = vmatpush1.msra.mxu0 %v3287
    %3294 = vmatprep.subr.mxu0 0.0
    %3295 = vmatpush1.msra.mxu0 0.0
    %3296 = vmatprep.subr.mxu0 0.0
    %3297 = vmatpush1.msra.mxu0 0.0
    %3298 = vmatprep.subr.mxu0 0.0
    %3299 = vmatpush1.msra.mxu0 0.0
    %3300 = vmatprep.subr.mxu0 0.0
    %3301 = vmatpush1.msra.mxu0 0.0
    %3302 = vmatprep.subr.mxu0 0.0
    %3303 = vmatpush1.msra.mxu0 0.0
    %3304 = vmatprep.subr.mxu0 0.0
    %3305 = vmatpush1.msra.mxu0 0.0
    %3306 = vmatprep.subr.mxu0 0.0
    %3307 = vmatpush1.msra.mxu0 0.0
    %3308 = vmatprep.subr.mxu0 0.0
    %3309 = vmatpush1.msra.mxu0 0.0
    %3310 = vmatprep.subr.mxu0 0.0
    %3311 = vmatpush1.msra.mxu0 0.0
    %3312 = vmatprep.subr.mxu0 0.0
    %3313 = vmatpush1.msra.mxu0 0.0
    %3314 = vmatprep.subr.mxu0 0.0
    %3315 = vmatpush1.msra.mxu0 0.0
    %3316 = vmatprep.subr.mxu0 0.0
    %3317 = vmatpush1.msra.mxu0 0.0
    %3318 = vmatprep.subr.mxu0 0.0
    %3319 = vmatpush1.msra.mxu0 0.0
    %3320 = vmatprep.subr.mxu0 0.0
    %3321 = vmatpush1.msra.mxu0 0.0
    %3322 = vmatprep.subr.mxu0 0.0
    %3323 = vmatpush1.msra.mxu0 0.0
    %3324 = vmatprep.subr.mxu0 0.0
    %3325 = vmatpush1.msra.mxu0 0.0
    %3326 = vmatprep.subr.mxu0 0.0
    %3327 = vmatpush1.msra.mxu0 0.0
    %3328 = vmatprep.subr.mxu0 0.0
    %3329 = vmatpush1.msra.mxu0 0.0
    %3330 = vmatprep.subr.mxu0 0.0
    %3331 = vmatpush1.msra.mxu0 0.0
    %3332 = vmatprep.subr.mxu0 0.0
    %3333 = vmatpush1.msra.mxu0 0.0
    %3334 = vmatprep.subr.mxu0 0.0
    %3335 = vmatpush1.msra.mxu0 0.0
    %3336 = vmatprep.subr.mxu0 0.0
    %3337 = vmatpush1.msra.mxu0 0.0
    %3338 = vmatprep.subr.mxu0 0.0
    %3339 = vmatpush1.msra.mxu0 0.0
    %3340 = vmatprep.subr.mxu0 0.0
    %3341 = vmatpush1.msra.mxu0 0.0
    %3342 = vmatprep.subr.mxu0 0.0
    %3343 = vmatpush1.msra.mxu0 0.0
    %3344 = vmatprep.subr.mxu0 0.0
    %3345 = vmatpush1.msra.mxu0 0.0
    %3346 = vmatprep.subr.mxu0 0.0
    %3347 = vmatpush1.msra.mxu0 0.0
    %3348 = vmatprep.subr.mxu0 0.0
    %3349 = vmatpush1.msra.mxu0 0.0
    %3350 = vmatprep.subr.mxu0 0.0
    %3351 = vmatpush1.msra.mxu0 0.0
    %3352 = vmatprep.subr.mxu0 0.0
    %3353 = vmatpush1.msra.mxu0 0.0
    %3354 = vmatprep.subr.mxu0 0.0
    %3355 = vmatpush1.msra.mxu0 0.0
    %3356 = vmatprep.mubr.f32.mxu0 0.0
    %3357 = vmatmul.mubr.f32.gmra.mrb[0].mxu0 %v3290
    %v3358 = vpop.f32.mrb[0].mxu0
    %v3359 = vadd.f32 0.0, %v3358
    %v3360 = vpop.f32.mrb[0].mxu0
    %3361 = vdwg.mxu0
    %3362 = vrot.lane.b32.xlu0 %v2191, 104
    %v3363 = vpop.permute.xlu0 %3362
    %3364 = vrot.lane.b32.xlu0 %v2191, 72
    %v3365 = vpop.permute.xlu0 %3364
    %v3366 = vsel %vm320, %v3363, 0
    %v3368 = vsel %vm320, %v3365, 0
    %3370 = vmatprep.subr.mxu0 0.0
    %3371 = vmatpush1.xpose.msra.mxu0 %v3368
    %3372 = vmatprep.subr.mxu0 0.0
    %3373 = vmatpush1.xpose.msra.mxu0 0.0
    %3374 = vmatprep.subr.mxu0 0.0
    %3375 = vmatpush1.xpose.msra.mxu0 0.0
    %3376 = vmatprep.subr.mxu0 0.0
    %3377 = vmatpush1.xpose.msra.mxu0 0.0
    %3378 = vmatprep.subr.mxu0 0.0
    %3379 = vmatpush1.xpose.msra.mxu0 0.0
    %3380 = vmatprep.subr.mxu0 0.0
    %3381 = vmatpush1.xpose.msra.mxu0 0.0
    %3382 = vmatprep.subr.mxu0 0.0
    %3383 = vmatpush1.xpose.msra.mxu0 0.0
    %3384 = vmatprep.subr.mxu0 0.0
    %3385 = vmatpush1.xpose.msra.mxu0 0.0
    %3386 = vmatprep.subr.mxu0 0.0
    %3387 = vmatpush1.xpose.msra.mxu0 0.0
    %3388 = vmatprep.subr.mxu0 0.0
    %3389 = vmatpush1.xpose.msra.mxu0 0.0
    %3390 = vmatprep.subr.mxu0 0.0
    %3391 = vmatpush1.xpose.msra.mxu0 0.0
    %3392 = vmatprep.subr.mxu0 0.0
    %3393 = vmatpush1.xpose.msra.mxu0 0.0
    %3394 = vmatprep.subr.mxu0 0.0
    %3395 = vmatpush1.xpose.msra.mxu0 0.0
    %3396 = vmatprep.subr.mxu0 0.0
    %3397 = vmatpush1.xpose.msra.mxu0 0.0
    %3398 = vmatprep.subr.mxu0 0.0
    %3399 = vmatpush1.xpose.msra.mxu0 0.0
    %3400 = vmatprep.subr.mxu0 0.0
    %3401 = vmatpush1.xpose.msra.mxu0 0.0
    %3402 = vmatprep.subr.mxu0 0.0
    %3403 = vmatpush1.xpose.msra.mxu0 0.0
    %3404 = vmatprep.subr.mxu0 0.0
    %3405 = vmatpush1.xpose.msra.mxu0 0.0
    %3406 = vmatprep.subr.mxu0 0.0
    %3407 = vmatpush1.xpose.msra.mxu0 0.0
    %3408 = vmatprep.subr.mxu0 0.0
    %3409 = vmatpush1.xpose.msra.mxu0 0.0
    %3410 = vmatprep.subr.mxu0 0.0
    %3411 = vmatpush1.xpose.msra.mxu0 0.0
    %3412 = vmatprep.subr.mxu0 0.0
    %3413 = vmatpush1.xpose.msra.mxu0 0.0
    %3414 = vmatprep.subr.mxu0 0.0
    %3415 = vmatpush1.xpose.msra.mxu0 0.0
    %3416 = vmatprep.subr.mxu0 0.0
    %3417 = vmatpush1.xpose.msra.mxu0 0.0
    %3418 = vmatprep.subr.mxu0 0.0
    %3419 = vmatpush1.xpose.msra.mxu0 0.0
    %3420 = vmatprep.subr.mxu0 0.0
    %3421 = vmatpush1.xpose.msra.mxu0 0.0
    %3422 = vmatprep.subr.mxu0 0.0
    %3423 = vmatpush1.xpose.msra.mxu0 0.0
    %3424 = vmatprep.subr.mxu0 0.0
    %3425 = vmatpush1.xpose.msra.mxu0 0.0
    %3426 = vmatprep.subr.mxu0 0.0
    %3427 = vmatpush1.xpose.msra.mxu0 0.0
    %3428 = vmatprep.subr.mxu0 0.0
    %3429 = vmatpush1.xpose.msra.mxu0 0.0
    %3430 = vmatprep.subr.mxu0 0.0
    %3431 = vmatpush1.xpose.msra.mxu0 0.0
    %3432 = vmatprep.subr.mxu0 0.0
    %3433 = vmatpush1.xpose.msra.mxu0 0.0
    %3434 = vmatprep.mubr.f32.mxu0 0.0
    %3435 = vmatmul.mubr.f32.gmra.mrb[0].mxu0 %v3366
    %v3436 = vpop.f32.mrb[0].mxu0
    %v3437 = vadd.f32 %v66, %v3436
    %v3438 = vpop.f32.mrb[0].mxu0
    %3439 = vdwg.mxu0
    %v3440 = vsel %vm320, %v3437, -inf
    %3441 = vmax.xlane.f32.xlu0 %v3440
    %v3442 = vpop.xlane.xlu0 %3441
    %v3443 = vsub.f32 %v3437, %v3442
    %v3444 = vmul.f32 %v3443, 1.442695
    %v3445 = vpow.pop %v3444
    %v3446 = vsel %vm320, %v3445, 0.0
    %3447 = vadd.xlane.f32.xlu0 %v3446
    %v3448 = vpop.xlane.xlu0 %3447
    %v3449 = vrcp.pop %v3448
    %v3450 = vmul.f32 %v3445, %v3449
    %3451 = vrot.lane.b32.xlu0 %v2191, 40
    %v3452 = vpop.permute.xlu0 %3451
    %v3455 = vsel %vm320, %v3450, 0
    %3457 = vmatprep.subr.mxu0 0.0
    %3458 = vmatpush1.msra.mxu0 %v3452
    %3459 = vmatprep.subr.mxu0 0.0
    %3460 = vmatpush1.msra.mxu0 0.0
    %3461 = vmatprep.subr.mxu0 0.0
    %3462 = vmatpush1.msra.mxu0 0.0
    %3463 = vmatprep.subr.mxu0 0.0
    %3464 = vmatpush1.msra.mxu0 0.0
    %3465 = vmatprep.subr.mxu0 0.0
    %3466 = vmatpush1.msra.mxu0 0.0
    %3467 = vmatprep.subr.mxu0 0.0
    %3468 = vmatpush1.msra.mxu0 0.0
    %3469 = vmatprep.subr.mxu0 0.0
    %3470 = vmatpush1.msra.mxu0 0.0
    %3471 = vmatprep.subr.mxu0 0.0
    %3472 = vmatpush1.msra.mxu0 0.0
    %3473 = vmatprep.subr.mxu0 0.0
    %3474 = vmatpush1.msra.mxu0 0.0
    %3475 = vmatprep.subr.mxu0 0.0
    %3476 = vmatpush1.msra.mxu0 0.0
    %3477 = vmatprep.subr.mxu0 0.0
    %3478 = vmatpush1.msra.mxu0 0.0
    %3479 = vmatprep.subr.mxu0 0.0
    %3480 = vmatpush1.msra.mxu0 0.0
    %3481 = vmatprep.subr.mxu0 0.0
    %3482 = vmatpush1.msra.mxu0 0.0
    %3483 = vmatprep.subr.mxu0 0.0
    %3484 = vmatpush1.msra.mxu0 0.0
    %3485 = vmatprep.subr.mxu0 0.0
    %3486 = vmatpush1.msra.mxu0 0.0
    %3487 = vmatprep.subr.mxu0 0.0
    %3488 = vmatpush1.msra.mxu0 0.0
    %3489 = vmatprep.subr.mxu0 0.0
    %3490 = vmatpush1.msra.mxu0 0.0
    %3491 = vmatprep.subr.mxu0 0.0
    %3492 = vmatpush1.msra.mxu0 0.0
    %3493 = vmatprep.subr.mxu0 0.0
    %3494 = vmatpush1.msra.mxu0 0.0
    %3495 = vmatprep.subr.mxu0 0.0
    %3496 = vmatpush1.msra.mxu0 0.0
    %3497 = vmatprep.subr.mxu0 0.0
    %3498 = vmatpush1.msra.mxu0 0.0
    %3499 = vmatprep.subr.mxu0 0.0
    %3500 = vmatpush1.msra.mxu0 0.0
    %3501 = vmatprep.subr.mxu0 0.0
    %3502 = vmatpush1.msra.mxu0 0.0
    %3503 = vmatprep.subr.mxu0 0.0
    %3504 = vmatpush1.msra.mxu0 0.0
    %3505 = vmatprep.subr.mxu0 0.0
    %3506 = vmatpush1.msra.mxu0 0.0
    %3507 = vmatprep.subr.mxu0 0.0
    %3508 = vmatpush1.msra.mxu0 0.0
    %3509 = vmatprep.subr.mxu0 0.0
    %3510 = vmatpush1.msra.mxu0 0.0
    %3511 = vmatprep.subr.mxu0 0.0
    %3512 = vmatpush1.msra.mxu0 0.0
    %3513 = vmatprep.subr.mxu0 0.0
    %3514 = vmatpush1.msra.mxu0 0.0
    %3515 = vmatprep.subr.mxu0 0.0
    %3516 = vmatpush1.msra.mxu0 0.0
    %3517 = vmatprep.subr.mxu0 0.0
    %3518 = vmatpush1.msra.mxu0 0.0
    %3519 = vmatprep.subr.mxu0 0.0
    %3520 = vmatpush1.msra.mxu0 0.0
    %3521 = vmatprep.mubr.f32.mxu0 0.0
    %3522 = vmatmul.mubr.f32.gmra.mrb[0].mxu0 %v3455
    %v3523 = vpop.f32.mrb[0].mxu0
    %v3524 = vadd.f32 0.0, %v3523
    %v3525 = vpop.f32.mrb[0].mxu0
    %3526 = vdwg.mxu0
    %3528 = vrot.lane.b32.xlu0 %v3194, 8
    %v3529 = vpop.permute.xlu0 %3528
    %3532 = vrot.lane.b32.xlu0 %v3359, 16
    %v3533 = vpop.permute.xlu0 %3532
    %3536 = vrot.lane.b32.xlu0 %v3524, 24
    %v3537 = vpop.permute.xlu0 %3536
    %v3539 = vsel %vm320, %v3029, %v3529
    %v3540 = vsel %vm990, %v3539, %v3533
    %v3541 = vsel %vm992, %v3540, %v3537
    %s3542 = scalar_lea.vmem %s7, 32
    %v3543 = vld [vmem:[%s3542] sm:$0xff]
    %v3544 = vld [vmem:[%s3542 + $0x8] sm:$0xff]
    %v3545 = vld [vmem:[%s3542 + $0x10] sm:$0xff]
    %v3546 = vld [vmem:[%s3542 + $0x18] sm:$0xff]
    %v3548 = vsel %vm181, %v2867, 0
    %v3551 = vsel %vm181, %v3541, 0
    %3553 = vmatprep.subr.mxu0 0.0
    %3554 = vmatpush1.msra.mxu0 %v3543
    %3555 = vmatprep.subr.mxu0 0.0
    %3556 = vmatpush1.msra.mxu0 %v3544
    %3557 = vmatprep.subr.mxu0 0.0
    %3558 = vmatpush1.msra.mxu0 %v3545
    %3559 = vmatprep.subr.mxu0 0.0
    %3560 = vmatpush1.msra.mxu0 %v3546
    %3561 = vmatprep.subr.mxu0 0.0
    %3562 = vmatpush1.msra.mxu0 0.0
    %3563 = vmatprep.subr.mxu0 0.0
    %3564 = vmatpush1.msra.mxu0 0.0
    %3565 = vmatprep.subr.mxu0 0.0
    %3566 = vmatpush1.msra.mxu0 0.0
    %3567 = vmatprep.subr.mxu0 0.0
    %3568 = vmatpush1.msra.mxu0 0.0
    %3569 = vmatprep.subr.mxu0 0.0
    %3570 = vmatpush1.msra.mxu0 0.0
    %3571 = vmatprep.subr.mxu0 0.0
    %3572 = vmatpush1.msra.mxu0 0.0
    %3573 = vmatprep.subr.mxu0 0.0
    %3574 = vmatpush1.msra.mxu0 0.0
    %3575 = vmatprep.subr.mxu0 0.0
    %3576 = vmatpush1.msra.mxu0 0.0
    %3577 = vmatprep.subr.mxu0 0.0
    %3578 = vmatpush1.msra.mxu0 0.0
    %3579 = vmatprep.subr.mxu0 0.0
    %3580 = vmatpush1.msra.mxu0 0.0
    %3581 = vmatprep.subr.mxu0 0.0
    %3582 = vmatpush1.msra.mxu0 0.0
    %3583 = vmatprep.subr.mxu0 0.0
    %3584 = vmatpush1.msra.mxu0 0.0
    %3585 = vmatprep.subr.mxu0 0.0
    %3586 = vmatpush1.msra.mxu0 0.0
    %3587 = vmatprep.subr.mxu0 0.0
    %3588 = vmatpush1.msra.mxu0 0.0
    %3589 = vmatprep.subr.mxu0 0.0
    %3590 = vmatpush1.msra.mxu0 0.0
    %3591 = vmatprep.subr.mxu0 0.0
    %3592 = vmatpush1.msra.mxu0 0.0
    %3593 = vmatprep.subr.mxu0 0.0
    %3594 = vmatpush1.msra.mxu0 0.0
    %3595 = vmatprep.subr.mxu0 0.0
    %3596 = vmatpush1.msra.mxu0 0.0
    %3597 = vmatprep.subr.mxu0 0.0
    %3598 = vmatpush1.msra.mxu0 0.0
    %3599 = vmatprep.subr.mxu0 0.0
    %3600 = vmatpush1.msra.mxu0 0.0
    %3601 = vmatprep.subr.mxu0 0.0
    %3602 = vmatpush1.msra.mxu0 0.0
    %3603 = vmatprep.subr.mxu0 0.0
    %3604 = vmatpush1.msra.mxu0 0.0
    %3605 = vmatprep.subr.mxu0 0.0
    %3606 = vmatpush1.msra.mxu0 0.0
    %3607 = vmatprep.subr.mxu0 0.0
    %3608 = vmatpush1.msra.mxu0 0.0
    %3609 = vmatprep.subr.mxu0 0.0
    %3610 = vmatpush1.msra.mxu0 0.0
    %3611 = vmatprep.subr.mxu0 0.0
    %3612 = vmatpush1.msra.mxu0 0.0
    %3613 = vmatprep.subr.mxu0 0.0
    %3614 = vmatpush1.msra.mxu0 0.0
    %3615 = vmatprep.subr.mxu0 0.0
    %3616 = vmatpush1.msra.mxu0 0.0
    %3617 = vmatprep.mubr.f32.mxu0 0.0
    %3618 = vmatmul.mubr.f32.gmra.mrb[0].mxu0 %v3548
    %v3619 = vpop.f32.mrb[0].mxu0
    %v3620 = vadd.f32 0.0, %v3619
    %v3621 = vpop.f32.mrb[0].mxu0
    %3622 = vmatprep.mubr.f32.mxu0 0.0
    %3623 = vmatmul.mubr.f32.gmra.mrb[0].mxu0 %v3551
    %v3624 = vpop.f32.mrb[0].mxu0
    %v3625 = vadd.f32 0.0, %v3624
    %v3626 = vpop.f32.mrb[0].mxu0
    %3627 = vdwg.mxu0
    %v3628 = vadd.f32 %v2052, %v3620
    %v3629 = vadd.f32 %v2053, %v3625
    %s3630 = scalar_lea.vmem %s8, 1
    %v3631 = vld [vmem:[%s3630] sm:$0x1]
    %v3633 = vlaneseq
    %v3634 = vshrl.u32 %v3633, 7
    %v3635 = vsub.s32 0, %v3634
    %v3636 = vrot.slane %v3631, %v3635
    %v3638 = vadd.f32 %v3628, %v3636
    %v3639 = vadd.f32 %v3629, %v3636
    %s3640 = scalar_lea.vmem %s9, 1
    %v3641 = vld [vmem:[%s3640] sm:$0x1]
    %s3642 = scalar_lea.vmem %s10, 1
    %v3643 = vld [vmem:[%s3642] sm:$0x1]
    %v3644 = vsel %vm181, %v3638, 0.0
    %3645 = vadd.xlane.f32.xlu0 %v3644
    %v3646 = vpop.xlane.xlu0 %3645
    %v3647 = vsel %vm181, %v3639, 0.0
    %3648 = vadd.xlane.f32.xlu0 %v3647
    %v3649 = vpop.xlane.xlu0 %3648
    %v3650 = vmul.f32 %v3646, %v188
    %v3651 = vmul.f32 %v3649, %v188
    %v3652 = vsub.f32 %v3638, %v3650
    %v3653 = vsub.f32 %v3639, %v3651
    %v3654 = vmul.f32 %v3652, %v3652
    %v3655 = vmul.f32 %v3653, %v3653
    %v3656 = vsel %vm181, %v3654, 0.0
    %3657 = vadd.xlane.f32.xlu0 %v3656
    %v3658 = vpop.xlane.xlu0 %3657
    %v3659 = vsel %vm181, %v3655, 0.0
    %3660 = vadd.xlane.f32.xlu0 %v3659
    %v3661 = vpop.xlane.xlu0 %3660
    %v3662 = vmul.f32 %v3658, %v188
    %v3663 = vmul.f32 %v3661, %v188
    %v3664 = vadd.f32 %v3662, 1e-05
    %v3665 = vadd.f32 %v3663, 1e-05
    %v3666 = vrsqrt.pop %v3664
    %v3667 = vrsqrt.pop %v3665
    %v3668 = vmul.f32 %v3652, %v3666
    %v3669 = vmul.f32 %v3653, %v3667
    %v3671 = vlaneseq
    %v3672 = vshrl.u32 %v3671, 7
    %v3673 = vsub.s32 0, %v3672
    %v3674 = vrot.slane %v3641, %v3673
    %v3676 = vmul.f32 %v3668, %v3674
    %v3677 = vmul.f32 %v3669, %v3674
    %v3679 = vlaneseq
    %v3680 = vshrl.u32 %v3679, 7
    %v3681 = vsub.s32 0, %v3680
    %v3682 = vrot.slane %v3643, %v3681
    %v3684 = vadd.f32 %v3676, %v3682
    %v3685 = vadd.f32 %v3677, %v3682
    %s3686 = scalar_lea.vmem %s11, 32
    %v3687 = vld [vmem:[%s3686] sm:$0xff]
    %v3688 = vld [vmem:[%s3686 + $0x8] sm:$0xff]
    %v3689 = vld [vmem:[%s3686 + $0x10] sm:$0xff]
    %v3690 = vld [vmem:[%s3686 + $0x18] sm:$0xff]
    %s3691 = scalar_lea.vmem %s12, 1
    %v3692 = vld [vmem:[%s3691] sm:$0x1]
    %v3694 = vlaneseq
    %v3695 = vshrl.u32 %v3694, 7
    %v3696 = vsub.s32 0, %v3695
    %v3697 = vrot.slane %v3692, %v3696
    %v3700 = vsel %vm181, %v3684, 0
    %v3703 = vsel %vm181, %v3685, 0
    %3705 = vmatprep.subr.mxu0 0.0
    %3706 = vmatpush1.msra.mxu0 %v3687
    %3707 = vmatprep.subr.mxu0 0.0
    %3708 = vmatpush1.msra.mxu0 %v3688
    %3709 = vmatprep.subr.mxu0 0.0
    %3710 = vmatpush1.msra.mxu0 %v3689
    %3711 = vmatprep.subr.mxu0 0.0
    %3712 = vmatpush1.msra.mxu0 %v3690
    %3713 = vmatprep.subr.mxu0 0.0
    %3714 = vmatpush1.msra.mxu0 0.0
    %3715 = vmatprep.subr.mxu0 0.0
    %3716 = vmatpush1.msra.mxu0 0.0
    %3717 = vmatprep.subr.mxu0 0.0
    %3718 = vmatpush1.msra.mxu0 0.0
    %3719 = vmatprep.subr.mxu0 0.0
    %3720 = vmatpush1.msra.mxu0 0.0
    %3721 = vmatprep.subr.mxu0 0.0
    %3722 = vmatpush1.msra.mxu0 0.0
    %3723 = vmatprep.subr.mxu0 0.0
    %3724 = vmatpush1.msra.mxu0 0.0
    %3725 = vmatprep.subr.mxu0 0.0
    %3726 = vmatpush1.msra.mxu0 0.0
    %3727 = vmatprep.subr.mxu0 0.0
    %3728 = vmatpush1.msra.mxu0 0.0
    %3729 = vmatprep.subr.mxu0 0.0
    %3730 = vmatpush1.msra.mxu0 0.0
    %3731 = vmatprep.subr.mxu0 0.0
    %3732 = vmatpush1.msra.mxu0 0.0
    %3733 = vmatprep.subr.mxu0 0.0
    %3734 = vmatpush1.msra.mxu0 0.0
    %3735 = vmatprep.subr.mxu0 0.0
    %3736 = vmatpush1.msra.mxu0 0.0
    %3737 = vmatprep.subr.mxu0 0.0
    %3738 = vmatpush1.msra.mxu0 0.0
    %3739 = vmatprep.subr.mxu0 0.0
    %3740 = vmatpush1.msra.mxu0 0.0
    %3741 = vmatprep.subr.mxu0 0.0
    %3742 = vmatpush1.msra.mxu0 0.0
    %3743 = vmatprep.subr.mxu0 0.0
    %3744 = vmatpush1.msra.mxu0 0.0
    %3745 = vmatprep.subr.mxu0 0.0
    %3746 = vmatpush1.msra.mxu0 0.0
    %3747 = vmatprep.subr.mxu0 0.0
    %3748 = vmatpush1.msra.mxu0 0.0
    %3749 = vmatprep.subr.mxu0 0.0
    %3750 = vmatpush1.msra.mxu0 0.0
    %3751 = vmatprep.subr.mxu0 0.0
    %3752 = vmatpush1.msra.mxu0 0.0
    %3753 = vmatprep.subr.mxu0 0.0
    %3754 = vmatpush1.msra.mxu0 0.0
    %3755 = vmatprep.subr.mxu0 0.0
    %3756 = vmatpush1.msra.mxu0 0.0
    %3757 = vmatprep.subr.mxu0 0.0
    %3758 = vmatpush1.msra.mxu0 0.0
    %3759 = vmatprep.subr.mxu0 0.0
    %3760 = vmatpush1.msra.mxu0 0.0
    %3761 = vmatprep.subr.mxu0 0.0
    %3762 = vmatpush1.msra.mxu0 0.0
    %3763 = vmatprep.subr.mxu0 0.0
    %3764 = vmatpush1.msra.mxu0 0.0
    %3765 = vmatprep.subr.mxu0 0.0
    %3766 = vmatpush1.msra.mxu0 0.0
    %3767 = vmatprep.subr.mxu0 0.0
    %3768 = vmatpush1.msra.mxu0 0.0
    %3769 = vmatprep.mubr.f32.mxu0 0.0
    %3770 = vmatmul.mubr.f32.gmra.mrb[0].mxu0 %v3700
    %v3771 = vpop.f32.mrb[0].mxu0
    %v3772 = vadd.f32 %v3697, %v3771
    %v3773 = vpop.f32.mrb[0].mxu0
    %3774 = vmatprep.mubr.f32.mxu0 0.0
    %3775 = vmatmul.mubr.f32.gmra.mrb[0].mxu0 %v3703
    %v3776 = vpop.f32.mrb[0].mxu0
    %v3777 = vadd.f32 %v3697, %v3776
    %v3778 = vpop.f32.mrb[0].mxu0
    %3779 = vdwg.mxu0
    %v3780 = vmul.f32 %v3772, 0.70710677
    %v3781 = vmul.f32 %v3777, 0.70710677
    %v3782 = vand.u32 2147483647, %v3780
    %v3783 = vand.u32 2147483647, %v3781
    %v3784 = vmul.f32 %v3782, 0.3275911
    %v3785 = vmul.f32 %v3783, 0.3275911
    %v3786 = vadd.f32 %v3784, 1.0
    %v3787 = vadd.f32 %v3785, 1.0
    %v3788 = vrcp.pop %v3786
    %v3789 = vmul.f32 1.0, %v3788
    %v3790 = vrcp.pop %v3787
    %v3791 = vmul.f32 1.0, %v3790
    %v3792 = vmul.f32 %v3789, 1.0614054
    %v3793 = vmul.f32 %v3791, 1.0614054
    %v3794 = vadd.f32 %v3792, -1.4531521
    %v3795 = vadd.f32 %v3793, -1.4531521
    %v3796 = vmul.f32 %v3789, %v3794
    %v3797 = vmul.f32 %v3791, %v3795
    %v3798 = vadd.f32 %v3796, 1.4214138
    %v3799 = vadd.f32 %v3797, 1.4214138
    %v3800 = vmul.f32 %v3789, %v3798
    %v3801 = vmul.f32 %v3791, %v3799
    %v3802 = vadd.f32 %v3800, -0.28449672
    %v3803 = vadd.f32 %v3801, -0.28449672
    %v3804 = vmul.f32 %v3789, %v3802
    %v3805 = vmul.f32 %v3791, %v3803
    %v3806 = vadd.f32 %v3804, 0.2548296
    %v3807 = vadd.f32 %v3805, 0.2548296
    %v3808 = vmul.f32 %v3789, %v3806
    %v3809 = vmul.f32 %v3791, %v3807
    %v3810 = vsub.f32 0.0, %v3782
    %v3811 = vsub.f32 0.0, %v3783
    %v3812 = vmul.f32 %v3810, %v3782
    %v3813 = vmul.f32 %v3811, %v3783
    %v3814 = vmul.f32 %v3812, 1.442695
    %v3815 = vpow.pop %v3814
    %v3816 = vmul.f32 %v3813, 1.442695
    %v3817 = vpow.pop %v3816
    %v3818 = vmul.f32 %v3808, %v3815
    %v3819 = vmul.f32 %v3809, %v3817
    %v3820 = vsub.f32 1.0, %v3818
    %v3821 = vsub.f32 1.0, %v3819
    %vm3822 = vcmp.ge.f32.partialorder %v3780, 0.0
    %vm3823 = vcmp.ge.f32.partialorder %v3781, 0.0
    %v3824 = vsub.f32 0.0, %v3820
    %v3825 = vsub.f32 0.0, %v3821
    %v3826 = vsel %vm3822, %v3820, %v3824
    %v3827 = vsel %vm3823, %v3821, %v3825
    %v3828 = vmul.f32 %v3772, 0.5
    %v3829 = vmul.f32 %v3777, 0.5
    %v3830 = vadd.f32 %v3826, 1.0
    %v3831 = vadd.f32 %v3827, 1.0
    %v3832 = vmul.f32 %v3828, %v3830
    %v3833 = vmul.f32 %v3829, %v3831
    %s3834 = scalar_lea.vmem %s13, 64
    %v3835 = vld [vmem:[%s3834] sm:$0xff]
    %v3836 = vld [vmem:[%s3834 + $0x8] sm:$0xff]
    %v3837 = vld [vmem:[%s3834 + $0x10] sm:$0xff]
    %v3838 = vld [vmem:[%s3834 + $0x18] sm:$0xff]
    %v3839 = vld [vmem:[%s3834 + $0x20] sm:$0xff]
    %v3840 = vld [vmem:[%s3834 + $0x28] sm:$0xff]
    %v3841 = vld [vmem:[%s3834 + $0x30] sm:$0xff]
    %v3842 = vld [vmem:[%s3834 + $0x38] sm:$0xff]
    %v3844 = vsel %vm97, %v3832, 0
    %v3847 = vsel %vm97, %v3833, 0
    %3849 = vmatprep.subr.mxu0 0.0
    %3850 = vmatpush1.msra.mxu0 %v3835
    %3851 = vmatprep.subr.mxu0 0.0
    %3852 = vmatpush1.msra.mxu0 %v3836
    %3853 = vmatprep.subr.mxu0 0.0
    %3854 = vmatpush1.msra.mxu0 %v3837
    %3855 = vmatprep.subr.mxu0 0.0
    %3856 = vmatpush1.msra.mxu0 %v3838
    %3857 = vmatprep.subr.mxu0 0.0
    %3858 = vmatpush1.msra.mxu0 %v3839
    %3859 = vmatprep.subr.mxu0 0.0
    %3860 = vmatpush1.msra.mxu0 %v3840
    %3861 = vmatprep.subr.mxu0 0.0
    %3862 = vmatpush1.msra.mxu0 %v3841
    %3863 = vmatprep.subr.mxu0 0.0
    %3864 = vmatpush1.msra.mxu0 %v3842
    %3865 = vmatprep.subr.mxu0 0.0
    %3866 = vmatpush1.msra.mxu0 0.0
    %3867 = vmatprep.subr.mxu0 0.0
    %3868 = vmatpush1.msra.mxu0 0.0
    %3869 = vmatprep.subr.mxu0 0.0
    %3870 = vmatpush1.msra.mxu0 0.0
    %3871 = vmatprep.subr.mxu0 0.0
    %3872 = vmatpush1.msra.mxu0 0.0
    %3873 = vmatprep.subr.mxu0 0.0
    %3874 = vmatpush1.msra.mxu0 0.0
    %3875 = vmatprep.subr.mxu0 0.0
    %3876 = vmatpush1.msra.mxu0 0.0
    %3877 = vmatprep.subr.mxu0 0.0
    %3878 = vmatpush1.msra.mxu0 0.0
    %3879 = vmatprep.subr.mxu0 0.0
    %3880 = vmatpush1.msra.mxu0 0.0
    %3881 = vmatprep.subr.mxu0 0.0
    %3882 = vmatpush1.msra.mxu0 0.0
    %3883 = vmatprep.subr.mxu0 0.0
    %3884 = vmatpush1.msra.mxu0 0.0
    %3885 = vmatprep.subr.mxu0 0.0
    %3886 = vmatpush1.msra.mxu0 0.0
    %3887 = vmatprep.subr.mxu0 0.0
    %3888 = vmatpush1.msra.mxu0 0.0
    %3889 = vmatprep.subr.mxu0 0.0
    %3890 = vmatpush1.msra.mxu0 0.0
    %3891 = vmatprep.subr.mxu0 0.0
    %3892 = vmatpush1.msra.mxu0 0.0
    %3893 = vmatprep.subr.mxu0 0.0
    %3894 = vmatpush1.msra.mxu0 0.0
    %3895 = vmatprep.subr.mxu0 0.0
    %3896 = vmatpush1.msra.mxu0 0.0
    %3897 = vmatprep.subr.mxu0 0.0
    %3898 = vmatpush1.msra.mxu0 0.0
    %3899 = vmatprep.subr.mxu0 0.0
    %3900 = vmatpush1.msra.mxu0 0.0
    %3901 = vmatprep.subr.mxu0 0.0
    %3902 = vmatpush1.msra.mxu0 0.0
    %3903 = vmatprep.subr.mxu0 0.0
    %3904 = vmatpush1.msra.mxu0 0.0
    %3905 = vmatprep.subr.mxu0 0.0
    %3906 = vmatpush1.msra.mxu0 0.0
    %3907 = vmatprep.subr.mxu0 0.0
    %3908 = vmatpush1.msra.mxu0 0.0
    %3909 = vmatprep.subr.mxu0 0.0
    %3910 = vmatpush1.msra.mxu0 0.0
    %3911 = vmatprep.subr.mxu0 0.0
    %3912 = vmatpush1.msra.mxu0 0.0
    %3913 = vmatprep.mubr.f32.mxu0 0.0
    %3914 = vmatmul.mubr.f32.gmra.mrb[0].mxu0 %v3844
    %v3915 = vpop.f32.mrb[0].mxu0
    %v3916 = vadd.f32 0.0, %v3915
    %v3917 = vpop.f32.mrb[0].mxu0
    %3918 = vmatprep.mubr.f32.mxu0 0.0
    %3919 = vmatmul.mubr.f32.gmra.mrb[0].mxu0 %v3847
    %v3920 = vpop.f32.mrb[0].mxu0
    %v3921 = vadd.f32 0.0, %v3920
    %v3922 = vpop.f32.mrb[0].mxu0
    %3923 = vdwg.mxu0
    %v3924 = vadd.f32 %v3638, %v3916
    %v3925 = vadd.f32 %v3639, %v3921
    %s3926 = scalar_lea.vmem %s14, 1
    %v3927 = vld [vmem:[%s3926] sm:$0x1]
    %v3929 = vlaneseq
    %v3930 = vshrl.u32 %v3929, 7
    %v3931 = vsub.s32 0, %v3930
    %v3932 = vrot.slane %v3927, %v3931
    %v3934 = vadd.f32 %v3924, %v3932
    %v3935 = vadd.f32 %v3925, %v3932
    %v3937 = vrot.slane %v3935, 7
    %vm3939 = vcmask 1040384
    %v3940 = vsel %vm3939, %v3934, %v3937
    %v3941 = vld [vmem:[%s15] sm:$0x1]
    %v3942 = vld [vmem:[%s16] sm:$0x1]
    %vm3943 = vcmask 254976
    %v3944 = vsel %vm3943, %v3940, 0.0
    %3945 = vadd.xlane.f32.xlu0 %v3944
    %v3946 = vpop.xlane.xlu0 %3945
    %v3947 = vmul.f32 %v3946, %v188
    %v3948 = vsub.f32 %v3940, %v3947
    %v3949 = vmul.f32 %v3948, %v3948
    %v3950 = vsel %vm3943, %v3949, 0.0
    %3951 = vadd.xlane.f32.xlu0 %v3950
    %v3952 = vpop.xlane.xlu0 %3951
    %v3953 = vmul.f32 %v3952, %v188
    %v3954 = vadd.f32 %v3953, 1e-05
    %v3955 = vrsqrt.pop %v3954
    %v3956 = vmul.f32 %v3948, %v3955
    %v3958 = vlaneseq
    %v3959 = vshrl.u32 %v3958, 7
    %v3960 = vsub.s32 0, %v3959
    %v3961 = vrot.slane %v3941, %v3960
    %v3963 = vmul.f32 %v3956, %v3961
    %v3965 = vlaneseq
    %v3966 = vshrl.u32 %v3965, 7
    %v3967 = vsub.s32 0, %v3966
    %v3968 = vrot.slane %v3942, %v3967
    %v3970 = vadd.f32 %v3963, %v3968
    %v3971 = vsel %vm3943, %v3970, 0.0
    %3972 = vadd.xlane.f32.xlu0 %v3971
    %v3973 = vpop.xlane.xlu0 %3972
    %v3974 = vmul.f32 %v3973, %v188
    %v3975 = vsub.f32 %v3970, %v3974
    %v3976 = vmul.f32 %v3975, %v3975
    %v3977 = vsel %vm3943, %v3976, 0.0
    %3978 = vadd.xlane.f32.xlu0 %v3977
    %v3979 = vpop.xlane.xlu0 %3978
    %v3980 = vmul.f32 %v3979, %v188
    %v3981 = vadd.f32 %v3980, 1e-05
    %v3982 = vrsqrt.pop %v3981
    %v3983 = vmul.f32 %v3975, %v3982
    %v3984 = vmul.f32 %v3983, %v3961
    %v3985 = vadd.f32 %v3984, %v3968
    %v3986 = vld [vmem:[%s17] sm:$0xff]
    %v3987 = vld [vmem:[%s17 + $0x8] sm:$0xff]
    %v3988 = vld [vmem:[%s17 + $0x10] sm:$0xff]
    %v3989 = vld [vmem:[%s17 + $0x18] sm:$0xff]
    %v3990 = vld [vmem:[%s18] sm:$0x1]
    %v3992 = vlaneseq
    %v3993 = vshrl.u32 %v3992, 7
    %v3994 = vsub.s32 0, %v3993
    %v3995 = vrot.slane %v3990, %v3994
    %v3998 = vsel %vm181, %v3985, 0
    %4000 = vmatprep.subr.mxu0 0.0
    %4001 = vmatpush1.msra.mxu0 %v3986
    %4002 = vmatprep.subr.mxu0 0.0
    %4003 = vmatpush1.msra.mxu0 %v3987
    %4004 = vmatprep.subr.mxu0 0.0
    %4005 = vmatpush1.msra.mxu0 %v3988
    %4006 = vmatprep.subr.mxu0 0.0
    %4007 = vmatpush1.msra.mxu0 %v3989
    %4008 = vmatprep.subr.mxu0 0.0
    %4009 = vmatpush1.msra.mxu0 0.0
    %4010 = vmatprep.subr.mxu0 0.0
    %4011 = vmatpush1.msra.mxu0 0.0
    %4012 = vmatprep.subr.mxu0 0.0
    %4013 = vmatpush1.msra.mxu0 0.0
    %4014 = vmatprep.subr.mxu0 0.0
    %4015 = vmatpush1.msra.mxu0 0.0
    %4016 = vmatprep.subr.mxu0 0.0
    %4017 = vmatpush1.msra.mxu0 0.0
    %4018 = vmatprep.subr.mxu0 0.0
    %4019 = vmatpush1.msra.mxu0 0.0
    %4020 = vmatprep.subr.mxu0 0.0
    %4021 = vmatpush1.msra.mxu0 0.0
    %4022 = vmatprep.subr.mxu0 0.0
    %4023 = vmatpush1.msra.mxu0 0.0
    %4024 = vmatprep.subr.mxu0 0.0
    %4025 = vmatpush1.msra.mxu0 0.0
    %4026 = vmatprep.subr.mxu0 0.0
    %4027 = vmatpush1.msra.mxu0 0.0
    %4028 = vmatprep.subr.mxu0 0.0
    %4029 = vmatpush1.msra.mxu0 0.0
    %4030 = vmatprep.subr.mxu0 0.0
    %4031 = vmatpush1.msra.mxu0 0.0
    %4032 = vmatprep.subr.mxu0 0.0
    %4033 = vmatpush1.msra.mxu0 0.0
    %4034 = vmatprep.subr.mxu0 0.0
    %4035 = vmatpush1.msra.mxu0 0.0
    %4036 = vmatprep.subr.mxu0 0.0
    %4037 = vmatpush1.msra.mxu0 0.0
    %4038 = vmatprep.subr.mxu0 0.0
    %4039 = vmatpush1.msra.mxu0 0.0
    %4040 = vmatprep.subr.mxu0 0.0
    %4041 = vmatpush1.msra.mxu0 0.0
    %4042 = vmatprep.subr.mxu0 0.0
    %4043 = vmatpush1.msra.mxu0 0.0
    %4044 = vmatprep.subr.mxu0 0.0
    %4045 = vmatpush1.msra.mxu0 0.0
    %4046 = vmatprep.subr.mxu0 0.0
    %4047 = vmatpush1.msra.mxu0 0.0
    %4048 = vmatprep.subr.mxu0 0.0
    %4049 = vmatpush1.msra.mxu0 0.0
    %4050 = vmatprep.subr.mxu0 0.0
    %4051 = vmatpush1.msra.mxu0 0.0
    %4052 = vmatprep.subr.mxu0 0.0
    %4053 = vmatpush1.msra.mxu0 0.0
    %4054 = vmatprep.subr.mxu0 0.0
    %4055 = vmatpush1.msra.mxu0 0.0
    %4056 = vmatprep.subr.mxu0 0.0
    %4057 = vmatpush1.msra.mxu0 0.0
    %4058 = vmatprep.subr.mxu0 0.0
    %4059 = vmatpush1.msra.mxu0 0.0
    %4060 = vmatprep.subr.mxu0 0.0
    %4061 = vmatpush1.msra.mxu0 0.0
    %4062 = vmatprep.subr.mxu0 0.0
    %4063 = vmatpush1.msra.mxu0 0.0
    %4064 = vmatprep.mubr.f32.mxu0 0.0
    %4065 = vmatmul.mubr.f32.gmra.mrb[0].mxu0 %v3998
    %v4066 = vpop.f32.mrb[0].mxu0
    %v4067 = vadd.f32 %v3995, %v4066
    %v4068 = vpop.f32.mrb[0].mxu0
    %4069 = vdwg.mxu0
    %4070 = vst [vmem:[#allocation2] sm:$0x3] %v4067
    // Predicated region
    $region78: #{blip_classification_forward.1} parent=1 // pred_check
      _
    $region79: #{blip_classification_forward.1} parent=1 // pred_check_branch
      %4072 = sbr.rel (0) target = $region81
    $region80: #{blip_classification_forward.1} parent=1 // pred_region
      %s4074 = ssub.s32 32, 32
      %4075 = vsyncadd [#allocation3], %s4074
      %s4077 = sshll.u32 [#allocation2], 4
      %s4078 = int_to_ptr.vmem [resolvable:$true] %s4077
      %4080 = dma.vmem_to_hbm [thread:$0]  %s4078, 32, %s19, [#allocation3]
    $region81: #{blip_classification_forward.1} parent=1 // pred_fallthru
      _
    // Predicated region
    $region82: #{blip_classification_forward.1} parent=1 // pred_check
      _
    $region83: #{blip_classification_forward.1} parent=1 // pred_check_branch
      %4082 = sbr.rel (0) target = $region85
    $region84: #{blip_classification_forward.1} parent=1 // pred_region
      %4083 = dma.done [#allocation3], 32
    $region85: #{blip_classification_forward.1} parent=1 // pred_fallthru
      _
    %4084 = vsyncpa [#allocation3], 1

</llo_original>
